<compile_context>
chip_gen: v6e
topology: v6e:2x2x1
jax: 0.10.0
libtpu: 0.0.40
codegen_flags: <defaults>
</compile_context>

<pallas_src>
import functools

import jax
import jax.numpy as jnp
from jax.experimental import pallas as pl
from jax.experimental.pallas import tpu as pltpu


def _adapter_kernel(x_ref, pos_ref, g_ref, beta_ref, w1_ref, b1_ref,
                    w2_ref, b2_ref, tok_ref, o_ref, h_ref, *,
                    token_chunk, gelu_approx):
    """One grid step = (col_split cs, batch block bb, w2-column tile n).

    Phase 1 (n == 0 only): LayerNorm + pos_emb + linear1 + GELU for all image tokens
    of the Bm batches in this block, cached as bf16 in the VMEM scratch `h_ref`.
    Phase 2 (every n): one (T, tN) tile of linear2 per batch, written into this
    column stripe of the output at a +1 token offset; rows 0 and T+1 get the
    BOS/EOS `other_tokens` embeddings (Embedding rows 0 and 1).
    """
    n = pl.program_id(2)
    bm = h_ref.shape[0]
    num_tokens = pos_ref.shape[0]
    num_chunks = num_tokens // token_chunk

    @pl.when(n == 0)
    def _compute_hidden():
        gamma = g_ref[...].astype(jnp.float32)        # (1, F)
        beta = beta_ref[...].astype(jnp.float32)      # (1, F)
        b1 = b1_ref[...].astype(jnp.float32)          # (1, O)
        for b in range(bm):                           # small static batch block
            # fori_loop (not a static unroll) bounds the per-chunk f32 temporaries.
            def chunk_body(ti, carry, b=b):
                start = pl.multiple_of(ti * token_chunk, token_chunk)
                rows = pl.ds(start, token_chunk)
                x = x_ref[0, b, rows, :].astype(jnp.float32)          # (tc, F)
                # nn.LayerNorm: biased variance, eps = 1e-5, f32 statistics.
                mean = jnp.mean(x, axis=-1, keepdims=True)
                var = jnp.mean(jnp.square(x - mean), axis=-1, keepdims=True)
                xn = (x - mean) * jax.lax.rsqrt(var + 1e-5)
                xn = xn * gamma + beta + pos_ref[rows, :].astype(jnp.float32)
                # bf16 x bf16 -> f32 on the MXU (no f32 up-cast of the weights).
                h = jnp.dot(xn.astype(w1_ref.dtype), w1_ref[...],
                            preferred_element_type=jnp.float32) + b1
                # tanh-GELU by default: runs on the EUP slot instead of a long
                # erf VALU polynomial concentrated in this single grid step.
                h_ref[b, rows, :] = jax.nn.gelu(
                    h, approximate=gelu_approx).astype(h_ref.dtype)
                return carry
            jax.lax.fori_loop(0, num_chunks, chunk_body, 0)

    # linear2 for this column tile; image tokens land at output rows [1, T+1).
    b2 = b2_ref[...].astype(jnp.float32)              # (1, tN)
    w2 = w2_ref[...]                                  # (O, tN) bf16
    tok0 = tok_ref[0:1, :].astype(o_ref.dtype)        # BOS embedding stripe
    tok1 = tok_ref[1:2, :].astype(o_ref.dtype)        # EOS embedding stripe
    for b in range(bm):
        y = jnp.dot(h_ref[b], w2, preferred_element_type=jnp.float32) + b2
        o_ref[b, 0:1, :] = tok0
        o_ref[b, pl.ds(1, num_tokens), :] = y.astype(o_ref.dtype)
        o_ref[b, num_tokens + 1:num_tokens + 2, :] = tok1


def _pick_col_tile(out_features, target):
    """Largest 128-multiple divisor of O that is <= target (else full O)."""
    if out_features <= target:
        return out_features
    for d in range(target, 127, -128):
        if out_features % d == 0:
            return d
    return out_features


def _largest_divisor_leq(n, target):
    """Largest divisor of n that is <= target."""
    if n <= target:
        return n
    for d in range(target, 0, -1):
        if n % d == 0:
            return d
    return n


def _vmem_capacity_bytes():
    """Per-TensorCore VMEM capacity; conservative 64 MiB (v7x) if unqueryable."""
    try:
        return int(pltpu.get_tpu_info().vmem_capacity_bytes)
    except Exception:
        return 64 * 1024 * 1024


# Flipped to False at runtime if this jax version rejects pl.Buffered(1).  A genuine
# (non-Buffered) lowering error will re-surface on the double-buffered rebuild.
_SINGLE_BUFFER_CONST_INPUTS = [hasattr(pl, "Buffered")]


def image_adapter_forward(vision_outputs, params, *, out_dtype=jnp.float32,
                          col_tile=None, token_chunk=None, batch_block=None,
                          col_split=1, gelu_approx=True):
    """vision_outputs: (L, B, T, F).  Returns (B, T + 2, O) in `out_dtype`.

    Matches ImageAdapter.forward with ln1=True, pos_emb=True, deep_extract=False
    (x = vision_outputs[-2]).  `col_split=2` splits the w2-column sweep over a
    leading parallel grid axis (useful on v7x megacore when B is tiny); phase 1 is
    then recomputed once per split.  Pass out_dtype=jnp.bfloat16 to halve output
    writeback bandwidth if the downstream consumer accepts bf16 (worthwhile on v5e).
    """
    L, B, T, F = vision_outputs.shape
    O = params["w1"].shape[1]
    assert params["pos_emb"].shape == (T, F), (params["pos_emb"].shape, (T, F))

    cap = _vmem_capacity_bytes()
    big_vmem = cap > 96 * 1024 * 1024      # v5e / v6e (128 MiB) vs v7x (64 MiB)
    if col_tile is None:
        col_tile = 512 if big_vmem else 256
    if token_chunk is None:
        token_chunk = 256 if big_vmem else 128
    if batch_block is None:
        # Bm>1 amortizes the w2 stream over several batches (roofline fix on v6e);
        # on 64 MiB parts linear2 is already MXU-bound, so keep residency small.
        batch_block = 2 if big_vmem else 1

    tN = _pick_col_tile(O, col_tile)            # w2 / output column tile (lane-dense)
    tc = _largest_divisor_leq(T, token_chunk)   # in-kernel token chunk (bounds f32 temps)
    bm = _largest_divisor_leq(B, max(1, batch_block))
    n_col_tiles = O // tN
    if col_split < 1 or n_col_tiles % col_split != 0:
        col_split = 1
    n_per_split = n_col_tiles // col_split
    n_batch_blocks = B // bm
    layer = L - 2                               # hidden state selected by the module

    itemx = vision_outputs.dtype.itemsize
    itemout = jnp.dtype(out_dtype).itemsize

    # VMEM budget: worst-case double buffering on the streamed blocks, single copies
    # of scratch and bounded f32 temporaries, clamped to this generation's capacity.
    est = (
        2 * bm * T * F * itemx                                   # x block
        + 2 * T * F * params["pos_emb"].dtype.itemsize           # pos_emb
        + 2 * F * O * params["w1"].dtype.itemsize                # w1
        + 2 * O * tN * params["w2"].dtype.itemsize               # w2 column tile
        + 2 * bm * (T + 2) * tN * itemout                        # output stripe
        + bm * T * O * 2                                         # cached GELU(h) scratch
        + (tc * F + 2 * tc * O) * 4                              # phase-1 f32 chunk temps
        + bm * T * tN * 4                                        # phase-2 f32 temps
        + 16 * (F + O) * 4                                       # biases / LN / tok tiles
    )
    vmem_limit = max(32 * 1024 * 1024, min(int(est * 1.25), (cap * 7) // 8))

    # Advisory cost estimate for XLA's surrounding-op scheduler.
    flops = 2 * B * T * F * O + 2 * B * T * O * O
    bytes_accessed = (
        B * T * F * itemx
        + T * F * params["pos_emb"].dtype.itemsize
        + F * O * params["w1"].dtype.itemsize
        + n_batch_blocks * O * O * params["w2"].dtype.itemsize   # w2 re-streamed per batch block
        + (2 * F + 2 * O + 3 * O) * 4
        + B * (T + 2) * O * itemout
    )
    cost = pl.CostEstimate(flops=flops, transcendentals=B * T * O,
                           bytes_accessed=int(bytes_accessed))

    kernel = functools.partial(_adapter_kernel, token_chunk=tc,
                               gelu_approx=bool(gelu_approx))

    def col_of(cs, n):
        return cs * n_per_split + n

    def build(single_buffer_const):
        def const_spec(shape):
            # Blocks whose index never changes over the grid (pos_emb, LN affine,
            # w1, b1): single-buffer them so only one VMEM copy is allocated.
            index_map = lambda cs, bb, n, _nd=len(shape): (0,) * _nd
            if single_buffer_const:
                return pl.BlockSpec(shape, index_map, pipeline_mode=pl.Buffered(1))
            return pl.BlockSpec(shape, index_map)

        grid_spec = pltpu.PrefetchScalarGridSpec(
            num_scalar_prefetch=0,
            grid=(col_split, n_batch_blocks, n_per_split),
            in_specs=[
                # x = vision_outputs[-2], selected via the index_map: no HBM copy.
                pl.BlockSpec((1, bm, T, F), lambda cs, bb, n: (layer, bb, 0, 0)),
                const_spec((T, F)),                                       # pos_emb
                const_spec((1, F)),                                       # LN gamma
                const_spec((1, F)),                                       # LN beta
                const_spec((F, O)),                                       # w1 (in, out) bf16
                const_spec((1, O)),                                       # b1
                pl.BlockSpec((O, tN), lambda cs, bb, n: (0, col_of(cs, n))),   # w2 tile
                pl.BlockSpec((1, tN), lambda cs, bb, n: (0, col_of(cs, n))),   # b2 tile
                pl.BlockSpec((3, tN), lambda cs, bb, n: (0, col_of(cs, n))),   # other_tokens
            ],
            out_specs=pl.BlockSpec((bm, T + 2, tN),
                                   lambda cs, bb, n: (bb, 0, col_of(cs, n))),
            scratch_shapes=[pltpu.VMEM((bm, T, O), jnp.bfloat16)],        # cached GELU(h)
        )
        return pl.pallas_call(
            kernel,
            out_shape=jax.ShapeDtypeStruct((B, T + 2, O), out_dtype),
            grid_spec=grid_spec,
            cost_estimate=cost,
            compiler_params=pltpu.CompilerParams(
                # col_split and batch blocks are independent (megacore-shardable);
                # the column axis reuses the per-block h scratch -> "arbitrary".
                dimension_semantics=("parallel", "parallel", "arbitrary"),
                vmem_limit_bytes=vmem_limit,
            ),
        )

    args = (vision_outputs, params["pos_emb"], params["ln_g"], params["ln_b"],
            params["w1"], params["b1"], params["w2"], params["b2"],
            params["other_tokens"])

    if _SINGLE_BUFFER_CONST_INPUTS[0]:
        try:
            return build(True)(*args)
        except Exception:
            # pl.Buffered(1) unsupported here; fall back to default double buffering
            # (costs one extra VMEM copy of w1 / pos_emb).  Genuine lowering errors
            # reproduce and propagate from the rebuild below.
            _SINGLE_BUFFER_CONST_INPUTS[0] = False
    return build(False)(*args)


def _reference_forward(vision_outputs, params, out_dtype=jnp.float32):
    """Pure-JAX reference: module semantics (exact-erf GELU) with the same bf16
    MXU feeds / bf16 hidden activation as the kernel."""
    x = vision_outputs[-2].astype(jnp.float32)
    mean = jnp.mean(x, axis=-1, keepdims=True)
    var = jnp.mean((x - mean) ** 2, axis=-1, keepdims=True)
    xn = (x - mean) * jax.lax.rsqrt(var + 1e-5)
    xn = xn * params["ln_g"] + params["ln_b"] + params["pos_emb"].astype(jnp.float32)
    h = jnp.dot(xn.astype(jnp.bfloat16), params["w1"],
                preferred_element_type=jnp.float32) + params["b1"]
    h = jax.nn.gelu(h, approximate=False).astype(jnp.bfloat16)   # nn.GELU() default
    y = jnp.dot(h, params["w2"], preferred_element_type=jnp.float32) + params["b2"]
    B, T, O = y.shape
    emb = params["other_tokens"]
    tok0 = jnp.broadcast_to(emb[0][None, None, :], (B, 1, O))
    tok1 = jnp.broadcast_to(emb[1][None, None, :], (B, 1, O))
    return jnp.concatenate([tok0, y, tok1], axis=1).astype(out_dtype)


def init_params(key, input_features, output_features, num_image_tokens):
    ks = jax.random.split(key, 5)
    F, O, T = input_features, output_features, num_image_tokens
    lim1 = 1.0 / (F ** 0.5)
    lim2 = 1.0 / (O ** 0.5)
    return {
        # nn.Linear weights stored (in, out) so the kernel computes x @ W + b
        # (== PyTorch's x @ W.T + b); kept in bf16 and fed straight to the MXU.
        "w1": jax.random.uniform(ks[0], (F, O), jnp.float32, -lim1, lim1).astype(jnp.bfloat16),
        "b1": jax.random.uniform(ks[1], (1, O), jnp.float32, -lim1, lim1),
        "w2": jax.random.uniform(ks[2], (O, O), jnp.float32, -lim2, lim2).astype(jnp.bfloat16),
        "b2": jax.random.uniform(ks[3], (1, O), jnp.float32, -lim2, lim2),
        "ln_g": jnp.ones((1, F), jnp.float32),            # nn.LayerNorm defaults
        "ln_b": jnp.zeros((1, F), jnp.float32),
        "pos_emb": jnp.zeros((T, F), jnp.bfloat16),       # nn.Parameter(torch.zeros(...))
        "other_tokens": 0.02 * jax.random.normal(ks[4], (3, O), jnp.float32),  # Embedding(3,O)
    }


if __name__ == "__main__":
    # Small but layout-realistic shapes: L=4 hidden states, batch=2,
    # num_image_tokens=16, input_features=256, output_features=512.
    # col_tile=256 -> 2 w2-column tiles; token_chunk=8 -> 2 token chunks.
    L, B, T, F, O = 4, 2, 16, 256, 512
    key = jax.random.PRNGKey(0)
    k_in, k_par = jax.random.split(key)

    vision_outputs = jax.random.normal(k_in, (L, B, T, F), jnp.float32).astype(jnp.bfloat16)
    params = init_params(k_par, F, O, T)

    ref = _reference_forward(vision_outputs, params, out_dtype=jnp.float32)

    # Default path: batch-blocked (Bm amortizes the w2 stream), column-tiled output.
    out = image_adapter_forward(vision_outputs, params, out_dtype=jnp.float32,
                                col_tile=256, token_chunk=8)
    out = jax.block_until_ready(out)
    assert out.shape == (B, T + 2, O), out.shape
    err = float(jnp.max(jnp.abs(out.astype(jnp.float32) - ref)))
    assert err < 2e-2, err

    # Column-split path (v7x megacore mode for tiny batches): per-batch blocks,
    # column tiles split over the leading parallel axis, phase 1 recomputed per split.
    out2 = image_adapter_forward(vision_outputs, params, out_dtype=jnp.float32,
                                 col_tile=256, token_chunk=8,
                                 batch_block=1, col_split=2)
    out2 = jax.block_until_ready(out2)
    err2 = float(jnp.max(jnp.abs(out2.astype(jnp.float32) - ref)))
    assert err2 < 2e-2, err2

    print("KERNEL_OK")
</pallas_src>

<mosaic_0001>
module attributes {stable_mosaic.version = 11 : i64} {
  func.func @_adapter_kernel(%arg0: i32, %arg1: i32, %arg2: i32, %arg3: memref<1x1x16x256xbf16, #tpu.memory_space<vmem>>, %arg4: memref<16x256xbf16, #tpu.memory_space<vmem>>, %arg5: memref<1x256xf32, #tpu.memory_space<vmem>>, %arg6: memref<1x256xf32, #tpu.memory_space<vmem>>, %arg7: memref<256x512xbf16, #tpu.memory_space<vmem>>, %arg8: memref<1x512xf32, #tpu.memory_space<vmem>>, %arg9: memref<512x256xbf16, #tpu.memory_space<vmem>>, %arg10: memref<1x256xf32, #tpu.memory_space<vmem>>, %arg11: memref<3x256xf32, #tpu.memory_space<vmem>>, %arg12: memref<1x18x256xf32, #tpu.memory_space<vmem>>, %arg13: memref<1x16x512xbf16, #tpu.memory_space<vmem>>) attributes {dimension_semantics = [#tpu.dimension_semantics<parallel>, #tpu.dimension_semantics<parallel>, #tpu.dimension_semantics<arbitrary>], iteration_bounds = array<i64: 1, 2, 2>, scalar_prefetch = 0 : i64, scratch_operands = 1 : i64, tpu.core_type = #tpu.core_type<tc>, window_params = [{transform_indices = @transform_0, window_bounds = array<i64: 1, 1, 16, 256>}, {pipeline_mode = #tpu.pipeline_mode<synchronous>, transform_indices = @transform_1, window_bounds = array<i64: 16, 256>}, {pipeline_mode = #tpu.pipeline_mode<synchronous>, transform_indices = @transform_2, window_bounds = array<i64: 1, 256>}, {pipeline_mode = #tpu.pipeline_mode<synchronous>, transform_indices = @transform_3, window_bounds = array<i64: 1, 256>}, {pipeline_mode = #tpu.pipeline_mode<synchronous>, transform_indices = @transform_4, window_bounds = array<i64: 256, 512>}, {pipeline_mode = #tpu.pipeline_mode<synchronous>, transform_indices = @transform_5, window_bounds = array<i64: 1, 512>}, {transform_indices = @transform_6, window_bounds = array<i64: 512, 256>}, {transform_indices = @transform_7, window_bounds = array<i64: 1, 256>}, {transform_indices = @transform_8, window_bounds = array<i64: 3, 256>}, {transform_indices = @transform_9, window_bounds = array<i64: 1, 18, 256>}]} {
    %c0_i32 = arith.constant 0 : i32
    %0 = arith.cmpi eq, %arg2, %c0_i32 : i32
    %1 = arith.extui %0 : i1 to i32
    %c0_i32_0 = arith.constant 0 : i32
    %2 = arith.cmpi ne, %1, %c0_i32_0 : i32
    scf.if %2 {
      %c0_18 = arith.constant 0 : index
      %c0_19 = arith.constant 0 : index
      %21 = vector.load %arg5[%c0_18, %c0_19] : memref<1x256xf32, #tpu.memory_space<vmem>>, vector<1x256xf32>
      %c0_20 = arith.constant 0 : index
      %c0_21 = arith.constant 0 : index
      %22 = vector.load %arg6[%c0_20, %c0_21] : memref<1x256xf32, #tpu.memory_space<vmem>>, vector<1x256xf32>
      %c0_22 = arith.constant 0 : index
      %c0_23 = arith.constant 0 : index
      %23 = vector.load %arg8[%c0_22, %c0_23] : memref<1x512xf32, #tpu.memory_space<vmem>>, vector<1x512xf32>
      %c0_i32_24 = arith.constant 0 : i32
      %c2_i32 = arith.constant 2 : i32
      %24 = arith.addi %c0_i32_24, %c2_i32 : i32
      %c1_i32 = arith.constant 1 : i32
      scf.for %arg14 = %c0_i32_24 to %24 step %c1_i32  : i32 {
        %c8_i32 = arith.constant 8 : i32
        %25 = arith.muli %arg14, %c8_i32 : i32
        %26 = tpu.assume_multiple %25, 8 : i32
        %c0_26 = arith.constant 0 : index
        %c0_27 = arith.constant 0 : index
        %27 = arith.index_cast %26 : i32 to index
        %c0_28 = arith.constant 0 : index
        %28 = vector.load %arg3[%c0_26, %c0_27, %27, %c0_28] : memref<1x1x16x256xbf16, #tpu.memory_space<vmem>>, vector<1x1x8x256xbf16>
        %29 = vector.shape_cast %28 : vector<1x1x8x256xbf16> to vector<8x256xbf16>
        %30 = arith.extf %29 : vector<8x256xbf16> to vector<8x256xf32>
        %cst_29 = arith.constant dense<0.000000e+00> : vector<8xf32>
        %31 = vector.multi_reduction <add>, %30, %cst_29 [1] : vector<8x256xf32> to vector<8xf32>
        %32 = vector.shape_cast %31 : vector<8xf32> to vector<8x1xf32>
        %cst_30 = arith.constant 2.560000e+02 : f32
        %33 = vector.broadcast %cst_30 : f32 to vector<8x1xf32>
        %34 = arith.divf %32, %33 : vector<8x1xf32>
        %35 = vector.broadcast %34 : vector<8x1xf32> to vector<8x256xf32>
        %36 = arith.subf %30, %35 : vector<8x256xf32>
        %37 = arith.mulf %36, %36 : vector<8x256xf32>
        %cst_31 = arith.constant dense<0.000000e+00> : vector<8xf32>
        %38 = vector.multi_reduction <add>, %37, %cst_31 [1] : vector<8x256xf32> to vector<8xf32>
        %39 = vector.shape_cast %38 : vector<8xf32> to vector<8x1xf32>
        %cst_32 = arith.constant 2.560000e+02 : f32
        %40 = vector.broadcast %cst_32 : f32 to vector<8x1xf32>
        %41 = arith.divf %39, %40 : vector<8x1xf32>
        %42 = vector.broadcast %34 : vector<8x1xf32> to vector<8x256xf32>
        %43 = arith.subf %30, %42 : vector<8x256xf32>
        %cst_33 = arith.constant 9.99999974E-6 : f32
        %44 = vector.broadcast %cst_33 : f32 to vector<8x1xf32>
        %45 = arith.addf %41, %44 : vector<8x1xf32>
        %46 = math.rsqrt %45 : vector<8x1xf32>
        %47 = vector.broadcast %46 : vector<8x1xf32> to vector<8x256xf32>
        %48 = arith.mulf %43, %47 : vector<8x256xf32>
        %49 = vector.broadcast %21 : vector<1x256xf32> to vector<8x256xf32>
        %50 = arith.mulf %48, %49 : vector<8x256xf32>
        %51 = vector.broadcast %22 : vector<1x256xf32> to vector<8x256xf32>
        %52 = arith.addf %50, %51 : vector<8x256xf32>
        %53 = arith.index_cast %26 : i32 to index
        %c0_34 = arith.constant 0 : index
        %54 = vector.load %arg4[%53, %c0_34] : memref<16x256xbf16, #tpu.memory_space<vmem>>, vector<8x256xbf16>
        %55 = arith.extf %54 : vector<8x256xbf16> to vector<8x256xf32>
        %56 = arith.addf %52, %55 : vector<8x256xf32>
        %57 = arith.truncf %56 : vector<8x256xf32> to vector<8x256xbf16>
        %c0_35 = arith.constant 0 : index
        %c0_36 = arith.constant 0 : index
        %58 = vector.load %arg7[%c0_35, %c0_36] : memref<256x512xbf16, #tpu.memory_space<vmem>>, vector<256x512xbf16>
        %cst_37 = arith.constant dense<0.000000e+00> : vector<8x512xf32>
        %59 = tpu.matmul %57, %58, %cst_37 {dimension_numbers = #tpu.dot_dimension_numbers<[1], [0], [0], [1], [0, 0, 1, 1], [], []>} : vector<8x256xbf16>, vector<256x512xbf16>, vector<8x512xf32> -> vector<8x512xf32>
        %60 = vector.broadcast %23 : vector<1x512xf32> to vector<8x512xf32>
        %61 = arith.addf %59, %60 : vector<8x512xf32>
        %62 = arith.mulf %61, %61 : vector<8x512xf32>
        %63 = arith.mulf %61, %62 : vector<8x512xf32>
        %cst_38 = arith.constant 4.471500e-02 : f32
        %64 = vector.broadcast %cst_38 : f32 to vector<8x512xf32>
        %65 = arith.mulf %64, %63 : vector<8x512xf32>
        %66 = arith.addf %61, %65 : vector<8x512xf32>
        %cst_39 = arith.constant 0.797884583 : f32
        %67 = vector.broadcast %cst_39 : f32 to vector<8x512xf32>
        %68 = arith.mulf %67, %66 : vector<8x512xf32>
        %69 = math.tanh %68 : vector<8x512xf32>
        %cst_40 = arith.constant 1.000000e+00 : f32
        %70 = vector.broadcast %cst_40 : f32 to vector<8x512xf32>
        %71 = arith.addf %70, %69 : vector<8x512xf32>
        %cst_41 = arith.constant 5.000000e-01 : f32
        %72 = vector.broadcast %cst_41 : f32 to vector<8x512xf32>
        %73 = arith.mulf %72, %71 : vector<8x512xf32>
        %74 = arith.mulf %61, %73 : vector<8x512xf32>
        %75 = arith.truncf %74 : vector<8x512xf32> to vector<8x512xbf16>
        %c0_42 = arith.constant 0 : index
        %76 = arith.index_cast %26 : i32 to index
        %c0_43 = arith.constant 0 : index
        %77 = vector.load %arg13[%c0_42, %76, %c0_43] : memref<1x16x512xbf16, #tpu.memory_space<vmem>>, vector<1x8x512xbf16>
        %78 = vector.shape_cast %77 : vector<1x8x512xbf16> to vector<8x512xbf16>
        %79 = vector.shape_cast %75 : vector<8x512xbf16> to vector<1x8x512xbf16>
        tpu.vector_store %arg13[%c0_42, %76, %c0_43], %79 {strides = array<i32>} : memref<1x16x512xbf16, #tpu.memory_space<vmem>>, vector<1x8x512xbf16>,
      }
      %c2_i32_25 = arith.constant 2 : i32
    } else {
    }
    %c0 = arith.constant 0 : index
    %c0_1 = arith.constant 0 : index
    %3 = vector.load %arg10[%c0, %c0_1] : memref<1x256xf32, #tpu.memory_space<vmem>>, vector<1x256xf32>
    %c0_2 = arith.constant 0 : index
    %c0_3 = arith.constant 0 : index
    %4 = vector.load %arg9[%c0_2, %c0_3] : memref<512x256xbf16, #tpu.memory_space<vmem>>, vector<512x256xbf16>
    %c0_4 = arith.constant 0 : index
    %c0_5 = arith.constant 0 : index
    %5 = vector.load %arg11[%c0_4, %c0_5] : memref<3x256xf32, #tpu.memory_space<vmem>>, vector<1x256xf32>
    %c1 = arith.constant 1 : index
    %c0_6 = arith.constant 0 : index
    %6 = vector.load %arg11[%c1, %c0_6] : memref<3x256xf32, #tpu.memory_space<vmem>>, vector<1x256xf32>
    %c0_7 = arith.constant 0 : index
    %c0_8 = arith.constant 0 : index
    %c0_9 = arith.constant 0 : index
    %7 = vector.load %arg13[%c0_7, %c0_8, %c0_9] : memref<1x16x512xbf16, #tpu.memory_space<vmem>>, vector<1x16x512xbf16>
    %8 = vector.shape_cast %7 : vector<1x16x512xbf16> to vector<16x512xbf16>
    %cst = arith.constant dense<0.000000e+00> : vector<16x256xf32>
    %9 = tpu.matmul %8, %4, %cst {dimension_numbers = #tpu.dot_dimension_numbers<[1], [0], [0], [1], [0, 0, 1, 1], [], []>} : vector<16x512xbf16>, vector<512x256xbf16>, vector<16x256xf32> -> vector<16x256xf32>
    %10 = vector.broadcast %3 : vector<1x256xf32> to vector<16x256xf32>
    %11 = arith.addf %9, %10 : vector<16x256xf32>
    %c0_10 = arith.constant 0 : index
    %c0_11 = arith.constant 0 : index
    %c0_12 = arith.constant 0 : index
    %12 = vector.load %arg12[%c0_10, %c0_11, %c0_12] : memref<1x18x256xf32, #tpu.memory_space<vmem>>, vector<1x1x256xf32>
    %13 = vector.shape_cast %12 : vector<1x1x256xf32> to vector<1x256xf32>
    %14 = vector.shape_cast %5 : vector<1x256xf32> to vector<1x1x256xf32>
    tpu.vector_store %arg12[%c0_10, %c0_11, %c0_12], %14 {strides = array<i32>} : memref<1x18x256xf32, #tpu.memory_space<vmem>>, vector<1x1x256xf32>,
    %c0_13 = arith.constant 0 : index
    %c1_14 = arith.constant 1 : index
    %c0_15 = arith.constant 0 : index
    %15 = vector.load %arg12[%c0_13, %c1_14, %c0_15] : memref<1x18x256xf32, #tpu.memory_space<vmem>>, vector<1x16x256xf32>
    %16 = vector.shape_cast %15 : vector<1x16x256xf32> to vector<16x256xf32>
    %17 = vector.shape_cast %11 : vector<16x256xf32> to vector<1x16x256xf32>
    tpu.vector_store %arg12[%c0_13, %c1_14, %c0_15], %17 {strides = array<i32>} : memref<1x18x256xf32, #tpu.memory_space<vmem>>, vector<1x16x256xf32>,
    %c0_16 = arith.constant 0 : index
    %c17 = arith.constant 17 : index
    %c0_17 = arith.constant 0 : index
    %18 = vector.load %arg12[%c0_16, %c17, %c0_17] : memref<1x18x256xf32, #tpu.memory_space<vmem>>, vector<1x1x256xf32>
    %19 = vector.shape_cast %18 : vector<1x1x256xf32> to vector<1x256xf32>
    %20 = vector.shape_cast %6 : vector<1x256xf32> to vector<1x1x256xf32>
    tpu.vector_store %arg12[%c0_16, %c17, %c0_17], %20 {strides = array<i32>} : memref<1x18x256xf32, #tpu.memory_space<vmem>>, vector<1x1x256xf32>,
    return
  }
  func.func @transform_0(%arg0: i32, %arg1: i32, %arg2: i32) -> (i32, i32, i32, i32) {
    %c2_i32 = arith.constant 2 : i32
    %c0_i32 = arith.constant 0 : i32
    %c0_i32_0 = arith.constant 0 : i32
    %c0_i32_1 = arith.constant 0 : i32
    return %c2_i32, %arg1, %c0_i32, %c0_i32_0 : i32, i32, i32, i32
  }
  func.func @transform_1(%arg0: i32, %arg1: i32, %arg2: i32) -> (i32, i32) {
    %c0_i32 = arith.constant 0 : i32
    %c0_i32_0 = arith.constant 0 : i32
    %c0_i32_1 = arith.constant 0 : i32
    return %c0_i32, %c0_i32_0 : i32, i32
  }
  func.func @transform_2(%arg0: i32, %arg1: i32, %arg2: i32) -> (i32, i32) {
    %c0_i32 = arith.constant 0 : i32
    %c0_i32_0 = arith.constant 0 : i32
    %c0_i32_1 = arith.constant 0 : i32
    return %c0_i32, %c0_i32_0 : i32, i32
  }
  func.func @transform_3(%arg0: i32, %arg1: i32, %arg2: i32) -> (i32, i32) {
    %c0_i32 = arith.constant 0 : i32
    %c0_i32_0 = arith.constant 0 : i32
    %c0_i32_1 = arith.constant 0 : i32
    return %c0_i32, %c0_i32_0 : i32, i32
  }
  func.func @transform_4(%arg0: i32, %arg1: i32, %arg2: i32) -> (i32, i32) {
    %c0_i32 = arith.constant 0 : i32
    %c0_i32_0 = arith.constant 0 : i32
    %c0_i32_1 = arith.constant 0 : i32
    return %c0_i32, %c0_i32_0 : i32, i32
  }
  func.func @transform_5(%arg0: i32, %arg1: i32, %arg2: i32) -> (i32, i32) {
    %c0_i32 = arith.constant 0 : i32
    %c0_i32_0 = arith.constant 0 : i32
    %c0_i32_1 = arith.constant 0 : i32
    return %c0_i32, %c0_i32_0 : i32, i32
  }
  func.func @transform_6(%arg0: i32, %arg1: i32, %arg2: i32) -> (i32, i32) {
    %c2_i32 = arith.constant 2 : i32
    %0 = arith.muli %arg0, %c2_i32 : i32
    %1 = arith.addi %0, %arg2 : i32
    %c0_i32 = arith.constant 0 : i32
    %c0_i32_0 = arith.constant 0 : i32
    return %c0_i32, %1 : i32, i32
  }
  func.func @transform_7(%arg0: i32, %arg1: i32, %arg2: i32) -> (i32, i32) {
    %c2_i32 = arith.constant 2 : i32
    %0 = arith.muli %arg0, %c2_i32 : i32
    %1 = arith.addi %0, %arg2 : i32
    %c0_i32 = arith.constant 0 : i32
    %c0_i32_0 = arith.constant 0 : i32
    return %c0_i32, %1 : i32, i32
  }
  func.func @transform_8(%arg0: i32, %arg1: i32, %arg2: i32) -> (i32, i32) {
    %c2_i32 = arith.constant 2 : i32
    %0 = arith.muli %arg0, %c2_i32 : i32
    %1 = arith.addi %0, %arg2 : i32
    %c0_i32 = arith.constant 0 : i32
    %c0_i32_0 = arith.constant 0 : i32
    return %c0_i32, %1 : i32, i32
  }
  func.func @transform_9(%arg0: i32, %arg1: i32, %arg2: i32) -> (i32, i32, i32) {
    %c2_i32 = arith.constant 2 : i32
    %0 = arith.muli %arg0, %c2_i32 : i32
    %1 = arith.addi %0, %arg2 : i32
    %c0_i32 = arith.constant 0 : i32
    %c0_i32_0 = arith.constant 0 : i32
    return %arg1, %c0_i32, %1 : i32, i32, i32
  }
}

module attributes {stable_mosaic.version = 11 : i64} {
  func.func @_adapter_kernel(%arg0: i32, %arg1: i32, %arg2: i32, %arg3: memref<1x1x16x256xbf16, #tpu.memory_space<vmem>>, %arg4: memref<16x256xbf16, #tpu.memory_space<vmem>>, %arg5: memref<1x256xf32, #tpu.memory_space<vmem>>, %arg6: memref<1x256xf32, #tpu.memory_space<vmem>>, %arg7: memref<256x512xbf16, #tpu.memory_space<vmem>>, %arg8: memref<1x512xf32, #tpu.memory_space<vmem>>, %arg9: memref<512x256xbf16, #tpu.memory_space<vmem>>, %arg10: memref<1x256xf32, #tpu.memory_space<vmem>>, %arg11: memref<3x256xf32, #tpu.memory_space<vmem>>, %arg12: memref<1x18x256xf32, #tpu.memory_space<vmem>>, %arg13: memref<1x16x512xbf16, #tpu.memory_space<vmem>>) attributes {dimension_semantics = [#tpu.dimension_semantics<parallel>, #tpu.dimension_semantics<parallel>, #tpu.dimension_semantics<arbitrary>], iteration_bounds = array<i64: 1, 2, 2>, scalar_prefetch = 0 : i64, scratch_operands = 1 : i64, tpu.core_type = #tpu.core_type<tc>, window_params = [{transform_indices = @transform_0, window_bounds = array<i64: 1, 1, 16, 256>}, {pipeline_mode = #tpu.pipeline_mode<synchronous>, transform_indices = @transform_1, window_bounds = array<i64: 16, 256>}, {pipeline_mode = #tpu.pipeline_mode<synchronous>, transform_indices = @transform_2, window_bounds = array<i64: 1, 256>}, {pipeline_mode = #tpu.pipeline_mode<synchronous>, transform_indices = @transform_3, window_bounds = array<i64: 1, 256>}, {pipeline_mode = #tpu.pipeline_mode<synchronous>, transform_indices = @transform_4, window_bounds = array<i64: 256, 512>}, {pipeline_mode = #tpu.pipeline_mode<synchronous>, transform_indices = @transform_5, window_bounds = array<i64: 1, 512>}, {transform_indices = @transform_6, window_bounds = array<i64: 512, 256>}, {transform_indices = @transform_7, window_bounds = array<i64: 1, 256>}, {transform_indices = @transform_8, window_bounds = array<i64: 3, 256>}, {transform_indices = @transform_9, window_bounds = array<i64: 1, 18, 256>}]} {
    %c0_i32 = arith.constant 0 : i32
    %0 = arith.cmpi eq, %arg2, %c0_i32 : i32
    %1 = arith.extui %0 : i1 to i32
    %c0_i32_0 = arith.constant 0 : i32
    %2 = arith.cmpi ne, %1, %c0_i32_0 : i32
    scf.if %2 {
      %c0_18 = arith.constant 0 : index
      %c0_19 = arith.constant 0 : index
      %21 = vector.load %arg5[%c0_18, %c0_19] : memref<1x256xf32, #tpu.memory_space<vmem>>, vector<1x256xf32>
      %c0_20 = arith.constant 0 : index
      %c0_21 = arith.constant 0 : index
      %22 = vector.load %arg6[%c0_20, %c0_21] : memref<1x256xf32, #tpu.memory_space<vmem>>, vector<1x256xf32>
      %c0_22 = arith.constant 0 : index
      %c0_23 = arith.constant 0 : index
      %23 = vector.load %arg8[%c0_22, %c0_23] : memref<1x512xf32, #tpu.memory_space<vmem>>, vector<1x512xf32>
      %c0_i32_24 = arith.constant 0 : i32
      %c2_i32 = arith.constant 2 : i32
      %24 = arith.addi %c0_i32_24, %c2_i32 : i32
      %c1_i32 = arith.constant 1 : i32
      scf.for %arg14 = %c0_i32_24 to %24 step %c1_i32  : i32 {
        %c8_i32 = arith.constant 8 : i32
        %25 = arith.muli %arg14, %c8_i32 : i32
        %26 = tpu.assume_multiple %25, 8 : i32
        %c0_26 = arith.constant 0 : index
        %c0_27 = arith.constant 0 : index
        %27 = arith.index_cast %26 : i32 to index
        %c0_28 = arith.constant 0 : index
        %28 = vector.load %arg3[%c0_26, %c0_27, %27, %c0_28] : memref<1x1x16x256xbf16, #tpu.memory_space<vmem>>, vector<1x1x8x256xbf16>
        %29 = vector.shape_cast %28 : vector<1x1x8x256xbf16> to vector<8x256xbf16>
        %30 = arith.extf %29 : vector<8x256xbf16> to vector<8x256xf32>
        %cst_29 = arith.constant dense<0.000000e+00> : vector<8xf32>
        %31 = vector.multi_reduction <add>, %30, %cst_29 [1] : vector<8x256xf32> to vector<8xf32>
        %32 = vector.shape_cast %31 : vector<8xf32> to vector<8x1xf32>
        %cst_30 = arith.constant 2.560000e+02 : f32
        %33 = vector.broadcast %cst_30 : f32 to vector<8x1xf32>
        %34 = arith.divf %32, %33 : vector<8x1xf32>
        %35 = vector.broadcast %34 : vector<8x1xf32> to vector<8x256xf32>
        %36 = arith.subf %30, %35 : vector<8x256xf32>
        %37 = arith.mulf %36, %36 : vector<8x256xf32>
        %cst_31 = arith.constant dense<0.000000e+00> : vector<8xf32>
        %38 = vector.multi_reduction <add>, %37, %cst_31 [1] : vector<8x256xf32> to vector<8xf32>
        %39 = vector.shape_cast %38 : vector<8xf32> to vector<8x1xf32>
        %cst_32 = arith.constant 2.560000e+02 : f32
        %40 = vector.broadcast %cst_32 : f32 to vector<8x1xf32>
        %41 = arith.divf %39, %40 : vector<8x1xf32>
        %42 = vector.broadcast %34 : vector<8x1xf32> to vector<8x256xf32>
        %43 = arith.subf %30, %42 : vector<8x256xf32>
        %cst_33 = arith.constant 9.99999974E-6 : f32
        %44 = vector.broadcast %cst_33 : f32 to vector<8x1xf32>
        %45 = arith.addf %41, %44 : vector<8x1xf32>
        %46 = math.rsqrt %45 : vector<8x1xf32>
        %47 = vector.broadcast %46 : vector<8x1xf32> to vector<8x256xf32>
        %48 = arith.mulf %43, %47 : vector<8x256xf32>
        %49 = vector.broadcast %21 : vector<1x256xf32> to vector<8x256xf32>
        %50 = arith.mulf %48, %49 : vector<8x256xf32>
        %51 = vector.broadcast %22 : vector<1x256xf32> to vector<8x256xf32>
        %52 = arith.addf %50, %51 : vector<8x256xf32>
        %53 = arith.index_cast %26 : i32 to index
        %c0_34 = arith.constant 0 : index
        %54 = vector.load %arg4[%53, %c0_34] : memref<16x256xbf16, #tpu.memory_space<vmem>>, vector<8x256xbf16>
        %55 = arith.extf %54 : vector<8x256xbf16> to vector<8x256xf32>
        %56 = arith.addf %52, %55 : vector<8x256xf32>
        %57 = arith.truncf %56 : vector<8x256xf32> to vector<8x256xbf16>
        %c0_35 = arith.constant 0 : index
        %c0_36 = arith.constant 0 : index
        %58 = vector.load %arg7[%c0_35, %c0_36] : memref<256x512xbf16, #tpu.memory_space<vmem>>, vector<256x512xbf16>
        %cst_37 = arith.constant dense<0.000000e+00> : vector<8x512xf32>
        %59 = tpu.matmul %57, %58, %cst_37 {dimension_numbers = #tpu.dot_dimension_numbers<[1], [0], [0], [1], [0, 0, 1, 1], [], []>} : vector<8x256xbf16>, vector<256x512xbf16>, vector<8x512xf32> -> vector<8x512xf32>
        %60 = vector.broadcast %23 : vector<1x512xf32> to vector<8x512xf32>
        %61 = arith.addf %59, %60 : vector<8x512xf32>
        %62 = arith.mulf %61, %61 : vector<8x512xf32>
        %63 = arith.mulf %61, %62 : vector<8x512xf32>
        %cst_38 = arith.constant 4.471500e-02 : f32
        %64 = vector.broadcast %cst_38 : f32 to vector<8x512xf32>
        %65 = arith.mulf %64, %63 : vector<8x512xf32>
        %66 = arith.addf %61, %65 : vector<8x512xf32>
        %cst_39 = arith.constant 0.797884583 : f32
        %67 = vector.broadcast %cst_39 : f32 to vector<8x512xf32>
        %68 = arith.mulf %67, %66 : vector<8x512xf32>
        %69 = math.tanh %68 : vector<8x512xf32>
        %cst_40 = arith.constant 1.000000e+00 : f32
        %70 = vector.broadcast %cst_40 : f32 to vector<8x512xf32>
        %71 = arith.addf %70, %69 : vector<8x512xf32>
        %cst_41 = arith.constant 5.000000e-01 : f32
        %72 = vector.broadcast %cst_41 : f32 to vector<8x512xf32>
        %73 = arith.mulf %72, %71 : vector<8x512xf32>
        %74 = arith.mulf %61, %73 : vector<8x512xf32>
        %75 = arith.truncf %74 : vector<8x512xf32> to vector<8x512xbf16>
        %c0_42 = arith.constant 0 : index
        %76 = arith.index_cast %26 : i32 to index
        %c0_43 = arith.constant 0 : index
        %77 = vector.load %arg13[%c0_42, %76, %c0_43] : memref<1x16x512xbf16, #tpu.memory_space<vmem>>, vector<1x8x512xbf16>
        %78 = vector.shape_cast %77 : vector<1x8x512xbf16> to vector<8x512xbf16>
        %79 = vector.shape_cast %75 : vector<8x512xbf16> to vector<1x8x512xbf16>
        tpu.vector_store %arg13[%c0_42, %76, %c0_43], %79 {strides = array<i32>} : memref<1x16x512xbf16, #tpu.memory_space<vmem>>, vector<1x8x512xbf16>,
      }
      %c2_i32_25 = arith.constant 2 : i32
    } else {
    }
    %c0 = arith.constant 0 : index
    %c0_1 = arith.constant 0 : index
    %3 = vector.load %arg10[%c0, %c0_1] : memref<1x256xf32, #tpu.memory_space<vmem>>, vector<1x256xf32>
    %c0_2 = arith.constant 0 : index
    %c0_3 = arith.constant 0 : index
    %4 = vector.load %arg9[%c0_2, %c0_3] : memref<512x256xbf16, #tpu.memory_space<vmem>>, vector<512x256xbf16>
    %c0_4 = arith.constant 0 : index
    %c0_5 = arith.constant 0 : index
    %5 = vector.load %arg11[%c0_4, %c0_5] : memref<3x256xf32, #tpu.memory_space<vmem>>, vector<1x256xf32>
    %c1 = arith.constant 1 : index
    %c0_6 = arith.constant 0 : index
    %6 = vector.load %arg11[%c1, %c0_6] : memref<3x256xf32, #tpu.memory_space<vmem>>, vector<1x256xf32>
    %c0_7 = arith.constant 0 : index
    %c0_8 = arith.constant 0 : index
    %c0_9 = arith.constant 0 : index
    %7 = vector.load %arg13[%c0_7, %c0_8, %c0_9] : memref<1x16x512xbf16, #tpu.memory_space<vmem>>, vector<1x16x512xbf16>
    %8 = vector.shape_cast %7 : vector<1x16x512xbf16> to vector<16x512xbf16>
    %cst = arith.constant dense<0.000000e+00> : vector<16x256xf32>
    %9 = tpu.matmul %8, %4, %cst {dimension_numbers = #tpu.dot_dimension_numbers<[1], [0], [0], [1], [0, 0, 1, 1], [], []>} : vector<16x512xbf16>, vector<512x256xbf16>, vector<16x256xf32> -> vector<16x256xf32>
    %10 = vector.broadcast %3 : vector<1x256xf32> to vector<16x256xf32>
    %11 = arith.addf %9, %10 : vector<16x256xf32>
    %c0_10 = arith.constant 0 : index
    %c0_11 = arith.constant 0 : index
    %c0_12 = arith.constant 0 : index
    %12 = vector.load %arg12[%c0_10, %c0_11, %c0_12] : memref<1x18x256xf32, #tpu.memory_space<vmem>>, vector<1x1x256xf32>
    %13 = vector.shape_cast %12 : vector<1x1x256xf32> to vector<1x256xf32>
    %14 = vector.shape_cast %5 : vector<1x256xf32> to vector<1x1x256xf32>
    tpu.vector_store %arg12[%c0_10, %c0_11, %c0_12], %14 {strides = array<i32>} : memref<1x18x256xf32, #tpu.memory_space<vmem>>, vector<1x1x256xf32>,
    %c0_13 = arith.constant 0 : index
    %c1_14 = arith.constant 1 : index
    %c0_15 = arith.constant 0 : index
    %15 = vector.load %arg12[%c0_13, %c1_14, %c0_15] : memref<1x18x256xf32, #tpu.memory_space<vmem>>, vector<1x16x256xf32>
    %16 = vector.shape_cast %15 : vector<1x16x256xf32> to vector<16x256xf32>
    %17 = vector.shape_cast %11 : vector<16x256xf32> to vector<1x16x256xf32>
    tpu.vector_store %arg12[%c0_13, %c1_14, %c0_15], %17 {strides = array<i32>} : memref<1x18x256xf32, #tpu.memory_space<vmem>>, vector<1x16x256xf32>,
    %c0_16 = arith.constant 0 : index
    %c17 = arith.constant 17 : index
    %c0_17 = arith.constant 0 : index
    %18 = vector.load %arg12[%c0_16, %c17, %c0_17] : memref<1x18x256xf32, #tpu.memory_space<vmem>>, vector<1x1x256xf32>
    %19 = vector.shape_cast %18 : vector<1x1x256xf32> to vector<1x256xf32>
    %20 = vector.shape_cast %6 : vector<1x256xf32> to vector<1x1x256xf32>
    tpu.vector_store %arg12[%c0_16, %c17, %c0_17], %20 {strides = array<i32>} : memref<1x18x256xf32, #tpu.memory_space<vmem>>, vector<1x1x256xf32>,
    return
  }
  func.func @transform_0(%arg0: i32, %arg1: i32, %arg2: i32) -> (i32, i32, i32, i32) {
    %c2_i32 = arith.constant 2 : i32
    %c0_i32 = arith.constant 0 : i32
    %c0_i32_0 = arith.constant 0 : i32
    %c0_i32_1 = arith.constant 0 : i32
    return %c2_i32, %arg1, %c0_i32, %c0_i32_0 : i32, i32, i32, i32
  }
  func.func @transform_1(%arg0: i32, %arg1: i32, %arg2: i32) -> (i32, i32) {
    %c0_i32 = arith.constant 0 : i32
    %c0_i32_0 = arith.constant 0 : i32
    %c0_i32_1 = arith.constant 0 : i32
    return %c0_i32, %c0_i32_0 : i32, i32
  }
  func.func @transform_2(%arg0: i32, %arg1: i32, %arg2: i32) -> (i32, i32) {
    %c0_i32 = arith.constant 0 : i32
    %c0_i32_0 = arith.constant 0 : i32
    %c0_i32_1 = arith.constant 0 : i32
    return %c0_i32, %c0_i32_0 : i32, i32
  }
  func.func @transform_3(%arg0: i32, %arg1: i32, %arg2: i32) -> (i32, i32) {
    %c0_i32 = arith.constant 0 : i32
    %c0_i32_0 = arith.constant 0 : i32
    %c0_i32_1 = arith.constant 0 : i32
    return %c0_i32, %c0_i32_0 : i32, i32
  }
  func.func @transform_4(%arg0: i32, %arg1: i32, %arg2: i32) -> (i32, i32) {
    %c0_i32 = arith.constant 0 : i32
    %c0_i32_0 = arith.constant 0 : i32
    %c0_i32_1 = arith.constant 0 : i32
    return %c0_i32, %c0_i32_0 : i32, i32
  }
  func.func @transform_5(%arg0: i32, %arg1: i32, %arg2: i32) -> (i32, i32) {
    %c0_i32 = arith.constant 0 : i32
    %c0_i32_0 = arith.constant 0 : i32
    %c0_i32_1 = arith.constant 0 : i32
    return %c0_i32, %c0_i32_0 : i32, i32
  }
  func.func @transform_6(%arg0: i32, %arg1: i32, %arg2: i32) -> (i32, i32) {
    %c2_i32 = arith.constant 2 : i32
    %0 = arith.muli %arg0, %c2_i32 : i32
    %1 = arith.addi %0, %arg2 : i32
    %c0_i32 = arith.constant 0 : i32
    %c0_i32_0 = arith.constant 0 : i32
    return %c0_i32, %1 : i32, i32
  }
  func.func @transform_7(%arg0: i32, %arg1: i32, %arg2: i32) -> (i32, i32) {
    %c2_i32 = arith.constant 2 : i32
    %0 = arith.muli %arg0, %c2_i32 : i32
    %1 = arith.addi %0, %arg2 : i32
    %c0_i32 = arith.constant 0 : i32
    %c0_i32_0 = arith.constant 0 : i32
    return %c0_i32, %1 : i32, i32
  }
  func.func @transform_8(%arg0: i32, %arg1: i32, %arg2: i32) -> (i32, i32) {
    %c2_i32 = arith.constant 2 : i32
    %0 = arith.muli %arg0, %c2_i32 : i32
    %1 = arith.addi %0, %arg2 : i32
    %c0_i32 = arith.constant 0 : i32
    %c0_i32_0 = arith.constant 0 : i32
    return %c0_i32, %1 : i32, i32
  }
  func.func @transform_9(%arg0: i32, %arg1: i32, %arg2: i32) -> (i32, i32, i32) {
    %c2_i32 = arith.constant 2 : i32
    %0 = arith.muli %arg0, %c2_i32 : i32
    %1 = arith.addi %0, %arg2 : i32
    %c0_i32 = arith.constant 0 : i32
    %c0_i32_0 = arith.constant 0 : i32
    return %arg1, %c0_i32, %1 : i32, i32, i32
  }
}

</mosaic_0001>

<llo_original>
// kernel: tpu_custom_call.1
$region0: #{tpu_custom_call.1}
  #allocation0 [shape = 'u32[]', space=smem, size = 0x4, offset = 0x4, fixed_abs, tag = 'smem constant byte address 0x4 - core index']
  #allocation1 [shape = 'u32[144,128]{1,0:T(1,128)}', space=vmem, size = 0x12000, scoped, tag = 'internal scratch']
  #allocation2 [shape = 'bf16[1,16,512]{2,1,0:T(8,128)(2,1)}', space=vmem, size = 0x4000, scoped, tag = 'scratch operand']
  %s0 = inlined_call_operand.hbm [shape: bf16[4,2,16,256], index: 0, kind: input, shape index: {}]
  %s1 = inlined_call_operand.hbm [shape: bf16[16,256], index: 1, kind: input, shape index: {}]
  %s2 = inlined_call_operand.hbm [shape: f32[1,256], index: 2, kind: input, shape index: {}]
  %s3 = inlined_call_operand.hbm [shape: f32[1,256], index: 3, kind: input, shape index: {}]
  %s4 = inlined_call_operand.hbm [shape: bf16[256,512], index: 4, kind: input, shape index: {}]
  %s5 = inlined_call_operand.vmem [shape: f32[1,512], index: 5, kind: input, shape index: {}]
  %s6 = inlined_call_operand.hbm [shape: bf16[512,512], index: 6, kind: input, shape index: {}]
  %s7 = inlined_call_operand.vmem [shape: f32[1,512], index: 7, kind: input, shape index: {}]
  %s8 = inlined_call_operand.hbm [shape: f32[3,512], index: 8, kind: input, shape index: {}]
  %s9 = inlined_call_operand.vmem [shape: f32[2,18,512], index: 9, kind: output, shape index: {}]
  %s10 = sld [smem:[#allocation0]]
  $region127: #{tpu_custom_call.1} parent=0
    _
  %s12 = ssub.s32 1, %s10
  %s13 = scalar_select 0, %s12, %s10
  $region1: #{tpu_custom_call.1} parent=0
    #allocation3 [shape = 'u8[16384]{0}', space=vmem, size = 0x4000, scoped, tag = 'input window, operand 0']
    #allocation4 [shape = 's32[2]{0}', space=sflag, size = 0x8, scoped, tag = 'scoped memory for tpu_custom_call.1']
    #allocation5 [shape = 'u8[8192]{0}', space=vmem, size = 0x2000, scoped, tag = 'input window, operand 1, single buffered']
    #allocation6 [shape = 's32[1]{0}', space=sflag, size = 0x4, scoped, tag = 'scoped memory for tpu_custom_call.1']
    #allocation7 [shape = 'u8[1024]{0}', space=vmem, size = 0x400, scoped, tag = 'input window, operand 2, single buffered']
    #allocation8 [shape = 'u8[1024]{0}', space=vmem, size = 0x400, scoped, tag = 'input window, operand 3, single buffered']
    #allocation9 [shape = 's32[1]{0}', space=sflag, size = 0x4, scoped, tag = 'scoped memory for tpu_custom_call.1']
    #allocation10 [shape = 'u8[262144]{0}', space=vmem, size = 0x40000, scoped, tag = 'input window, operand 4, single buffered']
    #allocation11 [shape = 'u8[524288]{0}', space=vmem, size = 0x80000, scoped, tag = 'input window, operand 6']
    #allocation12 [shape = 's32[2]{0}', space=sflag, size = 0x8, scoped, tag = 'scoped memory for tpu_custom_call.1']
    #allocation13 [shape = 'u8[8192]{0}', space=vmem, size = 0x2000, scoped, tag = 'input window, operand 8']
    #allocation14 [shape = 'u8[49152]{0}', space=vmem, size = 0xc000, scoped, tag = 'output window, operand 0']
    %14 = vsyncpa [#allocation4], 0
    %s15 = scalar_lea.sflag [#allocation4], 1
    %16 = vsyncpa %s15, 0
    %17 = vsyncpa [#allocation6], 0
    %18 = vsyncpa [#allocation9], 0
    %19 = vsyncpa [#allocation12], 0
    %s20 = scalar_lea.sflag [#allocation12], 1
    %21 = vsyncpa %s20, 0
    loop: start=0, step=1, limit=6
    $region2: #{tpu_custom_call.1} parent=1 // loop_pre_header
      _
    $region3: #{tpu_custom_call.1} parent=1 // loop_header
      %s23 = sphi 0, %s27
      %p24 = scmp.ge.s32.totalorder %s23, 6
      %s30 = sphi 0, %s49
      %s31 = sphi 0, %s45
      %s32 = sphi 0, %s41
      %s33 = sphi 0, %s30
      %s34 = sphi 0, %s31
      %s35 = sphi 0, %s32
      %s36 = sphi 0, %s33
      %s37 = sphi 0, %s34
      %s38 = sphi 0, %s35
      %s52 = sphi 0, %s54
      %s55 = sphi 0, %s52
      %s56 = sphi 0, %s55
      %s72 = sphi 0, %s56
      %s76 = sphi 0, %s76
      %s78 = sphi 0, %s76
      %s79 = sphi 0, %s78
      %s93 = sphi 0, %s79
      %s97 = sphi 0, %s97
      %s99 = sphi 0, %s97
      %s100 = sphi 0, %s99
      %s114 = sphi 0, %s100
      %s118 = sphi 0, %s118
      %s120 = sphi 0, %s118
      %s121 = sphi 0, %s120
      %s135 = sphi 0, %s121
      %s139 = sphi 0, %s139
      %s141 = sphi 0, %s139
      %s142 = sphi 0, %s141
      %s156 = sphi 0, %s142
      %s160 = sphi 0, %s160
      %s162 = sphi 0, %s160
      %s163 = sphi 0, %s162
      %s177 = sphi 0, %s163
      %s187 = sphi 0, %s189
      %s190 = sphi 0, %s187
      %s191 = sphi 0, %s190
      %s207 = sphi 0, %s191
      %s217 = sphi 0, %s219
      %s220 = sphi 0, %s217
      %s221 = sphi 0, %s220
      %s237 = sphi 0, %s221
      %s247 = sphi 0, %s249
      %s250 = sphi 0, %s247
      %s251 = sphi 0, %s250
      %s267 = sphi 0, %s251
      %s279 = sphi 0, %s281
      %s282 = sphi 0, %s279
      %s283 = sphi 0, %s282
      %s299 = sphi 0, %s283
    $region4: #{tpu_custom_call.1} parent=1 // loop_header_branch
      %26 = sbr.rel (%p24) target = $region8
    $region5: #{tpu_custom_call.1} parent=1 // loop_body
      %s28 = ssub.s32 %s23, 1
      %s29 = ssub.s32 %s23, 2
      %s39 = sadd.s32 1, %s32
      %p40 = scmp.ge.s32.totalorder %s39, 2
      %s41 = scalar_select %p40, 0, %s39
      %s42 = sadd.s32 1, %s31
      %s43 = scalar_select %p40, %s42, %s31
      %p44 = scmp.ge.s32.totalorder %s43, 2
      %s45 = scalar_select %p44, 0, %s43
      %s46 = sadd.s32 1, %s30
      %s47 = scalar_select %p44, %s46, %s30
      %p48 = scmp.ge.s32.totalorder %s47, 1
      %s49 = scalar_select %p48, 0, %s47
      %s50 = ssub.s32 %s31, %s45
      %p51 = scmp.eq.s32.totalorder %s50, 0
      %s53 = sadd.s32 %s52, 1
      %s54 = scalar_select %p51, %s52, %s53
      %p57 = pneg %p51
      %p58 = scmp.eq.s32.totalorder %s23, 3
      %p59 = por %p57, %p58
      %p60 = scmp.ne.s32.totalorder %s52, %s55
      %p61 = scmp.eq.s32.totalorder %s23, 0
      %p62 = por %p60, %p61
      %p63 = scmp.ne.s32.totalorder %s52, %s55
      %p64 = scmp.eq.s32.totalorder %s28, 3
      %p65 = por %p63, %p64
      %p66 = scmp.ne.s32.totalorder %s55, %s56
      %p67 = scmp.eq.s32.totalorder %s28, 0
      %p68 = por %p66, %p67
      %p69 = scmp.ne.s32.totalorder %s55, %s56
      %p70 = scmp.eq.s32.totalorder %s29, 3
      %p71 = por %p69, %p70
      %p73 = scmp.ne.s32.totalorder %s56, %s72
      %p74 = scmp.eq.s32.totalorder %s29, 0
      %p75 = por %p73, %p74
      %s77 = sadd.s32 %s76, 1
      %p80 = scmp.eq.s32.totalorder %s23, 3
      %p81 = scmp.ne.s32.totalorder %s76, %s78
      %p82 = scmp.eq.s32.totalorder %s23, 0
      %p83 = por %p81, %p82
      %p84 = scmp.ne.s32.totalorder %s76, %s78
      %p85 = scmp.eq.s32.totalorder %s28, 3
      %p86 = por %p84, %p85
      %p87 = scmp.ne.s32.totalorder %s78, %s79
      %p88 = scmp.eq.s32.totalorder %s28, 0
      %p89 = por %p87, %p88
      %p90 = scmp.ne.s32.totalorder %s78, %s79
      %p91 = scmp.eq.s32.totalorder %s29, 3
      %p92 = por %p90, %p91
      %p94 = scmp.ne.s32.totalorder %s79, %s93
      %p95 = scmp.eq.s32.totalorder %s29, 0
      %p96 = por %p94, %p95
      %s98 = sadd.s32 %s97, 1
      %p101 = scmp.eq.s32.totalorder %s23, 3
      %p102 = scmp.ne.s32.totalorder %s97, %s99
      %p103 = scmp.eq.s32.totalorder %s23, 0
      %p104 = por %p102, %p103
      %p105 = scmp.ne.s32.totalorder %s97, %s99
      %p106 = scmp.eq.s32.totalorder %s28, 3
      %p107 = por %p105, %p106
      %p108 = scmp.ne.s32.totalorder %s99, %s100
      %p109 = scmp.eq.s32.totalorder %s28, 0
      %p110 = por %p108, %p109
      %p111 = scmp.ne.s32.totalorder %s99, %s100
      %p112 = scmp.eq.s32.totalorder %s29, 3
      %p113 = por %p111, %p112
      %p115 = scmp.ne.s32.totalorder %s100, %s114
      %p116 = scmp.eq.s32.totalorder %s29, 0
      %p117 = por %p115, %p116
      %s119 = sadd.s32 %s118, 1
      %p122 = scmp.eq.s32.totalorder %s23, 3
      %p123 = scmp.ne.s32.totalorder %s118, %s120
      %p124 = scmp.eq.s32.totalorder %s23, 0
      %p125 = por %p123, %p124
      %p126 = scmp.ne.s32.totalorder %s118, %s120
      %p127 = scmp.eq.s32.totalorder %s28, 3
      %p128 = por %p126, %p127
      %p129 = scmp.ne.s32.totalorder %s120, %s121
      %p130 = scmp.eq.s32.totalorder %s28, 0
      %p131 = por %p129, %p130
      %p132 = scmp.ne.s32.totalorder %s120, %s121
      %p133 = scmp.eq.s32.totalorder %s29, 3
      %p134 = por %p132, %p133
      %p136 = scmp.ne.s32.totalorder %s121, %s135
      %p137 = scmp.eq.s32.totalorder %s29, 0
      %p138 = por %p136, %p137
      %s140 = sadd.s32 %s139, 1
      %p143 = scmp.eq.s32.totalorder %s23, 3
      %p144 = scmp.ne.s32.totalorder %s139, %s141
      %p145 = scmp.eq.s32.totalorder %s23, 0
      %p146 = por %p144, %p145
      %p147 = scmp.ne.s32.totalorder %s139, %s141
      %p148 = scmp.eq.s32.totalorder %s28, 3
      %p149 = por %p147, %p148
      %p150 = scmp.ne.s32.totalorder %s141, %s142
      %p151 = scmp.eq.s32.totalorder %s28, 0
      %p152 = por %p150, %p151
      %p153 = scmp.ne.s32.totalorder %s141, %s142
      %p154 = scmp.eq.s32.totalorder %s29, 3
      %p155 = por %p153, %p154
      %p157 = scmp.ne.s32.totalorder %s142, %s156
      %p158 = scmp.eq.s32.totalorder %s29, 0
      %p159 = por %p157, %p158
      %s161 = sadd.s32 %s160, 1
      %p164 = scmp.eq.s32.totalorder %s23, 3
      %p165 = scmp.ne.s32.totalorder %s160, %s162
      %p166 = scmp.eq.s32.totalorder %s23, 0
      %p167 = por %p165, %p166
      %p168 = scmp.ne.s32.totalorder %s160, %s162
      %p169 = scmp.eq.s32.totalorder %s28, 3
      %p170 = por %p168, %p169
      %p171 = scmp.ne.s32.totalorder %s162, %s163
      %p172 = scmp.eq.s32.totalorder %s28, 0
      %p173 = por %p171, %p172
      %p174 = scmp.ne.s32.totalorder %s162, %s163
      %p175 = scmp.eq.s32.totalorder %s29, 3
      %p176 = por %p174, %p175
      %p178 = scmp.ne.s32.totalorder %s163, %s177
      %p179 = scmp.eq.s32.totalorder %s29, 0
      %p180 = por %p178, %p179
      %s181 = smul.u32 %s30, 2
      %s182 = sadd.s32 %s181, %s32
      %s183 = smul.u32 %s49, 2
      %s184 = sadd.s32 %s183, %s41
      %s185 = ssub.s32 %s182, %s184
      %p186 = scmp.eq.s32.totalorder %s185, 0
      %s188 = sadd.s32 %s187, 1
      %s189 = scalar_select %p186, %s187, %s188
      %p192 = pneg %p186
      %p193 = scmp.eq.s32.totalorder %s23, 3
      %p194 = por %p192, %p193
      %p195 = scmp.ne.s32.totalorder %s187, %s190
      %p196 = scmp.eq.s32.totalorder %s23, 0
      %p197 = por %p195, %p196
      %p198 = scmp.ne.s32.totalorder %s187, %s190
      %p199 = scmp.eq.s32.totalorder %s28, 3
      %p200 = por %p198, %p199
      %p201 = scmp.ne.s32.totalorder %s190, %s191
      %p202 = scmp.eq.s32.totalorder %s28, 0
      %p203 = por %p201, %p202
      %p204 = scmp.ne.s32.totalorder %s190, %s191
      %p205 = scmp.eq.s32.totalorder %s29, 3
      %p206 = por %p204, %p205
      %p208 = scmp.ne.s32.totalorder %s191, %s207
      %p209 = scmp.eq.s32.totalorder %s29, 0
      %p210 = por %p208, %p209
      %s211 = smul.u32 %s30, 2
      %s212 = sadd.s32 %s211, %s32
      %s213 = smul.u32 %s49, 2
      %s214 = sadd.s32 %s213, %s41
      %s215 = ssub.s32 %s212, %s214
      %p216 = scmp.eq.s32.totalorder %s215, 0
      %s218 = sadd.s32 %s217, 1
      %s219 = scalar_select %p216, %s217, %s218
      %p222 = pneg %p216
      %p223 = scmp.eq.s32.totalorder %s23, 3
      %p224 = por %p222, %p223
      %p225 = scmp.ne.s32.totalorder %s217, %s220
      %p226 = scmp.eq.s32.totalorder %s23, 0
      %p227 = por %p225, %p226
      %p228 = scmp.ne.s32.totalorder %s217, %s220
      %p229 = scmp.eq.s32.totalorder %s28, 3
      %p230 = por %p228, %p229
      %p231 = scmp.ne.s32.totalorder %s220, %s221
      %p232 = scmp.eq.s32.totalorder %s28, 0
      %p233 = por %p231, %p232
      %p234 = scmp.ne.s32.totalorder %s220, %s221
      %p235 = scmp.eq.s32.totalorder %s29, 3
      %p236 = por %p234, %p235
      %p238 = scmp.ne.s32.totalorder %s221, %s237
      %p239 = scmp.eq.s32.totalorder %s29, 0
      %p240 = por %p238, %p239
      %s241 = smul.u32 %s30, 2
      %s242 = sadd.s32 %s241, %s32
      %s243 = smul.u32 %s49, 2
      %s244 = sadd.s32 %s243, %s41
      %s245 = ssub.s32 %s242, %s244
      %p246 = scmp.eq.s32.totalorder %s245, 0
      %s248 = sadd.s32 %s247, 1
      %s249 = scalar_select %p246, %s247, %s248
      %p252 = pneg %p246
      %p253 = scmp.eq.s32.totalorder %s23, 3
      %p254 = por %p252, %p253
      %p255 = scmp.ne.s32.totalorder %s247, %s250
      %p256 = scmp.eq.s32.totalorder %s23, 0
      %p257 = por %p255, %p256
      %p258 = scmp.ne.s32.totalorder %s247, %s250
      %p259 = scmp.eq.s32.totalorder %s28, 3
      %p260 = por %p258, %p259
      %p261 = scmp.ne.s32.totalorder %s250, %s251
      %p262 = scmp.eq.s32.totalorder %s28, 0
      %p263 = por %p261, %p262
      %p264 = scmp.ne.s32.totalorder %s250, %s251
      %p265 = scmp.eq.s32.totalorder %s29, 3
      %p266 = por %p264, %p265
      %p268 = scmp.ne.s32.totalorder %s251, %s267
      %p269 = scmp.eq.s32.totalorder %s29, 0
      %p270 = por %p268, %p269
      %s271 = smul.u32 %s30, 2
      %s272 = sadd.s32 %s271, %s32
      %s273 = smul.u32 %s49, 2
      %s274 = sadd.s32 %s273, %s41
      %s275 = ssub.s32 %s31, %s45
      %s276 = ssub.s32 %s272, %s274
      %s277 = sor.u32 %s275, %s276
      %p278 = scmp.eq.s32.totalorder %s277, 0
      %s280 = sadd.s32 %s279, 1
      %s281 = scalar_select %p278, %s279, %s280
      %p284 = pneg %p278
      %p285 = scmp.eq.s32.totalorder %s23, 3
      %p286 = por %p284, %p285
      %p287 = scmp.ne.s32.totalorder %s279, %s282
      %p288 = scmp.eq.s32.totalorder %s23, 0
      %p289 = por %p287, %p288
      %p290 = scmp.ne.s32.totalorder %s279, %s282
      %p291 = scmp.eq.s32.totalorder %s28, 3
      %p292 = por %p290, %p291
      %p293 = scmp.ne.s32.totalorder %s282, %s283
      %p294 = scmp.eq.s32.totalorder %s28, 0
      %p295 = por %p293, %p294
      %p296 = scmp.ne.s32.totalorder %s282, %s283
      %p297 = scmp.eq.s32.totalorder %s29, 3
      %p298 = por %p296, %p297
      %p300 = scmp.ne.s32.totalorder %s283, %s299
      %p301 = scmp.eq.s32.totalorder %s29, 0
      %p302 = por %p300, %p301
      %p303 = scmp.le.s32.totalorder 1, %s23
      %p304 = scmp.lt.s32.totalorder %s23, 5
      %p305 = pnand %p303, %p304
      %p306 = pneg %p305
      // Predicated region
      $region9: #{tpu_custom_call.1} parent=5 // pred_check
        _
      $region10: #{tpu_custom_call.1} parent=5 // pred_check_branch
        %308 = sbr.rel (%p305) target = $region12
      $region11: #{tpu_custom_call.1} parent=5 // pred_region
        %s309 = ssub.s32 %s23, 1
        // Predicated region
        $region13: #{tpu_custom_call.1} parent=11 // pred_check
          %p310 = pneg %p89
        $region14: #{tpu_custom_call.1} parent=11 // pred_check_branch
          %312 = sbr.rel (%p310) target = $region16
        $region15: #{tpu_custom_call.1} parent=11 // pred_region
          %s314 = ssub.s32 256, 256
          %315 = vsyncadd [#allocation6], %s314
          %s316 = sshll.u32 [#allocation5], 4
          %s317 = int_to_ptr.vmem [resolvable:$true] %s316
          %322 = dma.hbm_to_vmem [thread:$0]  %s1, 256, %s317, [#allocation6], 128, 128, 8
        $region16: #{tpu_custom_call.1} parent=11 // pred_fallthru
          _
        // Predicated region
        $region17: #{tpu_custom_call.1} parent=11 // pred_check
          %p323 = pneg %p110
        $region18: #{tpu_custom_call.1} parent=11 // pred_check_branch
          %325 = sbr.rel (%p323) target = $region20
        $region19: #{tpu_custom_call.1} parent=11 // pred_region
          %s327 = ssub.s32 32, 32
          %328 = vsyncadd [#allocation6], %s327
          %s330 = sshll.u32 [#allocation7], 4
          %s331 = int_to_ptr.vmem [resolvable:$true] %s330
          %333 = dma.hbm_to_vmem [thread:$0]  %s2, 32, %s331, [#allocation6]
        $region20: #{tpu_custom_call.1} parent=11 // pred_fallthru
          _
        // Predicated region
        $region21: #{tpu_custom_call.1} parent=11 // pred_check
          %p334 = pneg %p131
        $region22: #{tpu_custom_call.1} parent=11 // pred_check_branch
          %336 = sbr.rel (%p334) target = $region24
        $region23: #{tpu_custom_call.1} parent=11 // pred_region
          %s338 = ssub.s32 32, 32
          %339 = vsyncadd [#allocation9], %s338
          %s341 = sshll.u32 [#allocation8], 4
          %s342 = int_to_ptr.vmem [resolvable:$true] %s341
          %344 = dma.hbm_to_vmem [thread:$0]  %s3, 32, %s342, [#allocation9]
        $region24: #{tpu_custom_call.1} parent=11 // pred_fallthru
          _
        // Predicated region
        $region25: #{tpu_custom_call.1} parent=11 // pred_check
          %p345 = pneg %p152
        $region26: #{tpu_custom_call.1} parent=11 // pred_check_branch
          %347 = sbr.rel (%p345) target = $region28
        $region27: #{tpu_custom_call.1} parent=11 // pred_region
          %s349 = ssub.s32 8192, 8192
          %350 = vsyncadd [#allocation9], %s349
          %s351 = sshll.u32 [#allocation10], 4
          %s352 = int_to_ptr.vmem [resolvable:$true] %s351
          %357 = dma.hbm_to_vmem [thread:$0]  %s4, 8192, %s352, [#allocation9], 256, 256, 16
        $region28: #{tpu_custom_call.1} parent=11 // pred_fallthru
          _
        // Predicated region
        $region29: #{tpu_custom_call.1} parent=11 // pred_check
          %p358 = pneg %p173
        $region30: #{tpu_custom_call.1} parent=11 // pred_check_branch
          %360 = sbr.rel (%p358) target = $region32
        $region31: #{tpu_custom_call.1} parent=11 // pred_region
          _
        $region32: #{tpu_custom_call.1} parent=11 // pred_fallthru
          _
      $region12: #{tpu_custom_call.1} parent=5 // pred_fallthru
        _
      %p361 = scmp.lt.s32.totalorder %s23, 4
      // Predicated region
      $region33: #{tpu_custom_call.1} parent=5 // pred_check
        %p362 = pneg %p361
      $region34: #{tpu_custom_call.1} parent=5 // pred_check_branch
        %364 = sbr.rel (%p362) target = $region36
      $region35: #{tpu_custom_call.1} parent=5 // pred_region
        // Predicated region
        $region37: #{tpu_custom_call.1} parent=35 // pred_check
          %p365 = pneg %p62
        $region38: #{tpu_custom_call.1} parent=35 // pred_check_branch
          %367 = sbr.rel (%p365) target = $region40
        $region39: #{tpu_custom_call.1} parent=35 // pred_region
          %s368 = sand.u32 %s52, 1
          %s369 = scalar_lea.sflag [#allocation4], %s368
          %s370 = sand.u32 %s52, 1
          %s371 = smul.addr %s370, 16
          %s372 = scalar_lea.vmem [#allocation3], %s371
          %s374 = ssub.s32 256, 256
          %375 = vsyncadd %s369, %s374
          %s376 = smul.addr %s31, 4
          %s377 = sadd.s32 %s376, 16
          %s378 = smul.addr %s377, 64
          %s379 = scalar_lea.hbm %s0, %s378
          %s380 = sshll.u32 %s372, 4
          %s381 = int_to_ptr.vmem [resolvable:$true] %s380
          %386 = dma.hbm_to_vmem [thread:$0]  %s379, 256, %s381, %s369, 128, 128, 8
        $region40: #{tpu_custom_call.1} parent=35 // pred_fallthru
          _
        // Predicated region
        $region41: #{tpu_custom_call.1} parent=35 // pred_check
          %p387 = pneg %p197
        $region42: #{tpu_custom_call.1} parent=35 // pred_check_branch
          %389 = sbr.rel (%p387) target = $region44
        $region43: #{tpu_custom_call.1} parent=35 // pred_region
          %s390 = sand.u32 %s23, 1
          %s391 = scalar_lea.sflag [#allocation12], %s390
          %s392 = sand.u32 %s187, 1
          %s393 = smul.addr %s392, 512
          %s394 = scalar_lea.vmem [#allocation11], %s393
          %s395 = smul.u32 %s30, 2
          %s396 = sadd.s32 %s395, %s32
          %s397 = smul.u32 2, %s396
          %s399 = ssub.s32 8192, 8192
          %400 = vsyncadd %s391, %s399
          %s401 = smul.addr %s397, 64
          %s402 = scalar_lea.hbm %s6, %s401
          %s403 = sshll.u32 %s394, 4
          %s404 = int_to_ptr.vmem [resolvable:$true] %s403
          %409 = dma.hbm_to_vmem [thread:$0]  %s402, 8192, %s404, %s391, 256, 128, 8
        $region44: #{tpu_custom_call.1} parent=35 // pred_fallthru
          _
        // Predicated region
        $region45: #{tpu_custom_call.1} parent=35 // pred_check
          %p410 = pneg %p227
        $region46: #{tpu_custom_call.1} parent=35 // pred_check_branch
          %412 = sbr.rel (%p410) target = $region48
        $region47: #{tpu_custom_call.1} parent=35 // pred_region
          %s413 = smul.u32 %s30, 2
          %s414 = sadd.s32 %s413, %s32
          %s415 = smul.u32 2, %s414
          %p416 = scmp.lt.s32.totalorder %s415, 3
          %s417 = scalar_select %p416, %s415, 3
          %s418 = scalar_lea.vmem %s7, %s417
          %s419 = smul.u32 %s30, 2
          %s420 = sadd.s32 %s419, %s32
          %s421 = smul.u32 2, %s420
        $region48: #{tpu_custom_call.1} parent=35 // pred_fallthru
          _
        // Predicated region
        $region49: #{tpu_custom_call.1} parent=35 // pred_check
          %p422 = pneg %p257
        $region50: #{tpu_custom_call.1} parent=35 // pred_check_branch
          %424 = sbr.rel (%p422) target = $region52
        $region51: #{tpu_custom_call.1} parent=35 // pred_region
          %s425 = sand.u32 %s23, 1
          %s426 = scalar_lea.sflag [#allocation12], %s425
          %s427 = sand.u32 %s247, 1
          %s428 = smul.addr %s427, 8
          %s429 = scalar_lea.vmem [#allocation13], %s428
          %s430 = smul.u32 %s30, 2
          %s431 = sadd.s32 %s430, %s32
          %s432 = smul.u32 2, %s431
          %s434 = ssub.s32 128, 128
          %435 = vsyncadd %s426, %s434
          %s436 = smul.addr %s432, 64
          %s437 = scalar_lea.hbm %s8, %s436
          %s439 = sshll.u32 %s429, 4
          %s440 = int_to_ptr.vmem [resolvable:$true] %s439
          %442 = dma.hbm_to_vmem [thread:$0]  %s437, 128, %s440, %s426
        $region52: #{tpu_custom_call.1} parent=35 // pred_fallthru
          _
      $region36: #{tpu_custom_call.1} parent=5 // pred_fallthru
        _
      %p443 = scmp.le.s32.totalorder 1, %s23
      %p444 = scmp.lt.s32.totalorder %s23, 5
      %p445 = pnand %p443, %p444
      %p446 = pneg %p445
      // Predicated region
      $region53: #{tpu_custom_call.1} parent=5 // pred_check
        _
      $region54: #{tpu_custom_call.1} parent=5 // pred_check_branch
        %448 = sbr.rel (%p445) target = $region56
      $region55: #{tpu_custom_call.1} parent=5 // pred_region
        %s449 = ssub.s32 %s23, 1
        %s450 = sand.u32 %s55, 1
        %s451 = scalar_lea.sflag [#allocation4], %s450
        %s452 = sand.u32 %s55, 1
        %s453 = smul.addr %s452, 16
        %s454 = scalar_lea.vmem [#allocation3], %s453
        // Predicated region
        $region57: #{tpu_custom_call.1} parent=55 // pred_check
          %p455 = pneg %p68
        $region58: #{tpu_custom_call.1} parent=55 // pred_check_branch
          %457 = sbr.rel (%p455) target = $region60
        $region59: #{tpu_custom_call.1} parent=55 // pred_region
          %458 = dma.done %s451, 256
        $region60: #{tpu_custom_call.1} parent=55 // pred_fallthru
          _
        // Predicated region
        $region61: #{tpu_custom_call.1} parent=55 // pred_check
          %p459 = pneg %p89
        $region62: #{tpu_custom_call.1} parent=55 // pred_check_branch
          %461 = sbr.rel (%p459) target = $region64
        $region63: #{tpu_custom_call.1} parent=55 // pred_region
          %462 = dma.done [#allocation6], 256
        $region64: #{tpu_custom_call.1} parent=55 // pred_fallthru
          _
        // Predicated region
        $region65: #{tpu_custom_call.1} parent=55 // pred_check
          %p463 = pneg %p110
        $region66: #{tpu_custom_call.1} parent=55 // pred_check_branch
          %465 = sbr.rel (%p463) target = $region68
        $region67: #{tpu_custom_call.1} parent=55 // pred_region
          %466 = dma.done [#allocation6], 32
        $region68: #{tpu_custom_call.1} parent=55 // pred_fallthru
          _
        // Predicated region
        $region69: #{tpu_custom_call.1} parent=55 // pred_check
          %p467 = pneg %p131
        $region70: #{tpu_custom_call.1} parent=55 // pred_check_branch
          %469 = sbr.rel (%p467) target = $region72
        $region71: #{tpu_custom_call.1} parent=55 // pred_region
          %470 = dma.done [#allocation9], 32
        $region72: #{tpu_custom_call.1} parent=55 // pred_fallthru
          _
        // Predicated region
        $region73: #{tpu_custom_call.1} parent=55 // pred_check
          %p471 = pneg %p152
        $region74: #{tpu_custom_call.1} parent=55 // pred_check_branch
          %473 = sbr.rel (%p471) target = $region76
        $region75: #{tpu_custom_call.1} parent=55 // pred_region
          %474 = dma.done [#allocation9], 8192
        $region76: #{tpu_custom_call.1} parent=55 // pred_fallthru
          _
        %s475 = sand.u32 %s28, 1
        %s476 = scalar_lea.sflag [#allocation12], %s475
        %s477 = sand.u32 %s190, 1
        %s478 = smul.addr %s477, 512
        %s479 = scalar_lea.vmem [#allocation11], %s478
        // Predicated region
        $region77: #{tpu_custom_call.1} parent=55 // pred_check
          %p480 = pneg %p203
        $region78: #{tpu_custom_call.1} parent=55 // pred_check_branch
          %482 = sbr.rel (%p480) target = $region80
        $region79: #{tpu_custom_call.1} parent=55 // pred_region
          %483 = dma.done %s476, 8192
        $region80: #{tpu_custom_call.1} parent=55 // pred_fallthru
          _
        %s484 = sand.u32 %s28, 1
        %s485 = scalar_lea.sflag [#allocation12], %s484
        %s486 = sand.u32 %s250, 1
        %s487 = smul.addr %s486, 8
        %s488 = scalar_lea.vmem [#allocation13], %s487
        // Predicated region
        $region81: #{tpu_custom_call.1} parent=55 // pred_check
          %p489 = pneg %p263
        $region82: #{tpu_custom_call.1} parent=55 // pred_check_branch
          %491 = sbr.rel (%p489) target = $region84
        $region83: #{tpu_custom_call.1} parent=55 // pred_region
          %492 = dma.done %s485, 128
        $region84: #{tpu_custom_call.1} parent=55 // pred_fallthru
          _
        %s493 = sand.u32 %s55, 1
        %s494 = scalar_lea.sflag [#allocation4], %s493
        %s495 = sand.u32 %s55, 1
        %s496 = smul.addr %s495, 16
        %s497 = scalar_lea.vmem [#allocation3], %s496
        %p498 = pneg %p68
        %p499 = pneg %p65
        %p500 = pneg %p89
        %p501 = pneg %p86
        %p502 = pneg %p110
        %p503 = pneg %p107
        %p504 = pneg %p131
        %p505 = pneg %p128
        %p506 = pneg %p152
        %p507 = pneg %p149
        %p508 = pneg %p173
        %p509 = pneg %p170
        %s510 = sand.u32 %s28, 1
        %s511 = scalar_lea.sflag [#allocation12], %s510
        %s512 = sand.u32 %s190, 1
        %s513 = smul.addr %s512, 512
        %s514 = scalar_lea.vmem [#allocation11], %s513
        %p515 = pneg %p203
        %p516 = pneg %p200
        %s517 = smul.u32 %s33, 2
        %s518 = sadd.s32 %s517, %s35
        %s519 = smul.u32 2, %s518
        %p520 = scmp.lt.s32.totalorder %s519, 3
        %s521 = scalar_select %p520, %s519, 3
        %s522 = scalar_lea.vmem %s7, %s521
        %p523 = pneg %p233
        %p524 = pneg %p230
        %s525 = sand.u32 %s28, 1
        %s526 = scalar_lea.sflag [#allocation12], %s525
        %s527 = sand.u32 %s250, 1
        %s528 = smul.addr %s527, 8
        %s529 = scalar_lea.vmem [#allocation13], %s528
        %p530 = pneg %p263
        %p531 = pneg %p260
        %p532 = pneg %p295
        %p533 = pneg %p292
        %s534 = sand.u32 %s282, 1
        %s535 = sand.u32 %s282, 1
        %s536 = smul.addr %s535, 48
        %s537 = scalar_lea.vmem [#allocation14], %s536
        %s538 = smul.u32 %s33, 2
        %s539 = sadd.s32 %s538, %s35
        %s540 = smul.u32 2, %s539
        %s541 = smul.u32 %s33, 2
        %s542 = sadd.s32 %s541, %s35
        %s543 = smul.u32 2, %s542
        %p544 = scmp.lt.s32.totalorder %s543, 3
        %s545 = scalar_select %p544, %s543, 3
        %s546 = scalar_lea.vmem %s7, %s545
        %s547 = smul.u32 %s33, 2
        %s548 = sadd.s32 %s547, %s35
        %s549 = smul.u32 2, %s548
        %s550 = smul.u32 %s33, 2
        %s551 = sadd.s32 %s550, %s35
        %s552 = smul.u32 2, %s551
        %s553 = smul.u32 %s33, 2
        %s554 = sadd.s32 %s553, %s35
        %s555 = smul.u32 2, %s554
        %p556 = scmp.eq.s32.totalorder %s35, 0
        // Predicated region
        $region85: #{tpu_custom_call.1} parent=55 // pred_check
          %p557 = pneg %p556
        $region86: #{tpu_custom_call.1} parent=55 // pred_check_branch
          %559 = sbr.rel (%p557) target = $region88
        $region87: #{tpu_custom_call.1} parent=55 // pred_region
          %v560 = vld [vmem:[#allocation7] sm:$0x3]
          %v561 = vld [vmem:[#allocation8] sm:$0x3]
          %v562 = vld [vmem:[%s5] sm:$0xf]
          loop: start=0, step=1, limit=2
          $region89: #{tpu_custom_call.1} parent=87 // loop_pre_header
            _
          $region90: #{tpu_custom_call.1} parent=87 // loop_header
            %s564 = sphi 0, %s568
            %p565 = scmp.ge.s32.totalorder %s564, 2
          $region91: #{tpu_custom_call.1} parent=87 // loop_header_branch
            %567 = sbr.rel (%p565) target = $region95
          $region92: #{tpu_custom_call.1} parent=87 // loop_body
            %s569 = smul.u32 %s564, 8
            %s570 = sshra.s32 %s569, 3
            %s571 = sand.u32 %s569, 7
            %s572 = smul.u32 %s570, 2
            %s573 = smul.addr %s572, 4
            %s574 = scalar_lea.vmem %s454, %s573 [#allocation3]
            %v575 = vld [vmem:[%s574] sm:$0xff]
            %v576 = vunpack.c.l.bf16 %v575
            %v577 = vunpack.c.h.bf16 %v575
            %v578 = vadd.f32 %v576, %v577
            %579 = vadd.xlane.f32.xlu0 %v578
            %v580 = vpop.xlane.xlu0 %579
            %v581 = vrcp.pop 256.0
            %v582 = vmul.f32 %v580, %v581
            %v583 = vsub.f32 %v576, %v582
            %v584 = vsub.f32 %v577, %v582
            %v585 = vmul.f32 %v583, %v583
            %v586 = vmul.f32 %v584, %v584
            %v587 = vadd.f32 %v585, %v586
            %588 = vadd.xlane.f32.xlu0 %v587
            %v589 = vpop.xlane.xlu0 %588
            %v590 = vmul.f32 %v589, %v581
            %v591 = vadd.f32 %v590, 1e-05
            %v592 = vrsqrt.pop %v591
            %v593 = vmul.f32 %v583, %v592
            %v594 = vmul.f32 %v584, %v592
            %v596 = vlaneseq
            %v597 = vshrl.u32 %v596, 7
            %v598 = vsub.s32 0, %v597
            %v599 = vrot.slane %v560, %v598
            %v600 = vlaneseq
            %v601 = vshrl.u32 %v600, 7
            %v602 = vsub.s32 1, %v601
            %v603 = vrot.slane %v560, %v602
            %v606 = vmul.f32 %v593, %v599
            %v607 = vmul.f32 %v594, %v603
            %v609 = vlaneseq
            %v610 = vshrl.u32 %v609, 7
            %v611 = vsub.s32 0, %v610
            %v612 = vrot.slane %v561, %v611
            %v613 = vlaneseq
            %v614 = vshrl.u32 %v613, 7
            %v615 = vsub.s32 1, %v614
            %v616 = vrot.slane %v561, %v615
            %v619 = vadd.f32 %v606, %v612
            %v620 = vadd.f32 %v607, %v616
            %s621 = smul.addr %s572, 4
            %s622 = scalar_lea.vmem [#allocation5], %s621
            %v623 = vld [vmem:[%s622] sm:$0xff]
            %v624 = vunpack.c.l.bf16 %v623
            %v625 = vunpack.c.h.bf16 %v623
            %v626 = vadd.f32 %v619, %v624
            %v627 = vadd.f32 %v620, %v625
            %v628 = vpack.c.bf16 %v626, %v626
            %v629 = vpack.c.bf16 %v627, %v627
            %v630 = vld [vmem:[#allocation10] sm:$0xff]
            %v631 = vld [vmem:[#allocation10 + $0x8] sm:$0xff]
            %v632 = vld [vmem:[#allocation10 + $0x10] sm:$0xff]
            %v633 = vld [vmem:[#allocation10 + $0x18] sm:$0xff]
            %v634 = vld [vmem:[#allocation10 + $0x20] sm:$0xff]
            %v635 = vld [vmem:[#allocation10 + $0x28] sm:$0xff]
            %v636 = vld [vmem:[#allocation10 + $0x30] sm:$0xff]
            %v637 = vld [vmem:[#allocation10 + $0x38] sm:$0xff]
            %v638 = vld [vmem:[#allocation10 + $0x40] sm:$0xff]
            %v639 = vld [vmem:[#allocation10 + $0x48] sm:$0xff]
            %v640 = vld [vmem:[#allocation10 + $0x50] sm:$0xff]
            %v641 = vld [vmem:[#allocation10 + $0x58] sm:$0xff]
            %v642 = vld [vmem:[#allocation10 + $0x60] sm:$0xff]
            %v643 = vld [vmem:[#allocation10 + $0x68] sm:$0xff]
            %v644 = vld [vmem:[#allocation10 + $0x70] sm:$0xff]
            %v645 = vld [vmem:[#allocation10 + $0x78] sm:$0xff]
            %v646 = vld [vmem:[#allocation10 + $0x80] sm:$0xff]
            %v647 = vld [vmem:[#allocation10 + $0x88] sm:$0xff]
            %v648 = vld [vmem:[#allocation10 + $0x90] sm:$0xff]
            %v649 = vld [vmem:[#allocation10 + $0x98] sm:$0xff]
            %v650 = vld [vmem:[#allocation10 + $0xa0] sm:$0xff]
            %v651 = vld [vmem:[#allocation10 + $0xa8] sm:$0xff]
            %v652 = vld [vmem:[#allocation10 + $0xb0] sm:$0xff]
            %v653 = vld [vmem:[#allocation10 + $0xb8] sm:$0xff]
            %v654 = vld [vmem:[#allocation10 + $0xc0] sm:$0xff]
            %v655 = vld [vmem:[#allocation10 + $0xc8] sm:$0xff]
            %v656 = vld [vmem:[#allocation10 + $0xd0] sm:$0xff]
            %v657 = vld [vmem:[#allocation10 + $0xd8] sm:$0xff]
            %v658 = vld [vmem:[#allocation10 + $0xe0] sm:$0xff]
            %v659 = vld [vmem:[#allocation10 + $0xe8] sm:$0xff]
            %v660 = vld [vmem:[#allocation10 + $0xf0] sm:$0xff]
            %v661 = vld [vmem:[#allocation10 + $0xf8] sm:$0xff]
            %v662 = vld [vmem:[#allocation10 + $0x100] sm:$0xff]
            %v663 = vld [vmem:[#allocation10 + $0x108] sm:$0xff]
            %v664 = vld [vmem:[#allocation10 + $0x110] sm:$0xff]
            %v665 = vld [vmem:[#allocation10 + $0x118] sm:$0xff]
            %v666 = vld [vmem:[#allocation10 + $0x120] sm:$0xff]
            %v667 = vld [vmem:[#allocation10 + $0x128] sm:$0xff]
            %v668 = vld [vmem:[#allocation10 + $0x130] sm:$0xff]
            %v669 = vld [vmem:[#allocation10 + $0x138] sm:$0xff]
            %v670 = vld [vmem:[#allocation10 + $0x140] sm:$0xff]
            %v671 = vld [vmem:[#allocation10 + $0x148] sm:$0xff]
            %v672 = vld [vmem:[#allocation10 + $0x150] sm:$0xff]
            %v673 = vld [vmem:[#allocation10 + $0x158] sm:$0xff]
            %v674 = vld [vmem:[#allocation10 + $0x160] sm:$0xff]
            %v675 = vld [vmem:[#allocation10 + $0x168] sm:$0xff]
            %v676 = vld [vmem:[#allocation10 + $0x170] sm:$0xff]
            %v677 = vld [vmem:[#allocation10 + $0x178] sm:$0xff]
            %v678 = vld [vmem:[#allocation10 + $0x180] sm:$0xff]
            %v679 = vld [vmem:[#allocation10 + $0x188] sm:$0xff]
            %v680 = vld [vmem:[#allocation10 + $0x190] sm:$0xff]
            %v681 = vld [vmem:[#allocation10 + $0x198] sm:$0xff]
            %v682 = vld [vmem:[#allocation10 + $0x1a0] sm:$0xff]
            %v683 = vld [vmem:[#allocation10 + $0x1a8] sm:$0xff]
            %v684 = vld [vmem:[#allocation10 + $0x1b0] sm:$0xff]
            %v685 = vld [vmem:[#allocation10 + $0x1b8] sm:$0xff]
            %v686 = vld [vmem:[#allocation10 + $0x1c0] sm:$0xff]
            %v687 = vld [vmem:[#allocation10 + $0x1c8] sm:$0xff]
            %v688 = vld [vmem:[#allocation10 + $0x1d0] sm:$0xff]
            %v689 = vld [vmem:[#allocation10 + $0x1d8] sm:$0xff]
            %v690 = vld [vmem:[#allocation10 + $0x1e0] sm:$0xff]
            %v691 = vld [vmem:[#allocation10 + $0x1e8] sm:$0xff]
            %v692 = vld [vmem:[#allocation10 + $0x1f0] sm:$0xff]
            %v693 = vld [vmem:[#allocation10 + $0x1f8] sm:$0xff]
            %v695 = vlaneseq
            %v696 = vshrl.u32 %v695, 7
            %v697 = vsub.s32 0, %v696
            %v698 = vrot.slane %v562, %v697
            %v699 = vlaneseq
            %v700 = vshrl.u32 %v699, 7
            %v701 = vsub.s32 1, %v700
            %v702 = vrot.slane %v562, %v701
            %v703 = vlaneseq
            %v704 = vshrl.u32 %v703, 7
            %v705 = vsub.s32 2, %v704
            %v706 = vrot.slane %v562, %v705
            %v707 = vlaneseq
            %v708 = vshrl.u32 %v707, 7
            %v709 = vsub.s32 3, %v708
            %v710 = vrot.slane %v562, %v709
            %v779 = vunpack.c.l.b16 %v630
            %v780 = vunpack.c.h.b16 %v630
            %v781 = vunpack.c.l.b16 %v631
            %v782 = vunpack.c.h.b16 %v631
            %v783 = vunpack.c.l.b16 %v632
            %v784 = vunpack.c.h.b16 %v632
            %v785 = vunpack.c.l.b16 %v633
            %v786 = vunpack.c.h.b16 %v633
            %v787 = vunpack.c.l.b16 %v634
            %v788 = vunpack.c.h.b16 %v634
            %v789 = vunpack.c.l.b16 %v635
            %v790 = vunpack.c.h.b16 %v635
            %v791 = vunpack.c.l.b16 %v636
            %v792 = vunpack.c.h.b16 %v636
            %v793 = vunpack.c.l.b16 %v637
            %v794 = vunpack.c.h.b16 %v637
            %v795 = vunpack.c.l.b16 %v638
            %v796 = vunpack.c.h.b16 %v638
            %v797 = vunpack.c.l.b16 %v639
            %v798 = vunpack.c.h.b16 %v639
            %v799 = vunpack.c.l.b16 %v640
            %v800 = vunpack.c.h.b16 %v640
            %v801 = vunpack.c.l.b16 %v641
            %v802 = vunpack.c.h.b16 %v641
            %v803 = vunpack.c.l.b16 %v642
            %v804 = vunpack.c.h.b16 %v642
            %v805 = vunpack.c.l.b16 %v643
            %v806 = vunpack.c.h.b16 %v643
            %v807 = vunpack.c.l.b16 %v644
            %v808 = vunpack.c.h.b16 %v644
            %v809 = vunpack.c.l.b16 %v645
            %v810 = vunpack.c.h.b16 %v645
            %v811 = vunpack.c.l.b16 %v646
            %v812 = vunpack.c.h.b16 %v646
            %v813 = vunpack.c.l.b16 %v647
            %v814 = vunpack.c.h.b16 %v647
            %v815 = vunpack.c.l.b16 %v648
            %v816 = vunpack.c.h.b16 %v648
            %v817 = vunpack.c.l.b16 %v649
            %v818 = vunpack.c.h.b16 %v649
            %v819 = vunpack.c.l.b16 %v650
            %v820 = vunpack.c.h.b16 %v650
            %v821 = vunpack.c.l.b16 %v651
            %v822 = vunpack.c.h.b16 %v651
            %v823 = vunpack.c.l.b16 %v652
            %v824 = vunpack.c.h.b16 %v652
            %v825 = vunpack.c.l.b16 %v653
            %v826 = vunpack.c.h.b16 %v653
            %v827 = vunpack.c.l.b16 %v654
            %v828 = vunpack.c.h.b16 %v654
            %v829 = vunpack.c.l.b16 %v655
            %v830 = vunpack.c.h.b16 %v655
            %v831 = vunpack.c.l.b16 %v656
            %v832 = vunpack.c.h.b16 %v656
            %v833 = vunpack.c.l.b16 %v657
            %v834 = vunpack.c.h.b16 %v657
            %v835 = vunpack.c.l.b16 %v658
            %v836 = vunpack.c.h.b16 %v658
            %v837 = vunpack.c.l.b16 %v659
            %v838 = vunpack.c.h.b16 %v659
            %v839 = vunpack.c.l.b16 %v660
            %v840 = vunpack.c.h.b16 %v660
            %v841 = vunpack.c.l.b16 %v661
            %v842 = vunpack.c.h.b16 %v661
            %v843 = vunpack.c.l.b16 %v662
            %v844 = vunpack.c.h.b16 %v662
            %v845 = vunpack.c.l.b16 %v663
            %v846 = vunpack.c.h.b16 %v663
            %v847 = vunpack.c.l.b16 %v664
            %v848 = vunpack.c.h.b16 %v664
            %v849 = vunpack.c.l.b16 %v665
            %v850 = vunpack.c.h.b16 %v665
            %v851 = vunpack.c.l.b16 %v666
            %v852 = vunpack.c.h.b16 %v666
            %v853 = vunpack.c.l.b16 %v667
            %v854 = vunpack.c.h.b16 %v667
            %v855 = vunpack.c.l.b16 %v668
            %v856 = vunpack.c.h.b16 %v668
            %v857 = vunpack.c.l.b16 %v669
            %v858 = vunpack.c.h.b16 %v669
            %v859 = vunpack.c.l.b16 %v670
            %v860 = vunpack.c.h.b16 %v670
            %v861 = vunpack.c.l.b16 %v671
            %v862 = vunpack.c.h.b16 %v671
            %v863 = vunpack.c.l.b16 %v672
            %v864 = vunpack.c.h.b16 %v672
            %v865 = vunpack.c.l.b16 %v673
            %v866 = vunpack.c.h.b16 %v673
            %v867 = vunpack.c.l.b16 %v674
            %v868 = vunpack.c.h.b16 %v674
            %v869 = vunpack.c.l.b16 %v675
            %v870 = vunpack.c.h.b16 %v675
            %v871 = vunpack.c.l.b16 %v676
            %v872 = vunpack.c.h.b16 %v676
            %v873 = vunpack.c.l.b16 %v677
            %v874 = vunpack.c.h.b16 %v677
            %v875 = vunpack.c.l.b16 %v678
            %v876 = vunpack.c.h.b16 %v678
            %v877 = vunpack.c.l.b16 %v679
            %v878 = vunpack.c.h.b16 %v679
            %v879 = vunpack.c.l.b16 %v680
            %v880 = vunpack.c.h.b16 %v680
            %v881 = vunpack.c.l.b16 %v681
            %v882 = vunpack.c.h.b16 %v681
            %v883 = vunpack.c.l.b16 %v682
            %v884 = vunpack.c.h.b16 %v682
            %v885 = vunpack.c.l.b16 %v683
            %v886 = vunpack.c.h.b16 %v683
            %v887 = vunpack.c.l.b16 %v684
            %v888 = vunpack.c.h.b16 %v684
            %v889 = vunpack.c.l.b16 %v685
            %v890 = vunpack.c.h.b16 %v685
            %v891 = vunpack.c.l.b16 %v686
            %v892 = vunpack.c.h.b16 %v686
            %v893 = vunpack.c.l.b16 %v687
            %v894 = vunpack.c.h.b16 %v687
            %v895 = vunpack.c.l.b16 %v688
            %v896 = vunpack.c.h.b16 %v688
            %v897 = vunpack.c.l.b16 %v689
            %v898 = vunpack.c.h.b16 %v689
            %v899 = vunpack.c.l.b16 %v690
            %v900 = vunpack.c.h.b16 %v690
            %v901 = vunpack.c.l.b16 %v691
            %v902 = vunpack.c.h.b16 %v691
            %v903 = vunpack.c.l.b16 %v692
            %v904 = vunpack.c.h.b16 %v692
            %v905 = vunpack.c.l.b16 %v693
            %v906 = vunpack.c.h.b16 %v693
            %v907 = vpack.c.b16 %v783, %v779
            %v908 = vpack.c.b16 %v784, %v780
            %v909 = vpack.c.b16 %v785, %v781
            %v910 = vpack.c.b16 %v786, %v782
            %v911 = vpack.c.b16 %v791, %v787
            %v912 = vpack.c.b16 %v792, %v788
            %v913 = vpack.c.b16 %v793, %v789
            %v914 = vpack.c.b16 %v794, %v790
            %v915 = vpack.c.b16 %v799, %v795
            %v916 = vpack.c.b16 %v800, %v796
            %v917 = vpack.c.b16 %v801, %v797
            %v918 = vpack.c.b16 %v802, %v798
            %v919 = vpack.c.b16 %v807, %v803
            %v920 = vpack.c.b16 %v808, %v804
            %v921 = vpack.c.b16 %v809, %v805
            %v922 = vpack.c.b16 %v810, %v806
            %v923 = vpack.c.b16 %v815, %v811
            %v924 = vpack.c.b16 %v816, %v812
            %v925 = vpack.c.b16 %v817, %v813
            %v926 = vpack.c.b16 %v818, %v814
            %v927 = vpack.c.b16 %v823, %v819
            %v928 = vpack.c.b16 %v824, %v820
            %v929 = vpack.c.b16 %v825, %v821
            %v930 = vpack.c.b16 %v826, %v822
            %v931 = vpack.c.b16 %v831, %v827
            %v932 = vpack.c.b16 %v832, %v828
            %v933 = vpack.c.b16 %v833, %v829
            %v934 = vpack.c.b16 %v834, %v830
            %v935 = vpack.c.b16 %v839, %v835
            %v936 = vpack.c.b16 %v840, %v836
            %v937 = vpack.c.b16 %v841, %v837
            %v938 = vpack.c.b16 %v842, %v838
            %v939 = vpack.c.b16 %v847, %v843
            %v940 = vpack.c.b16 %v848, %v844
            %v941 = vpack.c.b16 %v849, %v845
            %v942 = vpack.c.b16 %v850, %v846
            %v943 = vpack.c.b16 %v855, %v851
            %v944 = vpack.c.b16 %v856, %v852
            %v945 = vpack.c.b16 %v857, %v853
            %v946 = vpack.c.b16 %v858, %v854
            %v947 = vpack.c.b16 %v863, %v859
            %v948 = vpack.c.b16 %v864, %v860
            %v949 = vpack.c.b16 %v865, %v861
            %v950 = vpack.c.b16 %v866, %v862
            %v951 = vpack.c.b16 %v871, %v867
            %v952 = vpack.c.b16 %v872, %v868
            %v953 = vpack.c.b16 %v873, %v869
            %v954 = vpack.c.b16 %v874, %v870
            %v955 = vpack.c.b16 %v879, %v875
            %v956 = vpack.c.b16 %v880, %v876
            %v957 = vpack.c.b16 %v881, %v877
            %v958 = vpack.c.b16 %v882, %v878
            %v959 = vpack.c.b16 %v887, %v883
            %v960 = vpack.c.b16 %v888, %v884
            %v961 = vpack.c.b16 %v889, %v885
            %v962 = vpack.c.b16 %v890, %v886
            %v963 = vpack.c.b16 %v895, %v891
            %v964 = vpack.c.b16 %v896, %v892
            %v965 = vpack.c.b16 %v897, %v893
            %v966 = vpack.c.b16 %v898, %v894
            %v967 = vpack.c.b16 %v903, %v899
            %v968 = vpack.c.b16 %v904, %v900
            %v969 = vpack.c.b16 %v905, %v901
            %v970 = vpack.c.b16 %v906, %v902
            %1035 = vmatprep.subr.bf16.mxu0 %v936
            %1036 = vmatpush1.bf16.msra.mxu0 %v935
            %1037 = vmatprep.subr.bf16.mxu0 %v932
            %1038 = vmatpush1.bf16.msra.mxu0 %v931
            %1039 = vmatprep.subr.bf16.mxu0 %v928
            %1040 = vmatpush1.bf16.msra.mxu0 %v927
            %1041 = vmatprep.subr.bf16.mxu0 %v924
            %1042 = vmatpush1.bf16.msra.mxu0 %v923
            %1043 = vmatprep.subr.bf16.mxu0 %v920
            %1044 = vmatpush1.bf16.msra.mxu0 %v919
            %1045 = vmatprep.subr.bf16.mxu0 %v916
            %1046 = vmatpush1.bf16.msra.mxu0 %v915
            %1047 = vmatprep.subr.bf16.mxu0 %v912
            %1048 = vmatpush1.bf16.msra.mxu0 %v911
            %1049 = vmatprep.subr.bf16.mxu0 %v908
            %1050 = vmatpush1.bf16.msra.mxu0 %v907
            %1051 = vmatprep.subr.bf16.mxu0 %v968
            %1052 = vmatpush2.bf16.msra.mxu0 %v967
            %1053 = vmatprep.subr.bf16.mxu0 %v964
            %1054 = vmatpush2.bf16.msra.mxu0 %v963
            %1055 = vmatprep.subr.bf16.mxu0 %v960
            %1056 = vmatpush2.bf16.msra.mxu0 %v959
            %1057 = vmatprep.subr.bf16.mxu0 %v956
            %1058 = vmatpush2.bf16.msra.mxu0 %v955
            %1059 = vmatprep.subr.bf16.mxu0 %v952
            %1060 = vmatpush2.bf16.msra.mxu0 %v951
            %1061 = vmatprep.subr.bf16.mxu0 %v948
            %1062 = vmatpush2.bf16.msra.mxu0 %v947
            %1063 = vmatprep.subr.bf16.mxu0 %v944
            %1064 = vmatpush2.bf16.msra.mxu0 %v943
            %1065 = vmatprep.subr.bf16.mxu0 %v940
            %1066 = vmatpush2.bf16.msra.mxu0 %v939
            %1067 = vmatprep.mubr.bf16.mxu0 %v629
            %1068 = vmatmul.mubr.bf16.gmra.mxu0 %v628
            %v1069 = vpop.f32.mrf.mxu0
            %v1070 = vadd.f32 %v698, %v1069
            %v1071 = vpop.f32.mrf.mxu0
            %v1072 = vadd.f32 %v702, %v1071
            %v1073 = vpop.f32.mrf.mxu0
            %v1074 = vpop.f32.mrf.mxu0
            %1075 = vdwg.mxu0
            %1076 = vmatprep.subr.bf16.mxu0 %v938
            %1077 = vmatpush1.bf16.msra.mxu0 %v937
            %1078 = vmatprep.subr.bf16.mxu0 %v934
            %1079 = vmatpush1.bf16.msra.mxu0 %v933
            %1080 = vmatprep.subr.bf16.mxu0 %v930
            %1081 = vmatpush1.bf16.msra.mxu0 %v929
            %1082 = vmatprep.subr.bf16.mxu0 %v926
            %1083 = vmatpush1.bf16.msra.mxu0 %v925
            %1084 = vmatprep.subr.bf16.mxu0 %v922
            %1085 = vmatpush1.bf16.msra.mxu0 %v921
            %1086 = vmatprep.subr.bf16.mxu0 %v918
            %1087 = vmatpush1.bf16.msra.mxu0 %v917
            %1088 = vmatprep.subr.bf16.mxu0 %v914
            %1089 = vmatpush1.bf16.msra.mxu0 %v913
            %1090 = vmatprep.subr.bf16.mxu0 %v910
            %1091 = vmatpush1.bf16.msra.mxu0 %v909
            %1092 = vmatprep.subr.bf16.mxu0 %v970
            %1093 = vmatpush2.bf16.msra.mxu0 %v969
            %1094 = vmatprep.subr.bf16.mxu0 %v966
            %1095 = vmatpush2.bf16.msra.mxu0 %v965
            %1096 = vmatprep.subr.bf16.mxu0 %v962
            %1097 = vmatpush2.bf16.msra.mxu0 %v961
            %1098 = vmatprep.subr.bf16.mxu0 %v958
            %1099 = vmatpush2.bf16.msra.mxu0 %v957
            %1100 = vmatprep.subr.bf16.mxu0 %v954
            %1101 = vmatpush2.bf16.msra.mxu0 %v953
            %1102 = vmatprep.subr.bf16.mxu0 %v950
            %1103 = vmatpush2.bf16.msra.mxu0 %v949
            %1104 = vmatprep.subr.bf16.mxu0 %v946
            %1105 = vmatpush2.bf16.msra.mxu0 %v945
            %1106 = vmatprep.subr.bf16.mxu0 %v942
            %1107 = vmatpush2.bf16.msra.mxu0 %v941
            %1108 = vmatprep.mubr.bf16.mxu0 %v629
            %1109 = vmatmul.mubr.bf16.gmra.mxu0 %v628
            %v1110 = vpop.f32.mrf.mxu0
            %v1111 = vadd.f32 %v706, %v1110
            %v1112 = vpop.f32.mrf.mxu0
            %v1113 = vadd.f32 %v710, %v1112
            %v1114 = vpop.f32.mrf.mxu0
            %v1115 = vpop.f32.mrf.mxu0
            %1116 = vdwg.mxu0
            %v1117 = vmul.f32 %v1070, %v1070
            %v1118 = vmul.f32 %v1072, %v1072
            %v1119 = vmul.f32 %v1111, %v1111
            %v1120 = vmul.f32 %v1113, %v1113
            %v1121 = vmul.f32 %v1070, %v1117
            %v1122 = vmul.f32 %v1072, %v1118
            %v1123 = vmul.f32 %v1111, %v1119
            %v1124 = vmul.f32 %v1113, %v1120
            %v1125 = vmul.f32 %v1121, 0.044715
            %v1126 = vmul.f32 %v1122, 0.044715
            %v1127 = vmul.f32 %v1123, 0.044715
            %v1128 = vmul.f32 %v1124, 0.044715
            %v1129 = vadd.f32 %v1070, %v1125
            %v1130 = vadd.f32 %v1072, %v1126
            %v1131 = vadd.f32 %v1111, %v1127
            %v1132 = vadd.f32 %v1113, %v1128
            %v1133 = vmul.f32 %v1129, 0.7978846
            %v1134 = vmul.f32 %v1130, 0.7978846
            %v1135 = vmul.f32 %v1131, 0.7978846
            %v1136 = vmul.f32 %v1132, 0.7978846
            %v1137 = vtanh.pop %v1133
            %v1138 = vtanh.pop %v1134
            %v1139 = vtanh.pop %v1135
            %v1140 = vtanh.pop %v1136
            %v1141 = vadd.f32 %v1137, 1.0
            %v1142 = vadd.f32 %v1138, 1.0
            %v1143 = vadd.f32 %v1139, 1.0
            %v1144 = vadd.f32 %v1140, 1.0
            %v1145 = vmul.f32 %v1141, 0.5
            %v1146 = vmul.f32 %v1142, 0.5
            %v1147 = vmul.f32 %v1143, 0.5
            %v1148 = vmul.f32 %v1144, 0.5
            %v1149 = vmul.f32 %v1070, %v1145
            %v1150 = vmul.f32 %v1072, %v1146
            %v1151 = vmul.f32 %v1111, %v1147
            %v1152 = vmul.f32 %v1113, %v1148
            %v1153 = vpack.c.bf16 %v1149, %v1149
            %v1154 = vpack.c.bf16 %v1150, %v1150
            %v1155 = vpack.c.bf16 %v1151, %v1151
            %v1156 = vpack.c.bf16 %v1152, %v1152
            %v1161 = vunpack.c.l.b16 %v1153
            %v1162 = vunpack.c.l.b16 %v1154
            %v1163 = vunpack.c.l.b16 %v1155
            %v1164 = vunpack.c.l.b16 %v1156
            %v1165 = vpack.c.b16 %v1162, %v1161
            %v1166 = vpack.c.b16 %v1164, %v1163
            %s1169 = smul.u32 %s570, 4
            %s1170 = smul.addr %s1169, 4
            %s1171 = scalar_lea.vmem [#allocation2], %s1170
            %1172 = vst [vmem:[%s1171] sm:$0xff] %v1165
            %1173 = vst [vmem:[%s1171 + $0x8] sm:$0xff] %v1166
          $region93: #{tpu_custom_call.1} parent=87 // loop_footer
            %s568 = sadd.s32 1, %s564
          $region94: #{tpu_custom_call.1} parent=87 // loop_footer_branch
            %563 = sbr.rel target = $region90
          $region95: #{tpu_custom_call.1} parent=87 // loop_exit
            _
        $region88: #{tpu_custom_call.1} parent=55 // pred_fallthru
          _
        %v1174 = vld [vmem:[%s546] sm:$0x3]
        %v1175 = vld [vmem:[%s479] sm:$0xff]
        %v1176 = vld [vmem:[%s479 + $0x8] sm:$0xff]
        %v1177 = vld [vmem:[%s479 + $0x10] sm:$0xff]
        %v1178 = vld [vmem:[%s479 + $0x18] sm:$0xff]
        %v1179 = vld [vmem:[%s479 + $0x20] sm:$0xff]
        %v1180 = vld [vmem:[%s479 + $0x28] sm:$0xff]
        %v1181 = vld [vmem:[%s479 + $0x30] sm:$0xff]
        %v1182 = vld [vmem:[%s479 + $0x38] sm:$0xff]
        %v1183 = vld [vmem:[%s479 + $0x40] sm:$0xff]
        %v1184 = vld [vmem:[%s479 + $0x48] sm:$0xff]
        %v1185 = vld [vmem:[%s479 + $0x50] sm:$0xff]
        %v1186 = vld [vmem:[%s479 + $0x58] sm:$0xff]
        %v1187 = vld [vmem:[%s479 + $0x60] sm:$0xff]
        %v1188 = vld [vmem:[%s479 + $0x68] sm:$0xff]
        %v1189 = vld [vmem:[%s479 + $0x70] sm:$0xff]
        %v1190 = vld [vmem:[%s479 + $0x78] sm:$0xff]
        %v1191 = vld [vmem:[%s479 + $0x80] sm:$0xff]
        %v1192 = vld [vmem:[%s479 + $0x88] sm:$0xff]
        %v1193 = vld [vmem:[%s479 + $0x90] sm:$0xff]
        %v1194 = vld [vmem:[%s479 + $0x98] sm:$0xff]
        %v1195 = vld [vmem:[%s479 + $0xa0] sm:$0xff]
        %v1196 = vld [vmem:[%s479 + $0xa8] sm:$0xff]
        %v1197 = vld [vmem:[%s479 + $0xb0] sm:$0xff]
        %v1198 = vld [vmem:[%s479 + $0xb8] sm:$0xff]
        %v1199 = vld [vmem:[%s479 + $0xc0] sm:$0xff]
        %v1200 = vld [vmem:[%s479 + $0xc8] sm:$0xff]
        %v1201 = vld [vmem:[%s479 + $0xd0] sm:$0xff]
        %v1202 = vld [vmem:[%s479 + $0xd8] sm:$0xff]
        %v1203 = vld [vmem:[%s479 + $0xe0] sm:$0xff]
        %v1204 = vld [vmem:[%s479 + $0xe8] sm:$0xff]
        %v1205 = vld [vmem:[%s479 + $0xf0] sm:$0xff]
        %v1206 = vld [vmem:[%s479 + $0xf8] sm:$0xff]
        %v1207 = vld [vmem:[%s479 + $0x100] sm:$0xff]
        %v1208 = vld [vmem:[%s479 + $0x108] sm:$0xff]
        %v1209 = vld [vmem:[%s479 + $0x110] sm:$0xff]
        %v1210 = vld [vmem:[%s479 + $0x118] sm:$0xff]
        %v1211 = vld [vmem:[%s479 + $0x120] sm:$0xff]
        %v1212 = vld [vmem:[%s479 + $0x128] sm:$0xff]
        %v1213 = vld [vmem:[%s479 + $0x130] sm:$0xff]
        %v1214 = vld [vmem:[%s479 + $0x138] sm:$0xff]
        %v1215 = vld [vmem:[%s479 + $0x140] sm:$0xff]
        %v1216 = vld [vmem:[%s479 + $0x148] sm:$0xff]
        %v1217 = vld [vmem:[%s479 + $0x150] sm:$0xff]
        %v1218 = vld [vmem:[%s479 + $0x158] sm:$0xff]
        %v1219 = vld [vmem:[%s479 + $0x160] sm:$0xff]
        %v1220 = vld [vmem:[%s479 + $0x168] sm:$0xff]
        %v1221 = vld [vmem:[%s479 + $0x170] sm:$0xff]
        %v1222 = vld [vmem:[%s479 + $0x178] sm:$0xff]
        %v1223 = vld [vmem:[%s479 + $0x180] sm:$0xff]
        %v1224 = vld [vmem:[%s479 + $0x188] sm:$0xff]
        %v1225 = vld [vmem:[%s479 + $0x190] sm:$0xff]
        %v1226 = vld [vmem:[%s479 + $0x198] sm:$0xff]
        %v1227 = vld [vmem:[%s479 + $0x1a0] sm:$0xff]
        %v1228 = vld [vmem:[%s479 + $0x1a8] sm:$0xff]
        %v1229 = vld [vmem:[%s479 + $0x1b0] sm:$0xff]
        %v1230 = vld [vmem:[%s479 + $0x1b8] sm:$0xff]
        %v1231 = vld [vmem:[%s479 + $0x1c0] sm:$0xff]
        %v1232 = vld [vmem:[%s479 + $0x1c8] sm:$0xff]
        %v1233 = vld [vmem:[%s479 + $0x1d0] sm:$0xff]
        %v1234 = vld [vmem:[%s479 + $0x1d8] sm:$0xff]
        %v1235 = vld [vmem:[%s479 + $0x1e0] sm:$0xff]
        %v1236 = vld [vmem:[%s479 + $0x1e8] sm:$0xff]
        %v1237 = vld [vmem:[%s479 + $0x1f0] sm:$0xff]
        %v1238 = vld [vmem:[%s479 + $0x1f8] sm:$0xff]
        %v1239 = vld [vmem:[%s488] ss:$4 sm:$0x3]
        %s1240 = scalar_lea.vmem %s488, 1 [#allocation13]
        %v1241 = vld [vmem:[%s1240] ss:$4 sm:$0x3]
        %v1242 = vld [vmem:[#allocation2] sm:$0xff]
        %v1243 = vld [vmem:[#allocation2 + $0x8] sm:$0xff]
        %v1244 = vld [vmem:[#allocation2 + $0x10] sm:$0xff]
        %v1245 = vld [vmem:[#allocation2 + $0x18] sm:$0xff]
        %v1247 = vlaneseq
        %v1248 = vshrl.u32 %v1247, 7
        %v1249 = vsub.s32 0, %v1248
        %v1250 = vrot.slane %v1174, %v1249
        %v1251 = vlaneseq
        %v1252 = vshrl.u32 %v1251, 7
        %v1253 = vsub.s32 1, %v1252
        %v1254 = vrot.slane %v1174, %v1253
        %v1261 = vunpack.c.l.b16 %v1242
        %v1262 = vunpack.c.h.b16 %v1242
        %v1263 = vunpack.c.l.b16 %v1243
        %v1264 = vunpack.c.h.b16 %v1243
        %v1265 = vunpack.c.l.b16 %v1244
        %v1266 = vunpack.c.h.b16 %v1244
        %v1267 = vunpack.c.l.b16 %v1245
        %v1268 = vunpack.c.h.b16 %v1245
        %v1269 = vpack.c.b16 %v1265, %v1261
        %v1270 = vpack.c.b16 %v1266, %v1262
        %v1271 = vpack.c.b16 %v1267, %v1263
        %v1272 = vpack.c.b16 %v1268, %v1264
        %v1341 = vunpack.c.l.b16 %v1175
        %v1342 = vunpack.c.h.b16 %v1175
        %v1343 = vunpack.c.l.b16 %v1176
        %v1344 = vunpack.c.h.b16 %v1176
        %v1345 = vunpack.c.l.b16 %v1177
        %v1346 = vunpack.c.h.b16 %v1177
        %v1347 = vunpack.c.l.b16 %v1178
        %v1348 = vunpack.c.h.b16 %v1178
        %v1349 = vunpack.c.l.b16 %v1179
        %v1350 = vunpack.c.h.b16 %v1179
        %v1351 = vunpack.c.l.b16 %v1180
        %v1352 = vunpack.c.h.b16 %v1180
        %v1353 = vunpack.c.l.b16 %v1181
        %v1354 = vunpack.c.h.b16 %v1181
        %v1355 = vunpack.c.l.b16 %v1182
        %v1356 = vunpack.c.h.b16 %v1182
        %v1357 = vunpack.c.l.b16 %v1183
        %v1358 = vunpack.c.h.b16 %v1183
        %v1359 = vunpack.c.l.b16 %v1184
        %v1360 = vunpack.c.h.b16 %v1184
        %v1361 = vunpack.c.l.b16 %v1185
        %v1362 = vunpack.c.h.b16 %v1185
        %v1363 = vunpack.c.l.b16 %v1186
        %v1364 = vunpack.c.h.b16 %v1186
        %v1365 = vunpack.c.l.b16 %v1187
        %v1366 = vunpack.c.h.b16 %v1187
        %v1367 = vunpack.c.l.b16 %v1188
        %v1368 = vunpack.c.h.b16 %v1188
        %v1369 = vunpack.c.l.b16 %v1189
        %v1370 = vunpack.c.h.b16 %v1189
        %v1371 = vunpack.c.l.b16 %v1190
        %v1372 = vunpack.c.h.b16 %v1190
        %v1373 = vunpack.c.l.b16 %v1191
        %v1374 = vunpack.c.h.b16 %v1191
        %v1375 = vunpack.c.l.b16 %v1192
        %v1376 = vunpack.c.h.b16 %v1192
        %v1377 = vunpack.c.l.b16 %v1193
        %v1378 = vunpack.c.h.b16 %v1193
        %v1379 = vunpack.c.l.b16 %v1194
        %v1380 = vunpack.c.h.b16 %v1194
        %v1381 = vunpack.c.l.b16 %v1195
        %v1382 = vunpack.c.h.b16 %v1195
        %v1383 = vunpack.c.l.b16 %v1196
        %v1384 = vunpack.c.h.b16 %v1196
        %v1385 = vunpack.c.l.b16 %v1197
        %v1386 = vunpack.c.h.b16 %v1197
        %v1387 = vunpack.c.l.b16 %v1198
        %v1388 = vunpack.c.h.b16 %v1198
        %v1389 = vunpack.c.l.b16 %v1199
        %v1390 = vunpack.c.h.b16 %v1199
        %v1391 = vunpack.c.l.b16 %v1200
        %v1392 = vunpack.c.h.b16 %v1200
        %v1393 = vunpack.c.l.b16 %v1201
        %v1394 = vunpack.c.h.b16 %v1201
        %v1395 = vunpack.c.l.b16 %v1202
        %v1396 = vunpack.c.h.b16 %v1202
        %v1397 = vunpack.c.l.b16 %v1203
        %v1398 = vunpack.c.h.b16 %v1203
        %v1399 = vunpack.c.l.b16 %v1204
        %v1400 = vunpack.c.h.b16 %v1204
        %v1401 = vunpack.c.l.b16 %v1205
        %v1402 = vunpack.c.h.b16 %v1205
        %v1403 = vunpack.c.l.b16 %v1206
        %v1404 = vunpack.c.h.b16 %v1206
        %v1405 = vunpack.c.l.b16 %v1207
        %v1406 = vunpack.c.h.b16 %v1207
        %v1407 = vunpack.c.l.b16 %v1208
        %v1408 = vunpack.c.h.b16 %v1208
        %v1409 = vunpack.c.l.b16 %v1209
        %v1410 = vunpack.c.h.b16 %v1209
        %v1411 = vunpack.c.l.b16 %v1210
        %v1412 = vunpack.c.h.b16 %v1210
        %v1413 = vunpack.c.l.b16 %v1211
        %v1414 = vunpack.c.h.b16 %v1211
        %v1415 = vunpack.c.l.b16 %v1212
        %v1416 = vunpack.c.h.b16 %v1212
        %v1417 = vunpack.c.l.b16 %v1213
        %v1418 = vunpack.c.h.b16 %v1213
        %v1419 = vunpack.c.l.b16 %v1214
        %v1420 = vunpack.c.h.b16 %v1214
        %v1421 = vunpack.c.l.b16 %v1215
        %v1422 = vunpack.c.h.b16 %v1215
        %v1423 = vunpack.c.l.b16 %v1216
        %v1424 = vunpack.c.h.b16 %v1216
        %v1425 = vunpack.c.l.b16 %v1217
        %v1426 = vunpack.c.h.b16 %v1217
        %v1427 = vunpack.c.l.b16 %v1218
        %v1428 = vunpack.c.h.b16 %v1218
        %v1429 = vunpack.c.l.b16 %v1219
        %v1430 = vunpack.c.h.b16 %v1219
        %v1431 = vunpack.c.l.b16 %v1220
        %v1432 = vunpack.c.h.b16 %v1220
        %v1433 = vunpack.c.l.b16 %v1221
        %v1434 = vunpack.c.h.b16 %v1221
        %v1435 = vunpack.c.l.b16 %v1222
        %v1436 = vunpack.c.h.b16 %v1222
        %v1437 = vunpack.c.l.b16 %v1223
        %v1438 = vunpack.c.h.b16 %v1223
        %v1439 = vunpack.c.l.b16 %v1224
        %v1440 = vunpack.c.h.b16 %v1224
        %v1441 = vunpack.c.l.b16 %v1225
        %v1442 = vunpack.c.h.b16 %v1225
        %v1443 = vunpack.c.l.b16 %v1226
        %v1444 = vunpack.c.h.b16 %v1226
        %v1445 = vunpack.c.l.b16 %v1227
        %v1446 = vunpack.c.h.b16 %v1227
        %v1447 = vunpack.c.l.b16 %v1228
        %v1448 = vunpack.c.h.b16 %v1228
        %v1449 = vunpack.c.l.b16 %v1229
        %v1450 = vunpack.c.h.b16 %v1229
        %v1451 = vunpack.c.l.b16 %v1230
        %v1452 = vunpack.c.h.b16 %v1230
        %v1453 = vunpack.c.l.b16 %v1231
        %v1454 = vunpack.c.h.b16 %v1231
        %v1455 = vunpack.c.l.b16 %v1232
        %v1456 = vunpack.c.h.b16 %v1232
        %v1457 = vunpack.c.l.b16 %v1233
        %v1458 = vunpack.c.h.b16 %v1233
        %v1459 = vunpack.c.l.b16 %v1234
        %v1460 = vunpack.c.h.b16 %v1234
        %v1461 = vunpack.c.l.b16 %v1235
        %v1462 = vunpack.c.h.b16 %v1235
        %v1463 = vunpack.c.l.b16 %v1236
        %v1464 = vunpack.c.h.b16 %v1236
        %v1465 = vunpack.c.l.b16 %v1237
        %v1466 = vunpack.c.h.b16 %v1237
        %v1467 = vunpack.c.l.b16 %v1238
        %v1468 = vunpack.c.h.b16 %v1238
        %v1469 = vpack.c.b16 %v1343, %v1341
        %v1470 = vpack.c.b16 %v1344, %v1342
        %v1471 = vpack.c.b16 %v1347, %v1345
        %v1472 = vpack.c.b16 %v1348, %v1346
        %v1473 = vpack.c.b16 %v1351, %v1349
        %v1474 = vpack.c.b16 %v1352, %v1350
        %v1475 = vpack.c.b16 %v1355, %v1353
        %v1476 = vpack.c.b16 %v1356, %v1354
        %v1477 = vpack.c.b16 %v1359, %v1357
        %v1478 = vpack.c.b16 %v1360, %v1358
        %v1479 = vpack.c.b16 %v1363, %v1361
        %v1480 = vpack.c.b16 %v1364, %v1362
        %v1481 = vpack.c.b16 %v1367, %v1365
        %v1482 = vpack.c.b16 %v1368, %v1366
        %v1483 = vpack.c.b16 %v1371, %v1369
        %v1484 = vpack.c.b16 %v1372, %v1370
        %v1485 = vpack.c.b16 %v1375, %v1373
        %v1486 = vpack.c.b16 %v1376, %v1374
        %v1487 = vpack.c.b16 %v1379, %v1377
        %v1488 = vpack.c.b16 %v1380, %v1378
        %v1489 = vpack.c.b16 %v1383, %v1381
        %v1490 = vpack.c.b16 %v1384, %v1382
        %v1491 = vpack.c.b16 %v1387, %v1385
        %v1492 = vpack.c.b16 %v1388, %v1386
        %v1493 = vpack.c.b16 %v1391, %v1389
        %v1494 = vpack.c.b16 %v1392, %v1390
        %v1495 = vpack.c.b16 %v1395, %v1393
        %v1496 = vpack.c.b16 %v1396, %v1394
        %v1497 = vpack.c.b16 %v1399, %v1397
        %v1498 = vpack.c.b16 %v1400, %v1398
        %v1499 = vpack.c.b16 %v1403, %v1401
        %v1500 = vpack.c.b16 %v1404, %v1402
        %v1501 = vpack.c.b16 %v1407, %v1405
        %v1502 = vpack.c.b16 %v1408, %v1406
        %v1503 = vpack.c.b16 %v1411, %v1409
        %v1504 = vpack.c.b16 %v1412, %v1410
        %v1505 = vpack.c.b16 %v1415, %v1413
        %v1506 = vpack.c.b16 %v1416, %v1414
        %v1507 = vpack.c.b16 %v1419, %v1417
        %v1508 = vpack.c.b16 %v1420, %v1418
        %v1509 = vpack.c.b16 %v1423, %v1421
        %v1510 = vpack.c.b16 %v1424, %v1422
        %v1511 = vpack.c.b16 %v1427, %v1425
        %v1512 = vpack.c.b16 %v1428, %v1426
        %v1513 = vpack.c.b16 %v1431, %v1429
        %v1514 = vpack.c.b16 %v1432, %v1430
        %v1515 = vpack.c.b16 %v1435, %v1433
        %v1516 = vpack.c.b16 %v1436, %v1434
        %v1517 = vpack.c.b16 %v1439, %v1437
        %v1518 = vpack.c.b16 %v1440, %v1438
        %v1519 = vpack.c.b16 %v1443, %v1441
        %v1520 = vpack.c.b16 %v1444, %v1442
        %v1521 = vpack.c.b16 %v1447, %v1445
        %v1522 = vpack.c.b16 %v1448, %v1446
        %v1523 = vpack.c.b16 %v1451, %v1449
        %v1524 = vpack.c.b16 %v1452, %v1450
        %v1525 = vpack.c.b16 %v1455, %v1453
        %v1526 = vpack.c.b16 %v1456, %v1454
        %v1527 = vpack.c.b16 %v1459, %v1457
        %v1528 = vpack.c.b16 %v1460, %v1458
        %v1529 = vpack.c.b16 %v1463, %v1461
        %v1530 = vpack.c.b16 %v1464, %v1462
        %v1531 = vpack.c.b16 %v1467, %v1465
        %v1532 = vpack.c.b16 %v1468, %v1466
        %1597 = vmatprep.subr.bf16.mxu0 %v1484
        %1598 = vmatpush1.bf16.msra.mxu0 %v1483
        %1599 = vmatprep.subr.bf16.mxu0 %v1482
        %1600 = vmatpush1.bf16.msra.mxu0 %v1481
        %1601 = vmatprep.subr.bf16.mxu0 %v1480
        %1602 = vmatpush1.bf16.msra.mxu0 %v1479
        %1603 = vmatprep.subr.bf16.mxu0 %v1478
        %1604 = vmatpush1.bf16.msra.mxu0 %v1477
        %1605 = vmatprep.subr.bf16.mxu0 %v1476
        %1606 = vmatpush1.bf16.msra.mxu0 %v1475
        %1607 = vmatprep.subr.bf16.mxu0 %v1474
        %1608 = vmatpush1.bf16.msra.mxu0 %v1473
        %1609 = vmatprep.subr.bf16.mxu0 %v1472
        %1610 = vmatpush1.bf16.msra.mxu0 %v1471
        %1611 = vmatprep.subr.bf16.mxu0 %v1470
        %1612 = vmatpush1.bf16.msra.mxu0 %v1469
        %1613 = vmatprep.subr.bf16.mxu0 %v1500
        %1614 = vmatpush2.bf16.msra.mxu0 %v1499
        %1615 = vmatprep.subr.bf16.mxu0 %v1498
        %1616 = vmatpush2.bf16.msra.mxu0 %v1497
        %1617 = vmatprep.subr.bf16.mxu0 %v1496
        %1618 = vmatpush2.bf16.msra.mxu0 %v1495
        %1619 = vmatprep.subr.bf16.mxu0 %v1494
        %1620 = vmatpush2.bf16.msra.mxu0 %v1493
        %1621 = vmatprep.subr.bf16.mxu0 %v1492
        %1622 = vmatpush2.bf16.msra.mxu0 %v1491
        %1623 = vmatprep.subr.bf16.mxu0 %v1490
        %1624 = vmatpush2.bf16.msra.mxu0 %v1489
        %1625 = vmatprep.subr.bf16.mxu0 %v1488
        %1626 = vmatpush2.bf16.msra.mxu0 %v1487
        %1627 = vmatprep.subr.bf16.mxu0 %v1486
        %1628 = vmatpush2.bf16.msra.mxu0 %v1485
        %1629 = vmatprep.mubr.bf16.mxu0 %v1270
        %1630 = vmatmul.mubr.bf16.gmra.mxu0 %v1269
        %v1631 = vpop.f32.mrf.mxu0
        %v1632 = vadd.f32 %v1250, %v1631
        %v1633 = vpop.f32.mrf.mxu0
        %v1634 = vadd.f32 %v1254, %v1633
        %v1635 = vpop.f32.mrf.mxu0
        %v1636 = vadd.f32 %v1250, %v1635
        %v1637 = vpop.f32.mrf.mxu0
        %v1638 = vadd.f32 %v1254, %v1637
        %1639 = vdwg.mxu0
        %1640 = vmatprep.subr.bf16.mxu0 %v1516
        %1641 = vmatpush1.bf16.msra.mxu0 %v1515
        %1642 = vmatprep.subr.bf16.mxu0 %v1514
        %1643 = vmatpush1.bf16.msra.mxu0 %v1513
        %1644 = vmatprep.subr.bf16.mxu0 %v1512
        %1645 = vmatpush1.bf16.msra.mxu0 %v1511
        %1646 = vmatprep.subr.bf16.mxu0 %v1510
        %1647 = vmatpush1.bf16.msra.mxu0 %v1509
        %1648 = vmatprep.subr.bf16.mxu0 %v1508
        %1649 = vmatpush1.bf16.msra.mxu0 %v1507
        %1650 = vmatprep.subr.bf16.mxu0 %v1506
        %1651 = vmatpush1.bf16.msra.mxu0 %v1505
        %1652 = vmatprep.subr.bf16.mxu0 %v1504
        %1653 = vmatpush1.bf16.msra.mxu0 %v1503
        %1654 = vmatprep.subr.bf16.mxu0 %v1502
        %1655 = vmatpush1.bf16.msra.mxu0 %v1501
        %1656 = vmatprep.subr.bf16.mxu0 %v1532
        %1657 = vmatpush2.bf16.msra.mxu0 %v1531
        %1658 = vmatprep.subr.bf16.mxu0 %v1530
        %1659 = vmatpush2.bf16.msra.mxu0 %v1529
        %1660 = vmatprep.subr.bf16.mxu0 %v1528
        %1661 = vmatpush2.bf16.msra.mxu0 %v1527
        %1662 = vmatprep.subr.bf16.mxu0 %v1526
        %1663 = vmatpush2.bf16.msra.mxu0 %v1525
        %1664 = vmatprep.subr.bf16.mxu0 %v1524
        %1665 = vmatpush2.bf16.msra.mxu0 %v1523
        %1666 = vmatprep.subr.bf16.mxu0 %v1522
        %1667 = vmatpush2.bf16.msra.mxu0 %v1521
        %1668 = vmatprep.subr.bf16.mxu0 %v1520
        %1669 = vmatpush2.bf16.msra.mxu0 %v1519
        %1670 = vmatprep.subr.bf16.mxu0 %v1518
        %1671 = vmatpush2.bf16.msra.mxu0 %v1517
        %1672 = vmatprep.mubr.bf16.mxu0 %v1272
        %1673 = vmatmul.mubr.bf16.gmra.mxu0 %v1271
        %v1674 = vpop.f32.mrf.mxu0
        %v1675 = vadd.f32 %v1632, %v1674
        %v1676 = vpop.f32.mrf.mxu0
        %v1677 = vadd.f32 %v1634, %v1676
        %v1678 = vpop.f32.mrf.mxu0
        %v1679 = vadd.f32 %v1636, %v1678
        %v1680 = vpop.f32.mrf.mxu0
        %v1681 = vadd.f32 %v1638, %v1680
        %1682 = vdwg.mxu0
        %v1683 = vlaneseq
        %vm1684 = vcmp.ge.s32.totalorder %v1683, 0
        %vm1685 = vcmp.lt.s32.totalorder %v1683, 256
        %vm1686 = vmand %vm1684, %vm1685
        %1687 = vst.msk [vmem:[%s537] ss:$8 sm:$0x3] %vm1686, %v1239
        %1688 = vst.msk [vmem:[%s537] ss:$8 sm:$0x0] %vm1686, %v1239
        %vm1693 = vcmask 1040384
        %v1694 = vrot.slane %v1675, 7
        %v1695 = vrot.slane %v1677, 7
        %v1696 = vrot.slane %v1679, 7
        %v1697 = vsel %vm1693, %v1694, %v1696
        %v1698 = vrot.slane %v1681, 7
        %v1699 = vsel %vm1693, %v1695, %v1698
        %1706 = vst [vmem:[%s537] sm:$0xfe] %v1694
        %1707 = vst [vmem:[%s537 + $0x8] sm:$0xfe] %v1695
        %1708 = vst [vmem:[%s537 + $0x10] sm:$0xff] %v1697
        %1709 = vst [vmem:[%s537 + $0x18] sm:$0xff] %v1699
        %1710 = vst [vmem:[%s537 + $0x20] sm:$0x1] %v1696
        %1711 = vst [vmem:[%s537 + $0x28] sm:$0x1] %v1698
        %s1712 = scalar_lea.vmem %s537, 33 [#allocation14]
        %1713 = vst.msk [vmem:[%s1712] ss:$8 sm:$0x3] %vm1686, %v1241
        %1714 = vst.msk [vmem:[%s1712] ss:$8 sm:$0x0] %vm1686, %v1241
        %s1715 = sand.u32 %s282, 1
        %s1716 = sand.u32 %s282, 1
        %s1717 = smul.addr %s1716, 48
        %s1718 = scalar_lea.vmem [#allocation14], %s1717
        // Predicated region
        $region96: #{tpu_custom_call.1} parent=55 // pred_check
          %p1719 = pneg %p292
        $region97: #{tpu_custom_call.1} parent=55 // pred_check_branch
          %1721 = sbr.rel (%p1719) target = $region99
        $region98: #{tpu_custom_call.1} parent=55 // pred_region
          %s1722 = smul.u32 %s33, 2
          %s1723 = sadd.s32 %s1722, %s35
          %s1724 = smul.u32 2, %s1723
          %s1725 = smul.addr %s34, 12
          %s1726 = sadd.s32 %s1724, %s1725
          %s1727 = smul.addr %s1726, 8
          %s1728 = scalar_lea.vmem %s9, %s1727
          // Predicated region
          $region100: #{tpu_custom_call.1} parent=98 // pred_check
            _
          $region101: #{tpu_custom_call.1} parent=98 // pred_check_branch
            %1730 = sbr.rel (0) target = $region103
          $region102: #{tpu_custom_call.1} parent=98 // pred_region
            // Predicated region
            $region104: #{tpu_custom_call.1} parent=102 // pred_check
              _
            $region105: #{tpu_custom_call.1} parent=102 // pred_check_branch
              %1732 = sbr.rel (0) target = $region107
            $region106: #{tpu_custom_call.1} parent=102 // pred_region
              loop: start=0, step=1, limit=1
              $region108: #{tpu_custom_call.1} parent=106 // loop_pre_header
                _
              $region109: #{tpu_custom_call.1} parent=106 // loop_header
                %s1734 = sphi 0, %s1738
                %p1735 = scmp.ge.s32.totalorder %s1734, 1
                %s1739 = sphi %s1718, %s1718
                %s1740 = sphi %s1728, %s1728
              $region110: #{tpu_custom_call.1} parent=106 // loop_header_branch
                %1737 = sbr.rel (%p1735) target = $region114
              $region111: #{tpu_custom_call.1} parent=106 // loop_body
                %v1741 = vld [vmem:[%s1739] sm:$0xff]
                %1742 = vst [vmem:[%s1740] sm:$0xff] %v1741
                %v1743 = vld [vmem:[%s1739 + $0x8] sm:$0xff]
                %1744 = vst [vmem:[%s1740 + $0x8] sm:$0xff] %v1743
                %v1745 = vld [vmem:[%s1739 + $0x10] sm:$0xff]
                %1746 = vst [vmem:[%s1740 + $0x20] sm:$0xff] %v1745
                %v1747 = vld [vmem:[%s1739 + $0x18] sm:$0xff]
                %1748 = vst [vmem:[%s1740 + $0x28] sm:$0xff] %v1747
                %v1749 = vld [vmem:[%s1739 + $0x20] sm:$0xff]
                %1750 = vst [vmem:[%s1740 + $0x40] sm:$0xff] %v1749
                %v1751 = vld [vmem:[%s1739 + $0x28] sm:$0xff]
                %1752 = vst [vmem:[%s1740 + $0x48] sm:$0xff] %v1751
              $region112: #{tpu_custom_call.1} parent=106 // loop_footer
                %s1738 = sadd.s32 1, %s1734
              $region113: #{tpu_custom_call.1} parent=106 // loop_footer_branch
                %1733 = sbr.rel target = $region109
              $region114: #{tpu_custom_call.1} parent=106 // loop_exit
                _
            $region107: #{tpu_custom_call.1} parent=102 // pred_fallthru
              _
            // Predicated region
            $region115: #{tpu_custom_call.1} parent=102 // pred_check
              _
            $region116: #{tpu_custom_call.1} parent=102 // pred_check_branch
              %1754 = sbr.rel target = $region118
            $region117: #{tpu_custom_call.1} parent=102 // pred_region
              _
            $region118: #{tpu_custom_call.1} parent=102 // pred_fallthru
              _
          $region103: #{tpu_custom_call.1} parent=98 // pred_fallthru
            _
          %1755 = vnop
        $region99: #{tpu_custom_call.1} parent=55 // pred_fallthru
          _
      $region56: #{tpu_custom_call.1} parent=5 // pred_fallthru
        _
      %p1756 = scmp.le.s32.totalorder 2, %s23
      // Predicated region
      $region119: #{tpu_custom_call.1} parent=5 // pred_check
        %p1757 = pneg %p1756
      $region120: #{tpu_custom_call.1} parent=5 // pred_check_branch
        %1759 = sbr.rel (%p1757) target = $region122
      $region121: #{tpu_custom_call.1} parent=5 // pred_region
        %s1760 = ssub.s32 %s23, 2
        // Predicated region
        $region123: #{tpu_custom_call.1} parent=121 // pred_check
          %p1761 = pneg %p298
        $region124: #{tpu_custom_call.1} parent=121 // pred_check_branch
          %1763 = sbr.rel (%p1761) target = $region126
        $region125: #{tpu_custom_call.1} parent=121 // pred_region
          %s1764 = sand.u32 %s283, 1
          %s1765 = sand.u32 %s283, 1
          %s1766 = smul.addr %s1765, 48
          %s1767 = scalar_lea.vmem [#allocation14], %s1766
        $region126: #{tpu_custom_call.1} parent=121 // pred_fallthru
          _
      $region122: #{tpu_custom_call.1} parent=5 // pred_fallthru
        _
    $region6: #{tpu_custom_call.1} parent=1 // loop_footer
      %s27 = sadd.s32 1, %s23
    $region7: #{tpu_custom_call.1} parent=1 // loop_footer_branch
      %22 = sbr.rel target = $region3
    $region8: #{tpu_custom_call.1} parent=1 // loop_exit
      _
    %1768 = vsyncpa [#allocation4], 1
    %s1769 = scalar_lea.sflag [#allocation4], 1
    %1770 = vsyncpa %s1769, 1
    %1771 = vsyncpa [#allocation6], 1
    %1772 = vsyncpa [#allocation9], 1
    %1773 = vsyncpa [#allocation12], 1
    %s1774 = scalar_lea.sflag [#allocation12], 1
    %1775 = vsyncpa %s1774, 1

// kernel: tpu_custom_call.1
$region0: #{tpu_custom_call.1}
  #allocation0 [shape = 'u32[]', space=smem, size = 0x4, offset = 0x4, fixed_abs, tag = 'smem constant byte address 0x4 - core index']
  #allocation1 [shape = 'u32[144,128]{1,0:T(1,128)}', space=vmem, size = 0x12000, scoped, tag = 'internal scratch']
  #allocation2 [shape = 'bf16[1,16,512]{2,1,0:T(8,128)(2,1)}', space=vmem, size = 0x4000, scoped, tag = 'scratch operand']
  %s0 = inlined_call_operand.hbm [shape: bf16[4,2,16,256], index: 0, kind: input, shape index: {}]
  %s1 = inlined_call_operand.hbm [shape: bf16[16,256], index: 1, kind: input, shape index: {}]
  %s2 = inlined_call_operand.hbm [shape: f32[1,256], index: 2, kind: input, shape index: {}]
  %s3 = inlined_call_operand.hbm [shape: f32[1,256], index: 3, kind: input, shape index: {}]
  %s4 = inlined_call_operand.hbm [shape: bf16[256,512], index: 4, kind: input, shape index: {}]
  %s5 = inlined_call_operand.vmem [shape: f32[1,512], index: 5, kind: input, shape index: {}]
  %s6 = inlined_call_operand.hbm [shape: bf16[512,512], index: 6, kind: input, shape index: {}]
  %s7 = inlined_call_operand.vmem [shape: f32[1,512], index: 7, kind: input, shape index: {}]
  %s8 = inlined_call_operand.hbm [shape: f32[3,512], index: 8, kind: input, shape index: {}]
  %s9 = inlined_call_operand.vmem [shape: f32[2,18,512], index: 9, kind: output, shape index: {}]
  %s10 = sld [smem:[#allocation0]]
  $region127: #{tpu_custom_call.1} parent=0
    _
  %s12 = ssub.s32 1, %s10
  %s13 = scalar_select 0, %s12, %s10
  $region1: #{tpu_custom_call.1} parent=0
    #allocation3 [shape = 'u8[16384]{0}', space=vmem, size = 0x4000, scoped, tag = 'input window, operand 0']
    #allocation4 [shape = 's32[2]{0}', space=sflag, size = 0x8, scoped, tag = 'scoped memory for tpu_custom_call.1']
    #allocation5 [shape = 'u8[8192]{0}', space=vmem, size = 0x2000, scoped, tag = 'input window, operand 1, single buffered']
    #allocation6 [shape = 's32[1]{0}', space=sflag, size = 0x4, scoped, tag = 'scoped memory for tpu_custom_call.1']
    #allocation7 [shape = 'u8[1024]{0}', space=vmem, size = 0x400, scoped, tag = 'input window, operand 2, single buffered']
    #allocation8 [shape = 'u8[1024]{0}', space=vmem, size = 0x400, scoped, tag = 'input window, operand 3, single buffered']
    #allocation9 [shape = 's32[1]{0}', space=sflag, size = 0x4, scoped, tag = 'scoped memory for tpu_custom_call.1']
    #allocation10 [shape = 'u8[262144]{0}', space=vmem, size = 0x40000, scoped, tag = 'input window, operand 4, single buffered']
    #allocation11 [shape = 'u8[524288]{0}', space=vmem, size = 0x80000, scoped, tag = 'input window, operand 6']
    #allocation12 [shape = 's32[2]{0}', space=sflag, size = 0x8, scoped, tag = 'scoped memory for tpu_custom_call.1']
    #allocation13 [shape = 'u8[8192]{0}', space=vmem, size = 0x2000, scoped, tag = 'input window, operand 8']
    #allocation14 [shape = 'u8[49152]{0}', space=vmem, size = 0xc000, scoped, tag = 'output window, operand 0']
    %14 = vsyncpa [#allocation4], 0
    %s15 = scalar_lea.sflag [#allocation4], 1
    %16 = vsyncpa %s15, 0
    %17 = vsyncpa [#allocation6], 0
    %18 = vsyncpa [#allocation9], 0
    %19 = vsyncpa [#allocation12], 0
    %s20 = scalar_lea.sflag [#allocation12], 1
    %21 = vsyncpa %s20, 0
    loop: start=0, step=1, limit=6
    $region2: #{tpu_custom_call.1} parent=1 // loop_pre_header
      _
    $region3: #{tpu_custom_call.1} parent=1 // loop_header
      %s23 = sphi 0, %s27
      %p24 = scmp.ge.s32.totalorder %s23, 6
      %s30 = sphi 0, %s49
      %s31 = sphi 0, %s45
      %s32 = sphi 0, %s41
      %s33 = sphi 0, %s30
      %s34 = sphi 0, %s31
      %s35 = sphi 0, %s32
      %s36 = sphi 0, %s33
      %s37 = sphi 0, %s34
      %s38 = sphi 0, %s35
      %s52 = sphi 0, %s54
      %s55 = sphi 0, %s52
      %s56 = sphi 0, %s55
      %s72 = sphi 0, %s56
      %s76 = sphi 0, %s76
      %s78 = sphi 0, %s76
      %s79 = sphi 0, %s78
      %s93 = sphi 0, %s79
      %s97 = sphi 0, %s97
      %s99 = sphi 0, %s97
      %s100 = sphi 0, %s99
      %s114 = sphi 0, %s100
      %s118 = sphi 0, %s118
      %s120 = sphi 0, %s118
      %s121 = sphi 0, %s120
      %s135 = sphi 0, %s121
      %s139 = sphi 0, %s139
      %s141 = sphi 0, %s139
      %s142 = sphi 0, %s141
      %s156 = sphi 0, %s142
      %s160 = sphi 0, %s160
      %s162 = sphi 0, %s160
      %s163 = sphi 0, %s162
      %s177 = sphi 0, %s163
      %s187 = sphi 0, %s189
      %s190 = sphi 0, %s187
      %s191 = sphi 0, %s190
      %s207 = sphi 0, %s191
      %s217 = sphi 0, %s219
      %s220 = sphi 0, %s217
      %s221 = sphi 0, %s220
      %s237 = sphi 0, %s221
      %s247 = sphi 0, %s249
      %s250 = sphi 0, %s247
      %s251 = sphi 0, %s250
      %s267 = sphi 0, %s251
      %s279 = sphi 0, %s281
      %s282 = sphi 0, %s279
      %s283 = sphi 0, %s282
      %s299 = sphi 0, %s283
    $region4: #{tpu_custom_call.1} parent=1 // loop_header_branch
      %26 = sbr.rel (%p24) target = $region8
    $region5: #{tpu_custom_call.1} parent=1 // loop_body
      %s28 = ssub.s32 %s23, 1
      %s29 = ssub.s32 %s23, 2
      %s39 = sadd.s32 1, %s32
      %p40 = scmp.ge.s32.totalorder %s39, 2
      %s41 = scalar_select %p40, 0, %s39
      %s42 = sadd.s32 1, %s31
      %s43 = scalar_select %p40, %s42, %s31
      %p44 = scmp.ge.s32.totalorder %s43, 2
      %s45 = scalar_select %p44, 0, %s43
      %s46 = sadd.s32 1, %s30
      %s47 = scalar_select %p44, %s46, %s30
      %p48 = scmp.ge.s32.totalorder %s47, 1
      %s49 = scalar_select %p48, 0, %s47
      %s50 = ssub.s32 %s31, %s45
      %p51 = scmp.eq.s32.totalorder %s50, 0
      %s53 = sadd.s32 %s52, 1
      %s54 = scalar_select %p51, %s52, %s53
      %p57 = pneg %p51
      %p58 = scmp.eq.s32.totalorder %s23, 3
      %p59 = por %p57, %p58
      %p60 = scmp.ne.s32.totalorder %s52, %s55
      %p61 = scmp.eq.s32.totalorder %s23, 0
      %p62 = por %p60, %p61
      %p63 = scmp.ne.s32.totalorder %s52, %s55
      %p64 = scmp.eq.s32.totalorder %s28, 3
      %p65 = por %p63, %p64
      %p66 = scmp.ne.s32.totalorder %s55, %s56
      %p67 = scmp.eq.s32.totalorder %s28, 0
      %p68 = por %p66, %p67
      %p69 = scmp.ne.s32.totalorder %s55, %s56
      %p70 = scmp.eq.s32.totalorder %s29, 3
      %p71 = por %p69, %p70
      %p73 = scmp.ne.s32.totalorder %s56, %s72
      %p74 = scmp.eq.s32.totalorder %s29, 0
      %p75 = por %p73, %p74
      %s77 = sadd.s32 %s76, 1
      %p80 = scmp.eq.s32.totalorder %s23, 3
      %p81 = scmp.ne.s32.totalorder %s76, %s78
      %p82 = scmp.eq.s32.totalorder %s23, 0
      %p83 = por %p81, %p82
      %p84 = scmp.ne.s32.totalorder %s76, %s78
      %p85 = scmp.eq.s32.totalorder %s28, 3
      %p86 = por %p84, %p85
      %p87 = scmp.ne.s32.totalorder %s78, %s79
      %p88 = scmp.eq.s32.totalorder %s28, 0
      %p89 = por %p87, %p88
      %p90 = scmp.ne.s32.totalorder %s78, %s79
      %p91 = scmp.eq.s32.totalorder %s29, 3
      %p92 = por %p90, %p91
      %p94 = scmp.ne.s32.totalorder %s79, %s93
      %p95 = scmp.eq.s32.totalorder %s29, 0
      %p96 = por %p94, %p95
      %s98 = sadd.s32 %s97, 1
      %p101 = scmp.eq.s32.totalorder %s23, 3
      %p102 = scmp.ne.s32.totalorder %s97, %s99
      %p103 = scmp.eq.s32.totalorder %s23, 0
      %p104 = por %p102, %p103
      %p105 = scmp.ne.s32.totalorder %s97, %s99
      %p106 = scmp.eq.s32.totalorder %s28, 3
      %p107 = por %p105, %p106
      %p108 = scmp.ne.s32.totalorder %s99, %s100
      %p109 = scmp.eq.s32.totalorder %s28, 0
      %p110 = por %p108, %p109
      %p111 = scmp.ne.s32.totalorder %s99, %s100
      %p112 = scmp.eq.s32.totalorder %s29, 3
      %p113 = por %p111, %p112
      %p115 = scmp.ne.s32.totalorder %s100, %s114
      %p116 = scmp.eq.s32.totalorder %s29, 0
      %p117 = por %p115, %p116
      %s119 = sadd.s32 %s118, 1
      %p122 = scmp.eq.s32.totalorder %s23, 3
      %p123 = scmp.ne.s32.totalorder %s118, %s120
      %p124 = scmp.eq.s32.totalorder %s23, 0
      %p125 = por %p123, %p124
      %p126 = scmp.ne.s32.totalorder %s118, %s120
      %p127 = scmp.eq.s32.totalorder %s28, 3
      %p128 = por %p126, %p127
      %p129 = scmp.ne.s32.totalorder %s120, %s121
      %p130 = scmp.eq.s32.totalorder %s28, 0
      %p131 = por %p129, %p130
      %p132 = scmp.ne.s32.totalorder %s120, %s121
      %p133 = scmp.eq.s32.totalorder %s29, 3
      %p134 = por %p132, %p133
      %p136 = scmp.ne.s32.totalorder %s121, %s135
      %p137 = scmp.eq.s32.totalorder %s29, 0
      %p138 = por %p136, %p137
      %s140 = sadd.s32 %s139, 1
      %p143 = scmp.eq.s32.totalorder %s23, 3
      %p144 = scmp.ne.s32.totalorder %s139, %s141
      %p145 = scmp.eq.s32.totalorder %s23, 0
      %p146 = por %p144, %p145
      %p147 = scmp.ne.s32.totalorder %s139, %s141
      %p148 = scmp.eq.s32.totalorder %s28, 3
      %p149 = por %p147, %p148
      %p150 = scmp.ne.s32.totalorder %s141, %s142
      %p151 = scmp.eq.s32.totalorder %s28, 0
      %p152 = por %p150, %p151
      %p153 = scmp.ne.s32.totalorder %s141, %s142
      %p154 = scmp.eq.s32.totalorder %s29, 3
      %p155 = por %p153, %p154
      %p157 = scmp.ne.s32.totalorder %s142, %s156
      %p158 = scmp.eq.s32.totalorder %s29, 0
      %p159 = por %p157, %p158
      %s161 = sadd.s32 %s160, 1
      %p164 = scmp.eq.s32.totalorder %s23, 3
      %p165 = scmp.ne.s32.totalorder %s160, %s162
      %p166 = scmp.eq.s32.totalorder %s23, 0
      %p167 = por %p165, %p166
      %p168 = scmp.ne.s32.totalorder %s160, %s162
      %p169 = scmp.eq.s32.totalorder %s28, 3
      %p170 = por %p168, %p169
      %p171 = scmp.ne.s32.totalorder %s162, %s163
      %p172 = scmp.eq.s32.totalorder %s28, 0
      %p173 = por %p171, %p172
      %p174 = scmp.ne.s32.totalorder %s162, %s163
      %p175 = scmp.eq.s32.totalorder %s29, 3
      %p176 = por %p174, %p175
      %p178 = scmp.ne.s32.totalorder %s163, %s177
      %p179 = scmp.eq.s32.totalorder %s29, 0
      %p180 = por %p178, %p179
      %s181 = smul.u32 %s30, 2
      %s182 = sadd.s32 %s181, %s32
      %s183 = smul.u32 %s49, 2
      %s184 = sadd.s32 %s183, %s41
      %s185 = ssub.s32 %s182, %s184
      %p186 = scmp.eq.s32.totalorder %s185, 0
      %s188 = sadd.s32 %s187, 1
      %s189 = scalar_select %p186, %s187, %s188
      %p192 = pneg %p186
      %p193 = scmp.eq.s32.totalorder %s23, 3
      %p194 = por %p192, %p193
      %p195 = scmp.ne.s32.totalorder %s187, %s190
      %p196 = scmp.eq.s32.totalorder %s23, 0
      %p197 = por %p195, %p196
      %p198 = scmp.ne.s32.totalorder %s187, %s190
      %p199 = scmp.eq.s32.totalorder %s28, 3
      %p200 = por %p198, %p199
      %p201 = scmp.ne.s32.totalorder %s190, %s191
      %p202 = scmp.eq.s32.totalorder %s28, 0
      %p203 = por %p201, %p202
      %p204 = scmp.ne.s32.totalorder %s190, %s191
      %p205 = scmp.eq.s32.totalorder %s29, 3
      %p206 = por %p204, %p205
      %p208 = scmp.ne.s32.totalorder %s191, %s207
      %p209 = scmp.eq.s32.totalorder %s29, 0
      %p210 = por %p208, %p209
      %s211 = smul.u32 %s30, 2
      %s212 = sadd.s32 %s211, %s32
      %s213 = smul.u32 %s49, 2
      %s214 = sadd.s32 %s213, %s41
      %s215 = ssub.s32 %s212, %s214
      %p216 = scmp.eq.s32.totalorder %s215, 0
      %s218 = sadd.s32 %s217, 1
      %s219 = scalar_select %p216, %s217, %s218
      %p222 = pneg %p216
      %p223 = scmp.eq.s32.totalorder %s23, 3
      %p224 = por %p222, %p223
      %p225 = scmp.ne.s32.totalorder %s217, %s220
      %p226 = scmp.eq.s32.totalorder %s23, 0
      %p227 = por %p225, %p226
      %p228 = scmp.ne.s32.totalorder %s217, %s220
      %p229 = scmp.eq.s32.totalorder %s28, 3
      %p230 = por %p228, %p229
      %p231 = scmp.ne.s32.totalorder %s220, %s221
      %p232 = scmp.eq.s32.totalorder %s28, 0
      %p233 = por %p231, %p232
      %p234 = scmp.ne.s32.totalorder %s220, %s221
      %p235 = scmp.eq.s32.totalorder %s29, 3
      %p236 = por %p234, %p235
      %p238 = scmp.ne.s32.totalorder %s221, %s237
      %p239 = scmp.eq.s32.totalorder %s29, 0
      %p240 = por %p238, %p239
      %s241 = smul.u32 %s30, 2
      %s242 = sadd.s32 %s241, %s32
      %s243 = smul.u32 %s49, 2
      %s244 = sadd.s32 %s243, %s41
      %s245 = ssub.s32 %s242, %s244
      %p246 = scmp.eq.s32.totalorder %s245, 0
      %s248 = sadd.s32 %s247, 1
      %s249 = scalar_select %p246, %s247, %s248
      %p252 = pneg %p246
      %p253 = scmp.eq.s32.totalorder %s23, 3
      %p254 = por %p252, %p253
      %p255 = scmp.ne.s32.totalorder %s247, %s250
      %p256 = scmp.eq.s32.totalorder %s23, 0
      %p257 = por %p255, %p256
      %p258 = scmp.ne.s32.totalorder %s247, %s250
      %p259 = scmp.eq.s32.totalorder %s28, 3
      %p260 = por %p258, %p259
      %p261 = scmp.ne.s32.totalorder %s250, %s251
      %p262 = scmp.eq.s32.totalorder %s28, 0
      %p263 = por %p261, %p262
      %p264 = scmp.ne.s32.totalorder %s250, %s251
      %p265 = scmp.eq.s32.totalorder %s29, 3
      %p266 = por %p264, %p265
      %p268 = scmp.ne.s32.totalorder %s251, %s267
      %p269 = scmp.eq.s32.totalorder %s29, 0
      %p270 = por %p268, %p269
      %s271 = smul.u32 %s30, 2
      %s272 = sadd.s32 %s271, %s32
      %s273 = smul.u32 %s49, 2
      %s274 = sadd.s32 %s273, %s41
      %s275 = ssub.s32 %s31, %s45
      %s276 = ssub.s32 %s272, %s274
      %s277 = sor.u32 %s275, %s276
      %p278 = scmp.eq.s32.totalorder %s277, 0
      %s280 = sadd.s32 %s279, 1
      %s281 = scalar_select %p278, %s279, %s280
      %p284 = pneg %p278
      %p285 = scmp.eq.s32.totalorder %s23, 3
      %p286 = por %p284, %p285
      %p287 = scmp.ne.s32.totalorder %s279, %s282
      %p288 = scmp.eq.s32.totalorder %s23, 0
      %p289 = por %p287, %p288
      %p290 = scmp.ne.s32.totalorder %s279, %s282
      %p291 = scmp.eq.s32.totalorder %s28, 3
      %p292 = por %p290, %p291
      %p293 = scmp.ne.s32.totalorder %s282, %s283
      %p294 = scmp.eq.s32.totalorder %s28, 0
      %p295 = por %p293, %p294
      %p296 = scmp.ne.s32.totalorder %s282, %s283
      %p297 = scmp.eq.s32.totalorder %s29, 3
      %p298 = por %p296, %p297
      %p300 = scmp.ne.s32.totalorder %s283, %s299
      %p301 = scmp.eq.s32.totalorder %s29, 0
      %p302 = por %p300, %p301
      %p303 = scmp.le.s32.totalorder 1, %s23
      %p304 = scmp.lt.s32.totalorder %s23, 5
      %p305 = pnand %p303, %p304
      %p306 = pneg %p305
      // Predicated region
      $region9: #{tpu_custom_call.1} parent=5 // pred_check
        _
      $region10: #{tpu_custom_call.1} parent=5 // pred_check_branch
        %308 = sbr.rel (%p305) target = $region12
      $region11: #{tpu_custom_call.1} parent=5 // pred_region
        %s309 = ssub.s32 %s23, 1
        // Predicated region
        $region13: #{tpu_custom_call.1} parent=11 // pred_check
          %p310 = pneg %p89
        $region14: #{tpu_custom_call.1} parent=11 // pred_check_branch
          %312 = sbr.rel (%p310) target = $region16
        $region15: #{tpu_custom_call.1} parent=11 // pred_region
          %s314 = ssub.s32 256, 256
          %315 = vsyncadd [#allocation6], %s314
          %s316 = sshll.u32 [#allocation5], 4
          %s317 = int_to_ptr.vmem [resolvable:$true] %s316
          %322 = dma.hbm_to_vmem [thread:$0]  %s1, 256, %s317, [#allocation6], 128, 128, 8
        $region16: #{tpu_custom_call.1} parent=11 // pred_fallthru
          _
        // Predicated region
        $region17: #{tpu_custom_call.1} parent=11 // pred_check
          %p323 = pneg %p110
        $region18: #{tpu_custom_call.1} parent=11 // pred_check_branch
          %325 = sbr.rel (%p323) target = $region20
        $region19: #{tpu_custom_call.1} parent=11 // pred_region
          %s327 = ssub.s32 32, 32
          %328 = vsyncadd [#allocation6], %s327
          %s330 = sshll.u32 [#allocation7], 4
          %s331 = int_to_ptr.vmem [resolvable:$true] %s330
          %333 = dma.hbm_to_vmem [thread:$0]  %s2, 32, %s331, [#allocation6]
        $region20: #{tpu_custom_call.1} parent=11 // pred_fallthru
          _
        // Predicated region
        $region21: #{tpu_custom_call.1} parent=11 // pred_check
          %p334 = pneg %p131
        $region22: #{tpu_custom_call.1} parent=11 // pred_check_branch
          %336 = sbr.rel (%p334) target = $region24
        $region23: #{tpu_custom_call.1} parent=11 // pred_region
          %s338 = ssub.s32 32, 32
          %339 = vsyncadd [#allocation9], %s338
          %s341 = sshll.u32 [#allocation8], 4
          %s342 = int_to_ptr.vmem [resolvable:$true] %s341
          %344 = dma.hbm_to_vmem [thread:$0]  %s3, 32, %s342, [#allocation9]
        $region24: #{tpu_custom_call.1} parent=11 // pred_fallthru
          _
        // Predicated region
        $region25: #{tpu_custom_call.1} parent=11 // pred_check
          %p345 = pneg %p152
        $region26: #{tpu_custom_call.1} parent=11 // pred_check_branch
          %347 = sbr.rel (%p345) target = $region28
        $region27: #{tpu_custom_call.1} parent=11 // pred_region
          %s349 = ssub.s32 8192, 8192
          %350 = vsyncadd [#allocation9], %s349
          %s351 = sshll.u32 [#allocation10], 4
          %s352 = int_to_ptr.vmem [resolvable:$true] %s351
          %357 = dma.hbm_to_vmem [thread:$0]  %s4, 8192, %s352, [#allocation9], 256, 256, 16
        $region28: #{tpu_custom_call.1} parent=11 // pred_fallthru
          _
        // Predicated region
        $region29: #{tpu_custom_call.1} parent=11 // pred_check
          %p358 = pneg %p173
        $region30: #{tpu_custom_call.1} parent=11 // pred_check_branch
          %360 = sbr.rel (%p358) target = $region32
        $region31: #{tpu_custom_call.1} parent=11 // pred_region
          _
        $region32: #{tpu_custom_call.1} parent=11 // pred_fallthru
          _
      $region12: #{tpu_custom_call.1} parent=5 // pred_fallthru
        _
      %p361 = scmp.lt.s32.totalorder %s23, 4
      // Predicated region
      $region33: #{tpu_custom_call.1} parent=5 // pred_check
        %p362 = pneg %p361
      $region34: #{tpu_custom_call.1} parent=5 // pred_check_branch
        %364 = sbr.rel (%p362) target = $region36
      $region35: #{tpu_custom_call.1} parent=5 // pred_region
        // Predicated region
        $region37: #{tpu_custom_call.1} parent=35 // pred_check
          %p365 = pneg %p62
        $region38: #{tpu_custom_call.1} parent=35 // pred_check_branch
          %367 = sbr.rel (%p365) target = $region40
        $region39: #{tpu_custom_call.1} parent=35 // pred_region
          %s368 = sand.u32 %s52, 1
          %s369 = scalar_lea.sflag [#allocation4], %s368
          %s370 = sand.u32 %s52, 1
          %s371 = smul.addr %s370, 16
          %s372 = scalar_lea.vmem [#allocation3], %s371
          %s374 = ssub.s32 256, 256
          %375 = vsyncadd %s369, %s374
          %s376 = smul.addr %s31, 4
          %s377 = sadd.s32 %s376, 16
          %s378 = smul.addr %s377, 64
          %s379 = scalar_lea.hbm %s0, %s378
          %s380 = sshll.u32 %s372, 4
          %s381 = int_to_ptr.vmem [resolvable:$true] %s380
          %386 = dma.hbm_to_vmem [thread:$0]  %s379, 256, %s381, %s369, 128, 128, 8
        $region40: #{tpu_custom_call.1} parent=35 // pred_fallthru
          _
        // Predicated region
        $region41: #{tpu_custom_call.1} parent=35 // pred_check
          %p387 = pneg %p197
        $region42: #{tpu_custom_call.1} parent=35 // pred_check_branch
          %389 = sbr.rel (%p387) target = $region44
        $region43: #{tpu_custom_call.1} parent=35 // pred_region
          %s390 = sand.u32 %s23, 1
          %s391 = scalar_lea.sflag [#allocation12], %s390
          %s392 = sand.u32 %s187, 1
          %s393 = smul.addr %s392, 512
          %s394 = scalar_lea.vmem [#allocation11], %s393
          %s395 = smul.u32 %s30, 2
          %s396 = sadd.s32 %s395, %s32
          %s397 = smul.u32 2, %s396
          %s399 = ssub.s32 8192, 8192
          %400 = vsyncadd %s391, %s399
          %s401 = smul.addr %s397, 64
          %s402 = scalar_lea.hbm %s6, %s401
          %s403 = sshll.u32 %s394, 4
          %s404 = int_to_ptr.vmem [resolvable:$true] %s403
          %409 = dma.hbm_to_vmem [thread:$0]  %s402, 8192, %s404, %s391, 256, 128, 8
        $region44: #{tpu_custom_call.1} parent=35 // pred_fallthru
          _
        // Predicated region
        $region45: #{tpu_custom_call.1} parent=35 // pred_check
          %p410 = pneg %p227
        $region46: #{tpu_custom_call.1} parent=35 // pred_check_branch
          %412 = sbr.rel (%p410) target = $region48
        $region47: #{tpu_custom_call.1} parent=35 // pred_region
          %s413 = smul.u32 %s30, 2
          %s414 = sadd.s32 %s413, %s32
          %s415 = smul.u32 2, %s414
          %p416 = scmp.lt.s32.totalorder %s415, 3
          %s417 = scalar_select %p416, %s415, 3
          %s418 = scalar_lea.vmem %s7, %s417
          %s419 = smul.u32 %s30, 2
          %s420 = sadd.s32 %s419, %s32
          %s421 = smul.u32 2, %s420
        $region48: #{tpu_custom_call.1} parent=35 // pred_fallthru
          _
        // Predicated region
        $region49: #{tpu_custom_call.1} parent=35 // pred_check
          %p422 = pneg %p257
        $region50: #{tpu_custom_call.1} parent=35 // pred_check_branch
          %424 = sbr.rel (%p422) target = $region52
        $region51: #{tpu_custom_call.1} parent=35 // pred_region
          %s425 = sand.u32 %s23, 1
          %s426 = scalar_lea.sflag [#allocation12], %s425
          %s427 = sand.u32 %s247, 1
          %s428 = smul.addr %s427, 8
          %s429 = scalar_lea.vmem [#allocation13], %s428
          %s430 = smul.u32 %s30, 2
          %s431 = sadd.s32 %s430, %s32
          %s432 = smul.u32 2, %s431
          %s434 = ssub.s32 128, 128
          %435 = vsyncadd %s426, %s434
          %s436 = smul.addr %s432, 64
          %s437 = scalar_lea.hbm %s8, %s436
          %s439 = sshll.u32 %s429, 4
          %s440 = int_to_ptr.vmem [resolvable:$true] %s439
          %442 = dma.hbm_to_vmem [thread:$0]  %s437, 128, %s440, %s426
        $region52: #{tpu_custom_call.1} parent=35 // pred_fallthru
          _
      $region36: #{tpu_custom_call.1} parent=5 // pred_fallthru
        _
      %p443 = scmp.le.s32.totalorder 1, %s23
      %p444 = scmp.lt.s32.totalorder %s23, 5
      %p445 = pnand %p443, %p444
      %p446 = pneg %p445
      // Predicated region
      $region53: #{tpu_custom_call.1} parent=5 // pred_check
        _
      $region54: #{tpu_custom_call.1} parent=5 // pred_check_branch
        %448 = sbr.rel (%p445) target = $region56
      $region55: #{tpu_custom_call.1} parent=5 // pred_region
        %s449 = ssub.s32 %s23, 1
        %s450 = sand.u32 %s55, 1
        %s451 = scalar_lea.sflag [#allocation4], %s450
        %s452 = sand.u32 %s55, 1
        %s453 = smul.addr %s452, 16
        %s454 = scalar_lea.vmem [#allocation3], %s453
        // Predicated region
        $region57: #{tpu_custom_call.1} parent=55 // pred_check
          %p455 = pneg %p68
        $region58: #{tpu_custom_call.1} parent=55 // pred_check_branch
          %457 = sbr.rel (%p455) target = $region60
        $region59: #{tpu_custom_call.1} parent=55 // pred_region
          %458 = dma.done %s451, 256
        $region60: #{tpu_custom_call.1} parent=55 // pred_fallthru
          _
        // Predicated region
        $region61: #{tpu_custom_call.1} parent=55 // pred_check
          %p459 = pneg %p89
        $region62: #{tpu_custom_call.1} parent=55 // pred_check_branch
          %461 = sbr.rel (%p459) target = $region64
        $region63: #{tpu_custom_call.1} parent=55 // pred_region
          %462 = dma.done [#allocation6], 256
        $region64: #{tpu_custom_call.1} parent=55 // pred_fallthru
          _
        // Predicated region
        $region65: #{tpu_custom_call.1} parent=55 // pred_check
          %p463 = pneg %p110
        $region66: #{tpu_custom_call.1} parent=55 // pred_check_branch
          %465 = sbr.rel (%p463) target = $region68
        $region67: #{tpu_custom_call.1} parent=55 // pred_region
          %466 = dma.done [#allocation6], 32
        $region68: #{tpu_custom_call.1} parent=55 // pred_fallthru
          _
        // Predicated region
        $region69: #{tpu_custom_call.1} parent=55 // pred_check
          %p467 = pneg %p131
        $region70: #{tpu_custom_call.1} parent=55 // pred_check_branch
          %469 = sbr.rel (%p467) target = $region72
        $region71: #{tpu_custom_call.1} parent=55 // pred_region
          %470 = dma.done [#allocation9], 32
        $region72: #{tpu_custom_call.1} parent=55 // pred_fallthru
          _
        // Predicated region
        $region73: #{tpu_custom_call.1} parent=55 // pred_check
          %p471 = pneg %p152
        $region74: #{tpu_custom_call.1} parent=55 // pred_check_branch
          %473 = sbr.rel (%p471) target = $region76
        $region75: #{tpu_custom_call.1} parent=55 // pred_region
          %474 = dma.done [#allocation9], 8192
        $region76: #{tpu_custom_call.1} parent=55 // pred_fallthru
          _
        %s475 = sand.u32 %s28, 1
        %s476 = scalar_lea.sflag [#allocation12], %s475
        %s477 = sand.u32 %s190, 1
        %s478 = smul.addr %s477, 512
        %s479 = scalar_lea.vmem [#allocation11], %s478
        // Predicated region
        $region77: #{tpu_custom_call.1} parent=55 // pred_check
          %p480 = pneg %p203
        $region78: #{tpu_custom_call.1} parent=55 // pred_check_branch
          %482 = sbr.rel (%p480) target = $region80
        $region79: #{tpu_custom_call.1} parent=55 // pred_region
          %483 = dma.done %s476, 8192
        $region80: #{tpu_custom_call.1} parent=55 // pred_fallthru
          _
        %s484 = sand.u32 %s28, 1
        %s485 = scalar_lea.sflag [#allocation12], %s484
        %s486 = sand.u32 %s250, 1
        %s487 = smul.addr %s486, 8
        %s488 = scalar_lea.vmem [#allocation13], %s487
        // Predicated region
        $region81: #{tpu_custom_call.1} parent=55 // pred_check
          %p489 = pneg %p263
        $region82: #{tpu_custom_call.1} parent=55 // pred_check_branch
          %491 = sbr.rel (%p489) target = $region84
        $region83: #{tpu_custom_call.1} parent=55 // pred_region
          %492 = dma.done %s485, 128
        $region84: #{tpu_custom_call.1} parent=55 // pred_fallthru
          _
        %s493 = sand.u32 %s55, 1
        %s494 = scalar_lea.sflag [#allocation4], %s493
        %s495 = sand.u32 %s55, 1
        %s496 = smul.addr %s495, 16
        %s497 = scalar_lea.vmem [#allocation3], %s496
        %p498 = pneg %p68
        %p499 = pneg %p65
        %p500 = pneg %p89
        %p501 = pneg %p86
        %p502 = pneg %p110
        %p503 = pneg %p107
        %p504 = pneg %p131
        %p505 = pneg %p128
        %p506 = pneg %p152
        %p507 = pneg %p149
        %p508 = pneg %p173
        %p509 = pneg %p170
        %s510 = sand.u32 %s28, 1
        %s511 = scalar_lea.sflag [#allocation12], %s510
        %s512 = sand.u32 %s190, 1
        %s513 = smul.addr %s512, 512
        %s514 = scalar_lea.vmem [#allocation11], %s513
        %p515 = pneg %p203
        %p516 = pneg %p200
        %s517 = smul.u32 %s33, 2
        %s518 = sadd.s32 %s517, %s35
        %s519 = smul.u32 2, %s518
        %p520 = scmp.lt.s32.totalorder %s519, 3
        %s521 = scalar_select %p520, %s519, 3
        %s522 = scalar_lea.vmem %s7, %s521
        %p523 = pneg %p233
        %p524 = pneg %p230
        %s525 = sand.u32 %s28, 1
        %s526 = scalar_lea.sflag [#allocation12], %s525
        %s527 = sand.u32 %s250, 1
        %s528 = smul.addr %s527, 8
        %s529 = scalar_lea.vmem [#allocation13], %s528
        %p530 = pneg %p263
        %p531 = pneg %p260
        %p532 = pneg %p295
        %p533 = pneg %p292
        %s534 = sand.u32 %s282, 1
        %s535 = sand.u32 %s282, 1
        %s536 = smul.addr %s535, 48
        %s537 = scalar_lea.vmem [#allocation14], %s536
        %s538 = smul.u32 %s33, 2
        %s539 = sadd.s32 %s538, %s35
        %s540 = smul.u32 2, %s539
        %s541 = smul.u32 %s33, 2
        %s542 = sadd.s32 %s541, %s35
        %s543 = smul.u32 2, %s542
        %p544 = scmp.lt.s32.totalorder %s543, 3
        %s545 = scalar_select %p544, %s543, 3
        %s546 = scalar_lea.vmem %s7, %s545
        %s547 = smul.u32 %s33, 2
        %s548 = sadd.s32 %s547, %s35
        %s549 = smul.u32 2, %s548
        %s550 = smul.u32 %s33, 2
        %s551 = sadd.s32 %s550, %s35
        %s552 = smul.u32 2, %s551
        %s553 = smul.u32 %s33, 2
        %s554 = sadd.s32 %s553, %s35
        %s555 = smul.u32 2, %s554
        %p556 = scmp.eq.s32.totalorder %s35, 0
        // Predicated region
        $region85: #{tpu_custom_call.1} parent=55 // pred_check
          %p557 = pneg %p556
        $region86: #{tpu_custom_call.1} parent=55 // pred_check_branch
          %559 = sbr.rel (%p557) target = $region88
        $region87: #{tpu_custom_call.1} parent=55 // pred_region
          %v560 = vld [vmem:[#allocation7] sm:$0x3]
          %v561 = vld [vmem:[#allocation8] sm:$0x3]
          %v562 = vld [vmem:[%s5] sm:$0xf]
          loop: start=0, step=1, limit=2
          $region89: #{tpu_custom_call.1} parent=87 // loop_pre_header
            _
          $region90: #{tpu_custom_call.1} parent=87 // loop_header
            %s564 = sphi 0, %s568
            %p565 = scmp.ge.s32.totalorder %s564, 2
          $region91: #{tpu_custom_call.1} parent=87 // loop_header_branch
            %567 = sbr.rel (%p565) target = $region95
          $region92: #{tpu_custom_call.1} parent=87 // loop_body
            %s569 = smul.u32 %s564, 8
            %s570 = sshra.s32 %s569, 3
            %s571 = sand.u32 %s569, 7
            %s572 = smul.u32 %s570, 2
            %s573 = smul.addr %s572, 4
            %s574 = scalar_lea.vmem %s454, %s573 [#allocation3]
            %v575 = vld [vmem:[%s574] sm:$0xff]
            %v576 = vunpack.c.l.bf16 %v575
            %v577 = vunpack.c.h.bf16 %v575
            %v578 = vadd.f32 %v576, %v577
            %579 = vadd.xlane.f32.xlu0 %v578
            %v580 = vpop.xlane.xlu0 %579
            %v581 = vrcp.pop 256.0
            %v582 = vmul.f32 %v580, %v581
            %v583 = vsub.f32 %v576, %v582
            %v584 = vsub.f32 %v577, %v582
            %v585 = vmul.f32 %v583, %v583
            %v586 = vmul.f32 %v584, %v584
            %v587 = vadd.f32 %v585, %v586
            %588 = vadd.xlane.f32.xlu0 %v587
            %v589 = vpop.xlane.xlu0 %588
            %v590 = vmul.f32 %v589, %v581
            %v591 = vadd.f32 %v590, 1e-05
            %v592 = vrsqrt.pop %v591
            %v593 = vmul.f32 %v583, %v592
            %v594 = vmul.f32 %v584, %v592
            %v596 = vlaneseq
            %v597 = vshrl.u32 %v596, 7
            %v598 = vsub.s32 0, %v597
            %v599 = vrot.slane %v560, %v598
            %v600 = vlaneseq
            %v601 = vshrl.u32 %v600, 7
            %v602 = vsub.s32 1, %v601
            %v603 = vrot.slane %v560, %v602
            %v606 = vmul.f32 %v593, %v599
            %v607 = vmul.f32 %v594, %v603
            %v609 = vlaneseq
            %v610 = vshrl.u32 %v609, 7
            %v611 = vsub.s32 0, %v610
            %v612 = vrot.slane %v561, %v611
            %v613 = vlaneseq
            %v614 = vshrl.u32 %v613, 7
            %v615 = vsub.s32 1, %v614
            %v616 = vrot.slane %v561, %v615
            %v619 = vadd.f32 %v606, %v612
            %v620 = vadd.f32 %v607, %v616
            %s621 = smul.addr %s572, 4
            %s622 = scalar_lea.vmem [#allocation5], %s621
            %v623 = vld [vmem:[%s622] sm:$0xff]
            %v624 = vunpack.c.l.bf16 %v623
            %v625 = vunpack.c.h.bf16 %v623
            %v626 = vadd.f32 %v619, %v624
            %v627 = vadd.f32 %v620, %v625
            %v628 = vpack.c.bf16 %v626, %v626
            %v629 = vpack.c.bf16 %v627, %v627
            %v630 = vld [vmem:[#allocation10] sm:$0xff]
            %v631 = vld [vmem:[#allocation10 + $0x8] sm:$0xff]
            %v632 = vld [vmem:[#allocation10 + $0x10] sm:$0xff]
            %v633 = vld [vmem:[#allocation10 + $0x18] sm:$0xff]
            %v634 = vld [vmem:[#allocation10 + $0x20] sm:$0xff]
            %v635 = vld [vmem:[#allocation10 + $0x28] sm:$0xff]
            %v636 = vld [vmem:[#allocation10 + $0x30] sm:$0xff]
            %v637 = vld [vmem:[#allocation10 + $0x38] sm:$0xff]
            %v638 = vld [vmem:[#allocation10 + $0x40] sm:$0xff]
            %v639 = vld [vmem:[#allocation10 + $0x48] sm:$0xff]
            %v640 = vld [vmem:[#allocation10 + $0x50] sm:$0xff]
            %v641 = vld [vmem:[#allocation10 + $0x58] sm:$0xff]
            %v642 = vld [vmem:[#allocation10 + $0x60] sm:$0xff]
            %v643 = vld [vmem:[#allocation10 + $0x68] sm:$0xff]
            %v644 = vld [vmem:[#allocation10 + $0x70] sm:$0xff]
            %v645 = vld [vmem:[#allocation10 + $0x78] sm:$0xff]
            %v646 = vld [vmem:[#allocation10 + $0x80] sm:$0xff]
            %v647 = vld [vmem:[#allocation10 + $0x88] sm:$0xff]
            %v648 = vld [vmem:[#allocation10 + $0x90] sm:$0xff]
            %v649 = vld [vmem:[#allocation10 + $0x98] sm:$0xff]
            %v650 = vld [vmem:[#allocation10 + $0xa0] sm:$0xff]
            %v651 = vld [vmem:[#allocation10 + $0xa8] sm:$0xff]
            %v652 = vld [vmem:[#allocation10 + $0xb0] sm:$0xff]
            %v653 = vld [vmem:[#allocation10 + $0xb8] sm:$0xff]
            %v654 = vld [vmem:[#allocation10 + $0xc0] sm:$0xff]
            %v655 = vld [vmem:[#allocation10 + $0xc8] sm:$0xff]
            %v656 = vld [vmem:[#allocation10 + $0xd0] sm:$0xff]
            %v657 = vld [vmem:[#allocation10 + $0xd8] sm:$0xff]
            %v658 = vld [vmem:[#allocation10 + $0xe0] sm:$0xff]
            %v659 = vld [vmem:[#allocation10 + $0xe8] sm:$0xff]
            %v660 = vld [vmem:[#allocation10 + $0xf0] sm:$0xff]
            %v661 = vld [vmem:[#allocation10 + $0xf8] sm:$0xff]
            %v662 = vld [vmem:[#allocation10 + $0x100] sm:$0xff]
            %v663 = vld [vmem:[#allocation10 + $0x108] sm:$0xff]
            %v664 = vld [vmem:[#allocation10 + $0x110] sm:$0xff]
            %v665 = vld [vmem:[#allocation10 + $0x118] sm:$0xff]
            %v666 = vld [vmem:[#allocation10 + $0x120] sm:$0xff]
            %v667 = vld [vmem:[#allocation10 + $0x128] sm:$0xff]
            %v668 = vld [vmem:[#allocation10 + $0x130] sm:$0xff]
            %v669 = vld [vmem:[#allocation10 + $0x138] sm:$0xff]
            %v670 = vld [vmem:[#allocation10 + $0x140] sm:$0xff]
            %v671 = vld [vmem:[#allocation10 + $0x148] sm:$0xff]
            %v672 = vld [vmem:[#allocation10 + $0x150] sm:$0xff]
            %v673 = vld [vmem:[#allocation10 + $0x158] sm:$0xff]
            %v674 = vld [vmem:[#allocation10 + $0x160] sm:$0xff]
            %v675 = vld [vmem:[#allocation10 + $0x168] sm:$0xff]
            %v676 = vld [vmem:[#allocation10 + $0x170] sm:$0xff]
            %v677 = vld [vmem:[#allocation10 + $0x178] sm:$0xff]
            %v678 = vld [vmem:[#allocation10 + $0x180] sm:$0xff]
            %v679 = vld [vmem:[#allocation10 + $0x188] sm:$0xff]
            %v680 = vld [vmem:[#allocation10 + $0x190] sm:$0xff]
            %v681 = vld [vmem:[#allocation10 + $0x198] sm:$0xff]
            %v682 = vld [vmem:[#allocation10 + $0x1a0] sm:$0xff]
            %v683 = vld [vmem:[#allocation10 + $0x1a8] sm:$0xff]
            %v684 = vld [vmem:[#allocation10 + $0x1b0] sm:$0xff]
            %v685 = vld [vmem:[#allocation10 + $0x1b8] sm:$0xff]
            %v686 = vld [vmem:[#allocation10 + $0x1c0] sm:$0xff]
            %v687 = vld [vmem:[#allocation10 + $0x1c8] sm:$0xff]
            %v688 = vld [vmem:[#allocation10 + $0x1d0] sm:$0xff]
            %v689 = vld [vmem:[#allocation10 + $0x1d8] sm:$0xff]
            %v690 = vld [vmem:[#allocation10 + $0x1e0] sm:$0xff]
            %v691 = vld [vmem:[#allocation10 + $0x1e8] sm:$0xff]
            %v692 = vld [vmem:[#allocation10 + $0x1f0] sm:$0xff]
            %v693 = vld [vmem:[#allocation10 + $0x1f8] sm:$0xff]
            %v695 = vlaneseq
            %v696 = vshrl.u32 %v695, 7
            %v697 = vsub.s32 0, %v696
            %v698 = vrot.slane %v562, %v697
            %v699 = vlaneseq
            %v700 = vshrl.u32 %v699, 7
            %v701 = vsub.s32 1, %v700
            %v702 = vrot.slane %v562, %v701
            %v703 = vlaneseq
            %v704 = vshrl.u32 %v703, 7
            %v705 = vsub.s32 2, %v704
            %v706 = vrot.slane %v562, %v705
            %v707 = vlaneseq
            %v708 = vshrl.u32 %v707, 7
            %v709 = vsub.s32 3, %v708
            %v710 = vrot.slane %v562, %v709
            %v779 = vunpack.c.l.b16 %v630
            %v780 = vunpack.c.h.b16 %v630
            %v781 = vunpack.c.l.b16 %v631
            %v782 = vunpack.c.h.b16 %v631
            %v783 = vunpack.c.l.b16 %v632
            %v784 = vunpack.c.h.b16 %v632
            %v785 = vunpack.c.l.b16 %v633
            %v786 = vunpack.c.h.b16 %v633
            %v787 = vunpack.c.l.b16 %v634
            %v788 = vunpack.c.h.b16 %v634
            %v789 = vunpack.c.l.b16 %v635
            %v790 = vunpack.c.h.b16 %v635
            %v791 = vunpack.c.l.b16 %v636
            %v792 = vunpack.c.h.b16 %v636
            %v793 = vunpack.c.l.b16 %v637
            %v794 = vunpack.c.h.b16 %v637
            %v795 = vunpack.c.l.b16 %v638
            %v796 = vunpack.c.h.b16 %v638
            %v797 = vunpack.c.l.b16 %v639
            %v798 = vunpack.c.h.b16 %v639
            %v799 = vunpack.c.l.b16 %v640
            %v800 = vunpack.c.h.b16 %v640
            %v801 = vunpack.c.l.b16 %v641
            %v802 = vunpack.c.h.b16 %v641
            %v803 = vunpack.c.l.b16 %v642
            %v804 = vunpack.c.h.b16 %v642
            %v805 = vunpack.c.l.b16 %v643
            %v806 = vunpack.c.h.b16 %v643
            %v807 = vunpack.c.l.b16 %v644
            %v808 = vunpack.c.h.b16 %v644
            %v809 = vunpack.c.l.b16 %v645
            %v810 = vunpack.c.h.b16 %v645
            %v811 = vunpack.c.l.b16 %v646
            %v812 = vunpack.c.h.b16 %v646
            %v813 = vunpack.c.l.b16 %v647
            %v814 = vunpack.c.h.b16 %v647
            %v815 = vunpack.c.l.b16 %v648
            %v816 = vunpack.c.h.b16 %v648
            %v817 = vunpack.c.l.b16 %v649
            %v818 = vunpack.c.h.b16 %v649
            %v819 = vunpack.c.l.b16 %v650
            %v820 = vunpack.c.h.b16 %v650
            %v821 = vunpack.c.l.b16 %v651
            %v822 = vunpack.c.h.b16 %v651
            %v823 = vunpack.c.l.b16 %v652
            %v824 = vunpack.c.h.b16 %v652
            %v825 = vunpack.c.l.b16 %v653
            %v826 = vunpack.c.h.b16 %v653
            %v827 = vunpack.c.l.b16 %v654
            %v828 = vunpack.c.h.b16 %v654
            %v829 = vunpack.c.l.b16 %v655
            %v830 = vunpack.c.h.b16 %v655
            %v831 = vunpack.c.l.b16 %v656
            %v832 = vunpack.c.h.b16 %v656
            %v833 = vunpack.c.l.b16 %v657
            %v834 = vunpack.c.h.b16 %v657
            %v835 = vunpack.c.l.b16 %v658
            %v836 = vunpack.c.h.b16 %v658
            %v837 = vunpack.c.l.b16 %v659
            %v838 = vunpack.c.h.b16 %v659
            %v839 = vunpack.c.l.b16 %v660
            %v840 = vunpack.c.h.b16 %v660
            %v841 = vunpack.c.l.b16 %v661
            %v842 = vunpack.c.h.b16 %v661
            %v843 = vunpack.c.l.b16 %v662
            %v844 = vunpack.c.h.b16 %v662
            %v845 = vunpack.c.l.b16 %v663
            %v846 = vunpack.c.h.b16 %v663
            %v847 = vunpack.c.l.b16 %v664
            %v848 = vunpack.c.h.b16 %v664
            %v849 = vunpack.c.l.b16 %v665
            %v850 = vunpack.c.h.b16 %v665
            %v851 = vunpack.c.l.b16 %v666
            %v852 = vunpack.c.h.b16 %v666
            %v853 = vunpack.c.l.b16 %v667
            %v854 = vunpack.c.h.b16 %v667
            %v855 = vunpack.c.l.b16 %v668
            %v856 = vunpack.c.h.b16 %v668
            %v857 = vunpack.c.l.b16 %v669
            %v858 = vunpack.c.h.b16 %v669
            %v859 = vunpack.c.l.b16 %v670
            %v860 = vunpack.c.h.b16 %v670
            %v861 = vunpack.c.l.b16 %v671
            %v862 = vunpack.c.h.b16 %v671
            %v863 = vunpack.c.l.b16 %v672
            %v864 = vunpack.c.h.b16 %v672
            %v865 = vunpack.c.l.b16 %v673
            %v866 = vunpack.c.h.b16 %v673
            %v867 = vunpack.c.l.b16 %v674
            %v868 = vunpack.c.h.b16 %v674
            %v869 = vunpack.c.l.b16 %v675
            %v870 = vunpack.c.h.b16 %v675
            %v871 = vunpack.c.l.b16 %v676
            %v872 = vunpack.c.h.b16 %v676
            %v873 = vunpack.c.l.b16 %v677
            %v874 = vunpack.c.h.b16 %v677
            %v875 = vunpack.c.l.b16 %v678
            %v876 = vunpack.c.h.b16 %v678
            %v877 = vunpack.c.l.b16 %v679
            %v878 = vunpack.c.h.b16 %v679
            %v879 = vunpack.c.l.b16 %v680
            %v880 = vunpack.c.h.b16 %v680
            %v881 = vunpack.c.l.b16 %v681
            %v882 = vunpack.c.h.b16 %v681
            %v883 = vunpack.c.l.b16 %v682
            %v884 = vunpack.c.h.b16 %v682
            %v885 = vunpack.c.l.b16 %v683
            %v886 = vunpack.c.h.b16 %v683
            %v887 = vunpack.c.l.b16 %v684
            %v888 = vunpack.c.h.b16 %v684
            %v889 = vunpack.c.l.b16 %v685
            %v890 = vunpack.c.h.b16 %v685
            %v891 = vunpack.c.l.b16 %v686
            %v892 = vunpack.c.h.b16 %v686
            %v893 = vunpack.c.l.b16 %v687
            %v894 = vunpack.c.h.b16 %v687
            %v895 = vunpack.c.l.b16 %v688
            %v896 = vunpack.c.h.b16 %v688
            %v897 = vunpack.c.l.b16 %v689
            %v898 = vunpack.c.h.b16 %v689
            %v899 = vunpack.c.l.b16 %v690
            %v900 = vunpack.c.h.b16 %v690
            %v901 = vunpack.c.l.b16 %v691
            %v902 = vunpack.c.h.b16 %v691
            %v903 = vunpack.c.l.b16 %v692
            %v904 = vunpack.c.h.b16 %v692
            %v905 = vunpack.c.l.b16 %v693
            %v906 = vunpack.c.h.b16 %v693
            %v907 = vpack.c.b16 %v783, %v779
            %v908 = vpack.c.b16 %v784, %v780
            %v909 = vpack.c.b16 %v785, %v781
            %v910 = vpack.c.b16 %v786, %v782
            %v911 = vpack.c.b16 %v791, %v787
            %v912 = vpack.c.b16 %v792, %v788
            %v913 = vpack.c.b16 %v793, %v789
            %v914 = vpack.c.b16 %v794, %v790
            %v915 = vpack.c.b16 %v799, %v795
            %v916 = vpack.c.b16 %v800, %v796
            %v917 = vpack.c.b16 %v801, %v797
            %v918 = vpack.c.b16 %v802, %v798
            %v919 = vpack.c.b16 %v807, %v803
            %v920 = vpack.c.b16 %v808, %v804
            %v921 = vpack.c.b16 %v809, %v805
            %v922 = vpack.c.b16 %v810, %v806
            %v923 = vpack.c.b16 %v815, %v811
            %v924 = vpack.c.b16 %v816, %v812
            %v925 = vpack.c.b16 %v817, %v813
            %v926 = vpack.c.b16 %v818, %v814
            %v927 = vpack.c.b16 %v823, %v819
            %v928 = vpack.c.b16 %v824, %v820
            %v929 = vpack.c.b16 %v825, %v821
            %v930 = vpack.c.b16 %v826, %v822
            %v931 = vpack.c.b16 %v831, %v827
            %v932 = vpack.c.b16 %v832, %v828
            %v933 = vpack.c.b16 %v833, %v829
            %v934 = vpack.c.b16 %v834, %v830
            %v935 = vpack.c.b16 %v839, %v835
            %v936 = vpack.c.b16 %v840, %v836
            %v937 = vpack.c.b16 %v841, %v837
            %v938 = vpack.c.b16 %v842, %v838
            %v939 = vpack.c.b16 %v847, %v843
            %v940 = vpack.c.b16 %v848, %v844
            %v941 = vpack.c.b16 %v849, %v845
            %v942 = vpack.c.b16 %v850, %v846
            %v943 = vpack.c.b16 %v855, %v851
            %v944 = vpack.c.b16 %v856, %v852
            %v945 = vpack.c.b16 %v857, %v853
            %v946 = vpack.c.b16 %v858, %v854
            %v947 = vpack.c.b16 %v863, %v859
            %v948 = vpack.c.b16 %v864, %v860
            %v949 = vpack.c.b16 %v865, %v861
            %v950 = vpack.c.b16 %v866, %v862
            %v951 = vpack.c.b16 %v871, %v867
            %v952 = vpack.c.b16 %v872, %v868
            %v953 = vpack.c.b16 %v873, %v869
            %v954 = vpack.c.b16 %v874, %v870
            %v955 = vpack.c.b16 %v879, %v875
            %v956 = vpack.c.b16 %v880, %v876
            %v957 = vpack.c.b16 %v881, %v877
            %v958 = vpack.c.b16 %v882, %v878
            %v959 = vpack.c.b16 %v887, %v883
            %v960 = vpack.c.b16 %v888, %v884
            %v961 = vpack.c.b16 %v889, %v885
            %v962 = vpack.c.b16 %v890, %v886
            %v963 = vpack.c.b16 %v895, %v891
            %v964 = vpack.c.b16 %v896, %v892
            %v965 = vpack.c.b16 %v897, %v893
            %v966 = vpack.c.b16 %v898, %v894
            %v967 = vpack.c.b16 %v903, %v899
            %v968 = vpack.c.b16 %v904, %v900
            %v969 = vpack.c.b16 %v905, %v901
            %v970 = vpack.c.b16 %v906, %v902
            %1035 = vmatprep.subr.bf16.mxu0 %v936
            %1036 = vmatpush1.bf16.msra.mxu0 %v935
            %1037 = vmatprep.subr.bf16.mxu0 %v932
            %1038 = vmatpush1.bf16.msra.mxu0 %v931
            %1039 = vmatprep.subr.bf16.mxu0 %v928
            %1040 = vmatpush1.bf16.msra.mxu0 %v927
            %1041 = vmatprep.subr.bf16.mxu0 %v924
            %1042 = vmatpush1.bf16.msra.mxu0 %v923
            %1043 = vmatprep.subr.bf16.mxu0 %v920
            %1044 = vmatpush1.bf16.msra.mxu0 %v919
            %1045 = vmatprep.subr.bf16.mxu0 %v916
            %1046 = vmatpush1.bf16.msra.mxu0 %v915
            %1047 = vmatprep.subr.bf16.mxu0 %v912
            %1048 = vmatpush1.bf16.msra.mxu0 %v911
            %1049 = vmatprep.subr.bf16.mxu0 %v908
            %1050 = vmatpush1.bf16.msra.mxu0 %v907
            %1051 = vmatprep.subr.bf16.mxu0 %v968
            %1052 = vmatpush2.bf16.msra.mxu0 %v967
            %1053 = vmatprep.subr.bf16.mxu0 %v964
            %1054 = vmatpush2.bf16.msra.mxu0 %v963
            %1055 = vmatprep.subr.bf16.mxu0 %v960
            %1056 = vmatpush2.bf16.msra.mxu0 %v959
            %1057 = vmatprep.subr.bf16.mxu0 %v956
            %1058 = vmatpush2.bf16.msra.mxu0 %v955
            %1059 = vmatprep.subr.bf16.mxu0 %v952
            %1060 = vmatpush2.bf16.msra.mxu0 %v951
            %1061 = vmatprep.subr.bf16.mxu0 %v948
            %1062 = vmatpush2.bf16.msra.mxu0 %v947
            %1063 = vmatprep.subr.bf16.mxu0 %v944
            %1064 = vmatpush2.bf16.msra.mxu0 %v943
            %1065 = vmatprep.subr.bf16.mxu0 %v940
            %1066 = vmatpush2.bf16.msra.mxu0 %v939
            %1067 = vmatprep.mubr.bf16.mxu0 %v629
            %1068 = vmatmul.mubr.bf16.gmra.mxu0 %v628
            %v1069 = vpop.f32.mrf.mxu0
            %v1070 = vadd.f32 %v698, %v1069
            %v1071 = vpop.f32.mrf.mxu0
            %v1072 = vadd.f32 %v702, %v1071
            %v1073 = vpop.f32.mrf.mxu0
            %v1074 = vpop.f32.mrf.mxu0
            %1075 = vdwg.mxu0
            %1076 = vmatprep.subr.bf16.mxu0 %v938
            %1077 = vmatpush1.bf16.msra.mxu0 %v937
            %1078 = vmatprep.subr.bf16.mxu0 %v934
            %1079 = vmatpush1.bf16.msra.mxu0 %v933
            %1080 = vmatprep.subr.bf16.mxu0 %v930
            %1081 = vmatpush1.bf16.msra.mxu0 %v929
            %1082 = vmatprep.subr.bf16.mxu0 %v926
            %1083 = vmatpush1.bf16.msra.mxu0 %v925
            %1084 = vmatprep.subr.bf16.mxu0 %v922
            %1085 = vmatpush1.bf16.msra.mxu0 %v921
            %1086 = vmatprep.subr.bf16.mxu0 %v918
            %1087 = vmatpush1.bf16.msra.mxu0 %v917
            %1088 = vmatprep.subr.bf16.mxu0 %v914
            %1089 = vmatpush1.bf16.msra.mxu0 %v913
            %1090 = vmatprep.subr.bf16.mxu0 %v910
            %1091 = vmatpush1.bf16.msra.mxu0 %v909
            %1092 = vmatprep.subr.bf16.mxu0 %v970
            %1093 = vmatpush2.bf16.msra.mxu0 %v969
            %1094 = vmatprep.subr.bf16.mxu0 %v966
            %1095 = vmatpush2.bf16.msra.mxu0 %v965
            %1096 = vmatprep.subr.bf16.mxu0 %v962
            %1097 = vmatpush2.bf16.msra.mxu0 %v961
            %1098 = vmatprep.subr.bf16.mxu0 %v958
            %1099 = vmatpush2.bf16.msra.mxu0 %v957
            %1100 = vmatprep.subr.bf16.mxu0 %v954
            %1101 = vmatpush2.bf16.msra.mxu0 %v953
            %1102 = vmatprep.subr.bf16.mxu0 %v950
            %1103 = vmatpush2.bf16.msra.mxu0 %v949
            %1104 = vmatprep.subr.bf16.mxu0 %v946
            %1105 = vmatpush2.bf16.msra.mxu0 %v945
            %1106 = vmatprep.subr.bf16.mxu0 %v942
            %1107 = vmatpush2.bf16.msra.mxu0 %v941
            %1108 = vmatprep.mubr.bf16.mxu0 %v629
            %1109 = vmatmul.mubr.bf16.gmra.mxu0 %v628
            %v1110 = vpop.f32.mrf.mxu0
            %v1111 = vadd.f32 %v706, %v1110
            %v1112 = vpop.f32.mrf.mxu0
            %v1113 = vadd.f32 %v710, %v1112
            %v1114 = vpop.f32.mrf.mxu0
            %v1115 = vpop.f32.mrf.mxu0
            %1116 = vdwg.mxu0
            %v1117 = vmul.f32 %v1070, %v1070
            %v1118 = vmul.f32 %v1072, %v1072
            %v1119 = vmul.f32 %v1111, %v1111
            %v1120 = vmul.f32 %v1113, %v1113
            %v1121 = vmul.f32 %v1070, %v1117
            %v1122 = vmul.f32 %v1072, %v1118
            %v1123 = vmul.f32 %v1111, %v1119
            %v1124 = vmul.f32 %v1113, %v1120
            %v1125 = vmul.f32 %v1121, 0.044715
            %v1126 = vmul.f32 %v1122, 0.044715
            %v1127 = vmul.f32 %v1123, 0.044715
            %v1128 = vmul.f32 %v1124, 0.044715
            %v1129 = vadd.f32 %v1070, %v1125
            %v1130 = vadd.f32 %v1072, %v1126
            %v1131 = vadd.f32 %v1111, %v1127
            %v1132 = vadd.f32 %v1113, %v1128
            %v1133 = vmul.f32 %v1129, 0.7978846
            %v1134 = vmul.f32 %v1130, 0.7978846
            %v1135 = vmul.f32 %v1131, 0.7978846
            %v1136 = vmul.f32 %v1132, 0.7978846
            %v1137 = vtanh.pop %v1133
            %v1138 = vtanh.pop %v1134
            %v1139 = vtanh.pop %v1135
            %v1140 = vtanh.pop %v1136
            %v1141 = vadd.f32 %v1137, 1.0
            %v1142 = vadd.f32 %v1138, 1.0
            %v1143 = vadd.f32 %v1139, 1.0
            %v1144 = vadd.f32 %v1140, 1.0
            %v1145 = vmul.f32 %v1141, 0.5
            %v1146 = vmul.f32 %v1142, 0.5
            %v1147 = vmul.f32 %v1143, 0.5
            %v1148 = vmul.f32 %v1144, 0.5
            %v1149 = vmul.f32 %v1070, %v1145
            %v1150 = vmul.f32 %v1072, %v1146
            %v1151 = vmul.f32 %v1111, %v1147
            %v1152 = vmul.f32 %v1113, %v1148
            %v1153 = vpack.c.bf16 %v1149, %v1149
            %v1154 = vpack.c.bf16 %v1150, %v1150
            %v1155 = vpack.c.bf16 %v1151, %v1151
            %v1156 = vpack.c.bf16 %v1152, %v1152
            %v1161 = vunpack.c.l.b16 %v1153
            %v1162 = vunpack.c.l.b16 %v1154
            %v1163 = vunpack.c.l.b16 %v1155
            %v1164 = vunpack.c.l.b16 %v1156
            %v1165 = vpack.c.b16 %v1162, %v1161
            %v1166 = vpack.c.b16 %v1164, %v1163
            %s1169 = smul.u32 %s570, 4
            %s1170 = smul.addr %s1169, 4
            %s1171 = scalar_lea.vmem [#allocation2], %s1170
            %1172 = vst [vmem:[%s1171] sm:$0xff] %v1165
            %1173 = vst [vmem:[%s1171 + $0x8] sm:$0xff] %v1166
          $region93: #{tpu_custom_call.1} parent=87 // loop_footer
            %s568 = sadd.s32 1, %s564
          $region94: #{tpu_custom_call.1} parent=87 // loop_footer_branch
            %563 = sbr.rel target = $region90
          $region95: #{tpu_custom_call.1} parent=87 // loop_exit
            _
        $region88: #{tpu_custom_call.1} parent=55 // pred_fallthru
          _
        %v1174 = vld [vmem:[%s546] sm:$0x3]
        %v1175 = vld [vmem:[%s479] sm:$0xff]
        %v1176 = vld [vmem:[%s479 + $0x8] sm:$0xff]
        %v1177 = vld [vmem:[%s479 + $0x10] sm:$0xff]
        %v1178 = vld [vmem:[%s479 + $0x18] sm:$0xff]
        %v1179 = vld [vmem:[%s479 + $0x20] sm:$0xff]
        %v1180 = vld [vmem:[%s479 + $0x28] sm:$0xff]
        %v1181 = vld [vmem:[%s479 + $0x30] sm:$0xff]
        %v1182 = vld [vmem:[%s479 + $0x38] sm:$0xff]
        %v1183 = vld [vmem:[%s479 + $0x40] sm:$0xff]
        %v1184 = vld [vmem:[%s479 + $0x48] sm:$0xff]
        %v1185 = vld [vmem:[%s479 + $0x50] sm:$0xff]
        %v1186 = vld [vmem:[%s479 + $0x58] sm:$0xff]
        %v1187 = vld [vmem:[%s479 + $0x60] sm:$0xff]
        %v1188 = vld [vmem:[%s479 + $0x68] sm:$0xff]
        %v1189 = vld [vmem:[%s479 + $0x70] sm:$0xff]
        %v1190 = vld [vmem:[%s479 + $0x78] sm:$0xff]
        %v1191 = vld [vmem:[%s479 + $0x80] sm:$0xff]
        %v1192 = vld [vmem:[%s479 + $0x88] sm:$0xff]
        %v1193 = vld [vmem:[%s479 + $0x90] sm:$0xff]
        %v1194 = vld [vmem:[%s479 + $0x98] sm:$0xff]
        %v1195 = vld [vmem:[%s479 + $0xa0] sm:$0xff]
        %v1196 = vld [vmem:[%s479 + $0xa8] sm:$0xff]
        %v1197 = vld [vmem:[%s479 + $0xb0] sm:$0xff]
        %v1198 = vld [vmem:[%s479 + $0xb8] sm:$0xff]
        %v1199 = vld [vmem:[%s479 + $0xc0] sm:$0xff]
        %v1200 = vld [vmem:[%s479 + $0xc8] sm:$0xff]
        %v1201 = vld [vmem:[%s479 + $0xd0] sm:$0xff]
        %v1202 = vld [vmem:[%s479 + $0xd8] sm:$0xff]
        %v1203 = vld [vmem:[%s479 + $0xe0] sm:$0xff]
        %v1204 = vld [vmem:[%s479 + $0xe8] sm:$0xff]
        %v1205 = vld [vmem:[%s479 + $0xf0] sm:$0xff]
        %v1206 = vld [vmem:[%s479 + $0xf8] sm:$0xff]
        %v1207 = vld [vmem:[%s479 + $0x100] sm:$0xff]
        %v1208 = vld [vmem:[%s479 + $0x108] sm:$0xff]
        %v1209 = vld [vmem:[%s479 + $0x110] sm:$0xff]
        %v1210 = vld [vmem:[%s479 + $0x118] sm:$0xff]
        %v1211 = vld [vmem:[%s479 + $0x120] sm:$0xff]
        %v1212 = vld [vmem:[%s479 + $0x128] sm:$0xff]
        %v1213 = vld [vmem:[%s479 + $0x130] sm:$0xff]
        %v1214 = vld [vmem:[%s479 + $0x138] sm:$0xff]
        %v1215 = vld [vmem:[%s479 + $0x140] sm:$0xff]
        %v1216 = vld [vmem:[%s479 + $0x148] sm:$0xff]
        %v1217 = vld [vmem:[%s479 + $0x150] sm:$0xff]
        %v1218 = vld [vmem:[%s479 + $0x158] sm:$0xff]
        %v1219 = vld [vmem:[%s479 + $0x160] sm:$0xff]
        %v1220 = vld [vmem:[%s479 + $0x168] sm:$0xff]
        %v1221 = vld [vmem:[%s479 + $0x170] sm:$0xff]
        %v1222 = vld [vmem:[%s479 + $0x178] sm:$0xff]
        %v1223 = vld [vmem:[%s479 + $0x180] sm:$0xff]
        %v1224 = vld [vmem:[%s479 + $0x188] sm:$0xff]
        %v1225 = vld [vmem:[%s479 + $0x190] sm:$0xff]
        %v1226 = vld [vmem:[%s479 + $0x198] sm:$0xff]
        %v1227 = vld [vmem:[%s479 + $0x1a0] sm:$0xff]
        %v1228 = vld [vmem:[%s479 + $0x1a8] sm:$0xff]
        %v1229 = vld [vmem:[%s479 + $0x1b0] sm:$0xff]
        %v1230 = vld [vmem:[%s479 + $0x1b8] sm:$0xff]
        %v1231 = vld [vmem:[%s479 + $0x1c0] sm:$0xff]
        %v1232 = vld [vmem:[%s479 + $0x1c8] sm:$0xff]
        %v1233 = vld [vmem:[%s479 + $0x1d0] sm:$0xff]
        %v1234 = vld [vmem:[%s479 + $0x1d8] sm:$0xff]
        %v1235 = vld [vmem:[%s479 + $0x1e0] sm:$0xff]
        %v1236 = vld [vmem:[%s479 + $0x1e8] sm:$0xff]
        %v1237 = vld [vmem:[%s479 + $0x1f0] sm:$0xff]
        %v1238 = vld [vmem:[%s479 + $0x1f8] sm:$0xff]
        %v1239 = vld [vmem:[%s488] ss:$4 sm:$0x3]
        %s1240 = scalar_lea.vmem %s488, 1 [#allocation13]
        %v1241 = vld [vmem:[%s1240] ss:$4 sm:$0x3]
        %v1242 = vld [vmem:[#allocation2] sm:$0xff]
        %v1243 = vld [vmem:[#allocation2 + $0x8] sm:$0xff]
        %v1244 = vld [vmem:[#allocation2 + $0x10] sm:$0xff]
        %v1245 = vld [vmem:[#allocation2 + $0x18] sm:$0xff]
        %v1247 = vlaneseq
        %v1248 = vshrl.u32 %v1247, 7
        %v1249 = vsub.s32 0, %v1248
        %v1250 = vrot.slane %v1174, %v1249
        %v1251 = vlaneseq
        %v1252 = vshrl.u32 %v1251, 7
        %v1253 = vsub.s32 1, %v1252
        %v1254 = vrot.slane %v1174, %v1253
        %v1261 = vunpack.c.l.b16 %v1242
        %v1262 = vunpack.c.h.b16 %v1242
        %v1263 = vunpack.c.l.b16 %v1243
        %v1264 = vunpack.c.h.b16 %v1243
        %v1265 = vunpack.c.l.b16 %v1244
        %v1266 = vunpack.c.h.b16 %v1244
        %v1267 = vunpack.c.l.b16 %v1245
        %v1268 = vunpack.c.h.b16 %v1245
        %v1269 = vpack.c.b16 %v1265, %v1261
        %v1270 = vpack.c.b16 %v1266, %v1262
        %v1271 = vpack.c.b16 %v1267, %v1263
        %v1272 = vpack.c.b16 %v1268, %v1264
        %v1341 = vunpack.c.l.b16 %v1175
        %v1342 = vunpack.c.h.b16 %v1175
        %v1343 = vunpack.c.l.b16 %v1176
        %v1344 = vunpack.c.h.b16 %v1176
        %v1345 = vunpack.c.l.b16 %v1177
        %v1346 = vunpack.c.h.b16 %v1177
        %v1347 = vunpack.c.l.b16 %v1178
        %v1348 = vunpack.c.h.b16 %v1178
        %v1349 = vunpack.c.l.b16 %v1179
        %v1350 = vunpack.c.h.b16 %v1179
        %v1351 = vunpack.c.l.b16 %v1180
        %v1352 = vunpack.c.h.b16 %v1180
        %v1353 = vunpack.c.l.b16 %v1181
        %v1354 = vunpack.c.h.b16 %v1181
        %v1355 = vunpack.c.l.b16 %v1182
        %v1356 = vunpack.c.h.b16 %v1182
        %v1357 = vunpack.c.l.b16 %v1183
        %v1358 = vunpack.c.h.b16 %v1183
        %v1359 = vunpack.c.l.b16 %v1184
        %v1360 = vunpack.c.h.b16 %v1184
        %v1361 = vunpack.c.l.b16 %v1185
        %v1362 = vunpack.c.h.b16 %v1185
        %v1363 = vunpack.c.l.b16 %v1186
        %v1364 = vunpack.c.h.b16 %v1186
        %v1365 = vunpack.c.l.b16 %v1187
        %v1366 = vunpack.c.h.b16 %v1187
        %v1367 = vunpack.c.l.b16 %v1188
        %v1368 = vunpack.c.h.b16 %v1188
        %v1369 = vunpack.c.l.b16 %v1189
        %v1370 = vunpack.c.h.b16 %v1189
        %v1371 = vunpack.c.l.b16 %v1190
        %v1372 = vunpack.c.h.b16 %v1190
        %v1373 = vunpack.c.l.b16 %v1191
        %v1374 = vunpack.c.h.b16 %v1191
        %v1375 = vunpack.c.l.b16 %v1192
        %v1376 = vunpack.c.h.b16 %v1192
        %v1377 = vunpack.c.l.b16 %v1193
        %v1378 = vunpack.c.h.b16 %v1193
        %v1379 = vunpack.c.l.b16 %v1194
        %v1380 = vunpack.c.h.b16 %v1194
        %v1381 = vunpack.c.l.b16 %v1195
        %v1382 = vunpack.c.h.b16 %v1195
        %v1383 = vunpack.c.l.b16 %v1196
        %v1384 = vunpack.c.h.b16 %v1196
        %v1385 = vunpack.c.l.b16 %v1197
        %v1386 = vunpack.c.h.b16 %v1197
        %v1387 = vunpack.c.l.b16 %v1198
        %v1388 = vunpack.c.h.b16 %v1198
        %v1389 = vunpack.c.l.b16 %v1199
        %v1390 = vunpack.c.h.b16 %v1199
        %v1391 = vunpack.c.l.b16 %v1200
        %v1392 = vunpack.c.h.b16 %v1200
        %v1393 = vunpack.c.l.b16 %v1201
        %v1394 = vunpack.c.h.b16 %v1201
        %v1395 = vunpack.c.l.b16 %v1202
        %v1396 = vunpack.c.h.b16 %v1202
        %v1397 = vunpack.c.l.b16 %v1203
        %v1398 = vunpack.c.h.b16 %v1203
        %v1399 = vunpack.c.l.b16 %v1204
        %v1400 = vunpack.c.h.b16 %v1204
        %v1401 = vunpack.c.l.b16 %v1205
        %v1402 = vunpack.c.h.b16 %v1205
        %v1403 = vunpack.c.l.b16 %v1206
        %v1404 = vunpack.c.h.b16 %v1206
        %v1405 = vunpack.c.l.b16 %v1207
        %v1406 = vunpack.c.h.b16 %v1207
        %v1407 = vunpack.c.l.b16 %v1208
        %v1408 = vunpack.c.h.b16 %v1208
        %v1409 = vunpack.c.l.b16 %v1209
        %v1410 = vunpack.c.h.b16 %v1209
        %v1411 = vunpack.c.l.b16 %v1210
        %v1412 = vunpack.c.h.b16 %v1210
        %v1413 = vunpack.c.l.b16 %v1211
        %v1414 = vunpack.c.h.b16 %v1211
        %v1415 = vunpack.c.l.b16 %v1212
        %v1416 = vunpack.c.h.b16 %v1212
        %v1417 = vunpack.c.l.b16 %v1213
        %v1418 = vunpack.c.h.b16 %v1213
        %v1419 = vunpack.c.l.b16 %v1214
        %v1420 = vunpack.c.h.b16 %v1214
        %v1421 = vunpack.c.l.b16 %v1215
        %v1422 = vunpack.c.h.b16 %v1215
        %v1423 = vunpack.c.l.b16 %v1216
        %v1424 = vunpack.c.h.b16 %v1216
        %v1425 = vunpack.c.l.b16 %v1217
        %v1426 = vunpack.c.h.b16 %v1217
        %v1427 = vunpack.c.l.b16 %v1218
        %v1428 = vunpack.c.h.b16 %v1218
        %v1429 = vunpack.c.l.b16 %v1219
        %v1430 = vunpack.c.h.b16 %v1219
        %v1431 = vunpack.c.l.b16 %v1220
        %v1432 = vunpack.c.h.b16 %v1220
        %v1433 = vunpack.c.l.b16 %v1221
        %v1434 = vunpack.c.h.b16 %v1221
        %v1435 = vunpack.c.l.b16 %v1222
        %v1436 = vunpack.c.h.b16 %v1222
        %v1437 = vunpack.c.l.b16 %v1223
        %v1438 = vunpack.c.h.b16 %v1223
        %v1439 = vunpack.c.l.b16 %v1224
        %v1440 = vunpack.c.h.b16 %v1224
        %v1441 = vunpack.c.l.b16 %v1225
        %v1442 = vunpack.c.h.b16 %v1225
        %v1443 = vunpack.c.l.b16 %v1226
        %v1444 = vunpack.c.h.b16 %v1226
        %v1445 = vunpack.c.l.b16 %v1227
        %v1446 = vunpack.c.h.b16 %v1227
        %v1447 = vunpack.c.l.b16 %v1228
        %v1448 = vunpack.c.h.b16 %v1228
        %v1449 = vunpack.c.l.b16 %v1229
        %v1450 = vunpack.c.h.b16 %v1229
        %v1451 = vunpack.c.l.b16 %v1230
        %v1452 = vunpack.c.h.b16 %v1230
        %v1453 = vunpack.c.l.b16 %v1231
        %v1454 = vunpack.c.h.b16 %v1231
        %v1455 = vunpack.c.l.b16 %v1232
        %v1456 = vunpack.c.h.b16 %v1232
        %v1457 = vunpack.c.l.b16 %v1233
        %v1458 = vunpack.c.h.b16 %v1233
        %v1459 = vunpack.c.l.b16 %v1234
        %v1460 = vunpack.c.h.b16 %v1234
        %v1461 = vunpack.c.l.b16 %v1235
        %v1462 = vunpack.c.h.b16 %v1235
        %v1463 = vunpack.c.l.b16 %v1236
        %v1464 = vunpack.c.h.b16 %v1236
        %v1465 = vunpack.c.l.b16 %v1237
        %v1466 = vunpack.c.h.b16 %v1237
        %v1467 = vunpack.c.l.b16 %v1238
        %v1468 = vunpack.c.h.b16 %v1238
        %v1469 = vpack.c.b16 %v1343, %v1341
        %v1470 = vpack.c.b16 %v1344, %v1342
        %v1471 = vpack.c.b16 %v1347, %v1345
        %v1472 = vpack.c.b16 %v1348, %v1346
        %v1473 = vpack.c.b16 %v1351, %v1349
        %v1474 = vpack.c.b16 %v1352, %v1350
        %v1475 = vpack.c.b16 %v1355, %v1353
        %v1476 = vpack.c.b16 %v1356, %v1354
        %v1477 = vpack.c.b16 %v1359, %v1357
        %v1478 = vpack.c.b16 %v1360, %v1358
        %v1479 = vpack.c.b16 %v1363, %v1361
        %v1480 = vpack.c.b16 %v1364, %v1362
        %v1481 = vpack.c.b16 %v1367, %v1365
        %v1482 = vpack.c.b16 %v1368, %v1366
        %v1483 = vpack.c.b16 %v1371, %v1369
        %v1484 = vpack.c.b16 %v1372, %v1370
        %v1485 = vpack.c.b16 %v1375, %v1373
        %v1486 = vpack.c.b16 %v1376, %v1374
        %v1487 = vpack.c.b16 %v1379, %v1377
        %v1488 = vpack.c.b16 %v1380, %v1378
        %v1489 = vpack.c.b16 %v1383, %v1381
        %v1490 = vpack.c.b16 %v1384, %v1382
        %v1491 = vpack.c.b16 %v1387, %v1385
        %v1492 = vpack.c.b16 %v1388, %v1386
        %v1493 = vpack.c.b16 %v1391, %v1389
        %v1494 = vpack.c.b16 %v1392, %v1390
        %v1495 = vpack.c.b16 %v1395, %v1393
        %v1496 = vpack.c.b16 %v1396, %v1394
        %v1497 = vpack.c.b16 %v1399, %v1397
        %v1498 = vpack.c.b16 %v1400, %v1398
        %v1499 = vpack.c.b16 %v1403, %v1401
        %v1500 = vpack.c.b16 %v1404, %v1402
        %v1501 = vpack.c.b16 %v1407, %v1405
        %v1502 = vpack.c.b16 %v1408, %v1406
        %v1503 = vpack.c.b16 %v1411, %v1409
        %v1504 = vpack.c.b16 %v1412, %v1410
        %v1505 = vpack.c.b16 %v1415, %v1413
        %v1506 = vpack.c.b16 %v1416, %v1414
        %v1507 = vpack.c.b16 %v1419, %v1417
        %v1508 = vpack.c.b16 %v1420, %v1418
        %v1509 = vpack.c.b16 %v1423, %v1421
        %v1510 = vpack.c.b16 %v1424, %v1422
        %v1511 = vpack.c.b16 %v1427, %v1425
        %v1512 = vpack.c.b16 %v1428, %v1426
        %v1513 = vpack.c.b16 %v1431, %v1429
        %v1514 = vpack.c.b16 %v1432, %v1430
        %v1515 = vpack.c.b16 %v1435, %v1433
        %v1516 = vpack.c.b16 %v1436, %v1434
        %v1517 = vpack.c.b16 %v1439, %v1437
        %v1518 = vpack.c.b16 %v1440, %v1438
        %v1519 = vpack.c.b16 %v1443, %v1441
        %v1520 = vpack.c.b16 %v1444, %v1442
        %v1521 = vpack.c.b16 %v1447, %v1445
        %v1522 = vpack.c.b16 %v1448, %v1446
        %v1523 = vpack.c.b16 %v1451, %v1449
        %v1524 = vpack.c.b16 %v1452, %v1450
        %v1525 = vpack.c.b16 %v1455, %v1453
        %v1526 = vpack.c.b16 %v1456, %v1454
        %v1527 = vpack.c.b16 %v1459, %v1457
        %v1528 = vpack.c.b16 %v1460, %v1458
        %v1529 = vpack.c.b16 %v1463, %v1461
        %v1530 = vpack.c.b16 %v1464, %v1462
        %v1531 = vpack.c.b16 %v1467, %v1465
        %v1532 = vpack.c.b16 %v1468, %v1466
        %1597 = vmatprep.subr.bf16.mxu0 %v1484
        %1598 = vmatpush1.bf16.msra.mxu0 %v1483
        %1599 = vmatprep.subr.bf16.mxu0 %v1482
        %1600 = vmatpush1.bf16.msra.mxu0 %v1481
        %1601 = vmatprep.subr.bf16.mxu0 %v1480
        %1602 = vmatpush1.bf16.msra.mxu0 %v1479
        %1603 = vmatprep.subr.bf16.mxu0 %v1478
        %1604 = vmatpush1.bf16.msra.mxu0 %v1477
        %1605 = vmatprep.subr.bf16.mxu0 %v1476
        %1606 = vmatpush1.bf16.msra.mxu0 %v1475
        %1607 = vmatprep.subr.bf16.mxu0 %v1474
        %1608 = vmatpush1.bf16.msra.mxu0 %v1473
        %1609 = vmatprep.subr.bf16.mxu0 %v1472
        %1610 = vmatpush1.bf16.msra.mxu0 %v1471
        %1611 = vmatprep.subr.bf16.mxu0 %v1470
        %1612 = vmatpush1.bf16.msra.mxu0 %v1469
        %1613 = vmatprep.subr.bf16.mxu0 %v1500
        %1614 = vmatpush2.bf16.msra.mxu0 %v1499
        %1615 = vmatprep.subr.bf16.mxu0 %v1498
        %1616 = vmatpush2.bf16.msra.mxu0 %v1497
        %1617 = vmatprep.subr.bf16.mxu0 %v1496
        %1618 = vmatpush2.bf16.msra.mxu0 %v1495
        %1619 = vmatprep.subr.bf16.mxu0 %v1494
        %1620 = vmatpush2.bf16.msra.mxu0 %v1493
        %1621 = vmatprep.subr.bf16.mxu0 %v1492
        %1622 = vmatpush2.bf16.msra.mxu0 %v1491
        %1623 = vmatprep.subr.bf16.mxu0 %v1490
        %1624 = vmatpush2.bf16.msra.mxu0 %v1489
        %1625 = vmatprep.subr.bf16.mxu0 %v1488
        %1626 = vmatpush2.bf16.msra.mxu0 %v1487
        %1627 = vmatprep.subr.bf16.mxu0 %v1486
        %1628 = vmatpush2.bf16.msra.mxu0 %v1485
        %1629 = vmatprep.mubr.bf16.mxu0 %v1270
        %1630 = vmatmul.mubr.bf16.gmra.mxu0 %v1269
        %v1631 = vpop.f32.mrf.mxu0
        %v1632 = vadd.f32 %v1250, %v1631
        %v1633 = vpop.f32.mrf.mxu0
        %v1634 = vadd.f32 %v1254, %v1633
        %v1635 = vpop.f32.mrf.mxu0
        %v1636 = vadd.f32 %v1250, %v1635
        %v1637 = vpop.f32.mrf.mxu0
        %v1638 = vadd.f32 %v1254, %v1637
        %1639 = vdwg.mxu0
        %1640 = vmatprep.subr.bf16.mxu0 %v1516
        %1641 = vmatpush1.bf16.msra.mxu0 %v1515
        %1642 = vmatprep.subr.bf16.mxu0 %v1514
        %1643 = vmatpush1.bf16.msra.mxu0 %v1513
        %1644 = vmatprep.subr.bf16.mxu0 %v1512
        %1645 = vmatpush1.bf16.msra.mxu0 %v1511
        %1646 = vmatprep.subr.bf16.mxu0 %v1510
        %1647 = vmatpush1.bf16.msra.mxu0 %v1509
        %1648 = vmatprep.subr.bf16.mxu0 %v1508
        %1649 = vmatpush1.bf16.msra.mxu0 %v1507
        %1650 = vmatprep.subr.bf16.mxu0 %v1506
        %1651 = vmatpush1.bf16.msra.mxu0 %v1505
        %1652 = vmatprep.subr.bf16.mxu0 %v1504
        %1653 = vmatpush1.bf16.msra.mxu0 %v1503
        %1654 = vmatprep.subr.bf16.mxu0 %v1502
        %1655 = vmatpush1.bf16.msra.mxu0 %v1501
        %1656 = vmatprep.subr.bf16.mxu0 %v1532
        %1657 = vmatpush2.bf16.msra.mxu0 %v1531
        %1658 = vmatprep.subr.bf16.mxu0 %v1530
        %1659 = vmatpush2.bf16.msra.mxu0 %v1529
        %1660 = vmatprep.subr.bf16.mxu0 %v1528
        %1661 = vmatpush2.bf16.msra.mxu0 %v1527
        %1662 = vmatprep.subr.bf16.mxu0 %v1526
        %1663 = vmatpush2.bf16.msra.mxu0 %v1525
        %1664 = vmatprep.subr.bf16.mxu0 %v1524
        %1665 = vmatpush2.bf16.msra.mxu0 %v1523
        %1666 = vmatprep.subr.bf16.mxu0 %v1522
        %1667 = vmatpush2.bf16.msra.mxu0 %v1521
        %1668 = vmatprep.subr.bf16.mxu0 %v1520
        %1669 = vmatpush2.bf16.msra.mxu0 %v1519
        %1670 = vmatprep.subr.bf16.mxu0 %v1518
        %1671 = vmatpush2.bf16.msra.mxu0 %v1517
        %1672 = vmatprep.mubr.bf16.mxu0 %v1272
        %1673 = vmatmul.mubr.bf16.gmra.mxu0 %v1271
        %v1674 = vpop.f32.mrf.mxu0
        %v1675 = vadd.f32 %v1632, %v1674
        %v1676 = vpop.f32.mrf.mxu0
        %v1677 = vadd.f32 %v1634, %v1676
        %v1678 = vpop.f32.mrf.mxu0
        %v1679 = vadd.f32 %v1636, %v1678
        %v1680 = vpop.f32.mrf.mxu0
        %v1681 = vadd.f32 %v1638, %v1680
        %1682 = vdwg.mxu0
        %v1683 = vlaneseq
        %vm1684 = vcmp.ge.s32.totalorder %v1683, 0
        %vm1685 = vcmp.lt.s32.totalorder %v1683, 256
        %vm1686 = vmand %vm1684, %vm1685
        %1687 = vst.msk [vmem:[%s537] ss:$8 sm:$0x3] %vm1686, %v1239
        %1688 = vst.msk [vmem:[%s537] ss:$8 sm:$0x0] %vm1686, %v1239
        %vm1693 = vcmask 1040384
        %v1694 = vrot.slane %v1675, 7
        %v1695 = vrot.slane %v1677, 7
        %v1696 = vrot.slane %v1679, 7
        %v1697 = vsel %vm1693, %v1694, %v1696
        %v1698 = vrot.slane %v1681, 7
        %v1699 = vsel %vm1693, %v1695, %v1698
        %1706 = vst [vmem:[%s537] sm:$0xfe] %v1694
        %1707 = vst [vmem:[%s537 + $0x8] sm:$0xfe] %v1695
        %1708 = vst [vmem:[%s537 + $0x10] sm:$0xff] %v1697
        %1709 = vst [vmem:[%s537 + $0x18] sm:$0xff] %v1699
        %1710 = vst [vmem:[%s537 + $0x20] sm:$0x1] %v1696
        %1711 = vst [vmem:[%s537 + $0x28] sm:$0x1] %v1698
        %s1712 = scalar_lea.vmem %s537, 33 [#allocation14]
        %1713 = vst.msk [vmem:[%s1712] ss:$8 sm:$0x3] %vm1686, %v1241
        %1714 = vst.msk [vmem:[%s1712] ss:$8 sm:$0x0] %vm1686, %v1241
        %s1715 = sand.u32 %s282, 1
        %s1716 = sand.u32 %s282, 1
        %s1717 = smul.addr %s1716, 48
        %s1718 = scalar_lea.vmem [#allocation14], %s1717
        // Predicated region
        $region96: #{tpu_custom_call.1} parent=55 // pred_check
          %p1719 = pneg %p292
        $region97: #{tpu_custom_call.1} parent=55 // pred_check_branch
          %1721 = sbr.rel (%p1719) target = $region99
        $region98: #{tpu_custom_call.1} parent=55 // pred_region
          %s1722 = smul.u32 %s33, 2
          %s1723 = sadd.s32 %s1722, %s35
          %s1724 = smul.u32 2, %s1723
          %s1725 = smul.addr %s34, 12
          %s1726 = sadd.s32 %s1724, %s1725
          %s1727 = smul.addr %s1726, 8
          %s1728 = scalar_lea.vmem %s9, %s1727
          // Predicated region
          $region100: #{tpu_custom_call.1} parent=98 // pred_check
            _
          $region101: #{tpu_custom_call.1} parent=98 // pred_check_branch
            %1730 = sbr.rel (0) target = $region103
          $region102: #{tpu_custom_call.1} parent=98 // pred_region
            // Predicated region
            $region104: #{tpu_custom_call.1} parent=102 // pred_check
              _
            $region105: #{tpu_custom_call.1} parent=102 // pred_check_branch
              %1732 = sbr.rel (0) target = $region107
            $region106: #{tpu_custom_call.1} parent=102 // pred_region
              loop: start=0, step=1, limit=1
              $region108: #{tpu_custom_call.1} parent=106 // loop_pre_header
                _
              $region109: #{tpu_custom_call.1} parent=106 // loop_header
                %s1734 = sphi 0, %s1738
                %p1735 = scmp.ge.s32.totalorder %s1734, 1
                %s1739 = sphi %s1718, %s1718
                %s1740 = sphi %s1728, %s1728
              $region110: #{tpu_custom_call.1} parent=106 // loop_header_branch
                %1737 = sbr.rel (%p1735) target = $region114
              $region111: #{tpu_custom_call.1} parent=106 // loop_body
                %v1741 = vld [vmem:[%s1739] sm:$0xff]
                %1742 = vst [vmem:[%s1740] sm:$0xff] %v1741
                %v1743 = vld [vmem:[%s1739 + $0x8] sm:$0xff]
                %1744 = vst [vmem:[%s1740 + $0x8] sm:$0xff] %v1743
                %v1745 = vld [vmem:[%s1739 + $0x10] sm:$0xff]
                %1746 = vst [vmem:[%s1740 + $0x20] sm:$0xff] %v1745
                %v1747 = vld [vmem:[%s1739 + $0x18] sm:$0xff]
                %1748 = vst [vmem:[%s1740 + $0x28] sm:$0xff] %v1747
                %v1749 = vld [vmem:[%s1739 + $0x20] sm:$0xff]
                %1750 = vst [vmem:[%s1740 + $0x40] sm:$0xff] %v1749
                %v1751 = vld [vmem:[%s1739 + $0x28] sm:$0xff]
                %1752 = vst [vmem:[%s1740 + $0x48] sm:$0xff] %v1751
              $region112: #{tpu_custom_call.1} parent=106 // loop_footer
                %s1738 = sadd.s32 1, %s1734
              $region113: #{tpu_custom_call.1} parent=106 // loop_footer_branch
                %1733 = sbr.rel target = $region109
              $region114: #{tpu_custom_call.1} parent=106 // loop_exit
                _
            $region107: #{tpu_custom_call.1} parent=102 // pred_fallthru
              _
            // Predicated region
            $region115: #{tpu_custom_call.1} parent=102 // pred_check
              _
            $region116: #{tpu_custom_call.1} parent=102 // pred_check_branch
              %1754 = sbr.rel target = $region118
            $region117: #{tpu_custom_call.1} parent=102 // pred_region
              _
            $region118: #{tpu_custom_call.1} parent=102 // pred_fallthru
              _
          $region103: #{tpu_custom_call.1} parent=98 // pred_fallthru
            _
          %1755 = vnop
        $region99: #{tpu_custom_call.1} parent=55 // pred_fallthru
          _
      $region56: #{tpu_custom_call.1} parent=5 // pred_fallthru
        _
      %p1756 = scmp.le.s32.totalorder 2, %s23
      // Predicated region
      $region119: #{tpu_custom_call.1} parent=5 // pred_check
        %p1757 = pneg %p1756
      $region120: #{tpu_custom_call.1} parent=5 // pred_check_branch
        %1759 = sbr.rel (%p1757) target = $region122
      $region121: #{tpu_custom_call.1} parent=5 // pred_region
        %s1760 = ssub.s32 %s23, 2
        // Predicated region
        $region123: #{tpu_custom_call.1} parent=121 // pred_check
          %p1761 = pneg %p298
        $region124: #{tpu_custom_call.1} parent=121 // pred_check_branch
          %1763 = sbr.rel (%p1761) target = $region126
        $region125: #{tpu_custom_call.1} parent=121 // pred_region
          %s1764 = sand.u32 %s283, 1
          %s1765 = sand.u32 %s283, 1
          %s1766 = smul.addr %s1765, 48
          %s1767 = scalar_lea.vmem [#allocation14], %s1766
        $region126: #{tpu_custom_call.1} parent=121 // pred_fallthru
          _
      $region122: #{tpu_custom_call.1} parent=5 // pred_fallthru
        _
    $region6: #{tpu_custom_call.1} parent=1 // loop_footer
      %s27 = sadd.s32 1, %s23
    $region7: #{tpu_custom_call.1} parent=1 // loop_footer_branch
      %22 = sbr.rel target = $region3
    $region8: #{tpu_custom_call.1} parent=1 // loop_exit
      _
    %1768 = vsyncpa [#allocation4], 1
    %s1769 = scalar_lea.sflag [#allocation4], 1
    %1770 = vsyncpa %s1769, 1
    %1771 = vsyncpa [#allocation6], 1
    %1772 = vsyncpa [#allocation9], 1
    %1773 = vsyncpa [#allocation12], 1
    %s1774 = scalar_lea.sflag [#allocation12], 1
    %1775 = vsyncpa %s1774, 1

</llo_original>
